<compile_context>
chip_gen: v7x
topology: tpu7x:2x2x1
jax: 0.10.0
libtpu: 0.0.40
codegen_flags: <defaults>
</compile_context>

<pallas_src>
import functools

import jax
import jax.numpy as jnp
from jax import lax
from jax.experimental import pallas as pl
from jax.experimental.pallas import tpu as pltpu


def _round_up8(c):
    return max(8, ((c + 7) // 8) * 8)


# ----------------------------------------------------------------------------
# Fused kernel: conv3x3x3 -> instnorm -> lrelu -> conv3x3x3 -> instnorm -> lrelu
# (one batch element per grid step; everything stays in VMEM)
# ----------------------------------------------------------------------------
def _normal_block_kernel(x_ref, m_ref, w1_ref, w2_ref, o_ref, hext_ref, col_ref,
                         *, spatial, pad):
    D, H, W = spatial
    S = D * H * W
    HW = H * W
    P = pad
    taps = [(kd, kh, kw) for kd in range(3) for kh in range(3) for kw in range(3)]

    # (9, S) combined (kh, kw) boundary-validity masks; the depth boundary is handled by the
    # zero lane-pads (out-of-volume depth reads land in the pad region, which is zero).
    bm = m_ref[...]

    def build_cols(xext):
        # xext: (cin_p, S + 2P), zero lane-padded.  Stage the 27 taps into the im2col slab.
        cin = xext.shape[0]
        for t, (kd, kh, kw) in enumerate(taps):
            shift = (kd - 1) * HW + (kh - 1) * W + (kw - 1)
            xs = xext[:, P + shift:P + shift + S]            # shifted neighbour read
            if kh == 1 and kw == 1:                          # interior tap: mask is all-ones
                col_ref[t * cin:(t + 1) * cin, :] = xs
            else:
                idx = kh * 3 + kw
                col_ref[t * cin:(t + 1) * cin, :] = xs * bm[idx:idx + 1, :]
        return cin

    def instnorm_lrelu(v):
        # InstanceNorm3d defaults: biased variance, eps=1e-5, affine=False; LeakyReLU 0.01.
        mean = jnp.mean(v, axis=-1, keepdims=True)
        cent = v - mean
        var = jnp.mean(cent * cent, axis=-1, keepdims=True)
        y = cent * lax.rsqrt(var + 1e-5)
        return jnp.maximum(y, 0.01 * y)

    # ---- stage 1: conv1 + norm1 + lrelu -------------------------------------------------
    cin = build_cols(x_ref[0])                               # (27*Cin_p, S) im2col slab
    h = instnorm_lrelu(jnp.dot(w1_ref[...], col_ref[:27 * cin, :],
                               preferred_element_type=jnp.float32))   # (Cmid_p, S)

    # Stage the intermediate lane-padded so stage-2 taps read zeros off-volume; only the two
    # pad strips need zeroing (the interior is fully overwritten).
    cmid = hext_ref.shape[0]
    hext_ref[:, :P] = jnp.zeros((cmid, P), jnp.float32)
    hext_ref[:, P + S:] = jnp.zeros((cmid, P), jnp.float32)
    hext_ref[:, P:P + S] = h

    # ---- stage 2: conv2 + norm2 + lrelu -------------------------------------------------
    cmid = build_cols(hext_ref[...])
    y = instnorm_lrelu(jnp.dot(w2_ref[...], col_ref[:27 * cmid, :],
                               preferred_element_type=jnp.float32))   # (Cout_p, S)

    o_ref[0] = y[:o_ref.shape[1], :]


# ----------------------------------------------------------------------------
# Host-side prep (cheap, O(S) / O(weights))
# ----------------------------------------------------------------------------
def _boundary_masks(D, H, W):
    """(9, S) masks, row kh*3+kw = validity of the (kh, kw) tap at each flattened position."""
    j = jnp.arange(D * H * W, dtype=jnp.int32)
    h = (j // W) % H
    w = j % W
    rows = []
    for kh in range(3):
        hv = (h + kh - 1 >= 0) & (h + kh - 1 < H)
        for kw in range(3):
            wv = (w + kw - 1 >= 0) & (w + kw - 1 < W)
            rows.append((hv & wv).astype(jnp.float32))
    return jnp.stack(rows, axis=0)


def _prep_weight(w, cout_p, cin_p):
    """(co, ci, 3,3,3) -> (cout_p, 27*cin_p), column index = tap*cin_p + channel."""
    co, ci = w.shape[0], w.shape[1]
    wt = w.reshape(co, ci, 27).astype(jnp.float32)           # tap index = kd*9 + kh*3 + kw
    wt = jnp.transpose(wt, (0, 2, 1))                        # (co, 27, ci)
    wt = jnp.pad(wt, ((0, cout_p - co), (0, 0), (0, cin_p - ci)))
    return wt.reshape(cout_p, 27 * cin_p)


@jax.jit
def normal_block(x, w1, w2):
    """x: (N, in_ch, D, H, W) f32; w1: (in_ch//2, in_ch, 3,3,3); w2: (out_ch, in_ch//2, 3,3,3)."""
    N, Ci, D, H, W = x.shape
    C1, C2 = w1.shape[0], w2.shape[0]
    S = D * H * W
    # Lane padding: >= max |tap shift| (H*W + W + 1) and a multiple of 128 so the interior
    # store into the scratch stays lane-aligned.
    P = ((H * W + W + 1 + 127) // 128) * 128
    Cip, C1p, C2p = _round_up8(Ci), _round_up8(C1), _round_up8(C2)
    Cmaxp = max(Cip, C1p)

    # Channel-pad to sublane multiples and lane-pad the flattened spatial axis once.
    x2 = jnp.pad(x.reshape(N, Ci, S).astype(jnp.float32),
                 ((0, 0), (0, Cip - Ci), (P, P)))
    w1t = _prep_weight(w1, C1p, Cip)                         # (C1p, 27*Cip)
    w2t = _prep_weight(w2, C2p, C1p)                         # (C2p, 27*C1p)
    bmask = _boundary_masks(D, H, W)                         # (9, S)

    kernel = functools.partial(_normal_block_kernel, spatial=(D, H, W), pad=P)
    out = pl.pallas_call(
        kernel,
        out_shape=jax.ShapeDtypeStruct((N, C2, S), jnp.float32),
        grid=(N,),
        in_specs=[
            pl.BlockSpec((1, Cip, S + 2 * P), lambda n: (n, 0, 0)),   # x (per-batch block)
            pl.BlockSpec((9, S), lambda n: (0, 0)),                   # boundary masks
            pl.BlockSpec((C1p, 27 * Cip), lambda n: (0, 0)),          # conv1 weights (matrix)
            pl.BlockSpec((C2p, 27 * C1p), lambda n: (0, 0)),          # conv2 weights (matrix)
        ],
        out_specs=pl.BlockSpec((1, C2, S), lambda n: (n, 0, 0)),
        scratch_shapes=[
            pltpu.VMEM((C1p, S + 2 * P), jnp.float32),                # lane-padded intermediate
            pltpu.VMEM((27 * Cmaxp, S), jnp.float32),                 # shared im2col slab
        ],
        compiler_params=pltpu.CompilerParams(
            dimension_semantics=("parallel",)),
    )(x2, bmask, w1t, w2t)
    # TODO(synk): for very large volumes (per-instance (27*C, S) slab approaching VMEM),
    # chunk S and switch the instance-norm to a two-pass / Welford reduction over S-chunks.
    return out.reshape(N, C2, D, H, W)


# ----------------------------------------------------------------------------
# Pure-JAX reference (correctness check only)
# ----------------------------------------------------------------------------
def _ref_conv3d(x, w):
    return lax.conv_general_dilated(
        x, w, window_strides=(1, 1, 1), padding=((1, 1), (1, 1), (1, 1)),
        dimension_numbers=("NCDHW", "OIDHW", "NCDHW"),
        precision=lax.Precision.HIGHEST)


def _ref_norm_relu(x):
    mean = jnp.mean(x, axis=(2, 3, 4), keepdims=True)
    var = jnp.mean((x - mean) ** 2, axis=(2, 3, 4), keepdims=True)
    y = (x - mean) / jnp.sqrt(var + 1e-5)
    return jnp.where(y >= 0, y, 0.01 * y)


def _ref_normal_block(x, w1, w2):
    x = _ref_norm_relu(_ref_conv3d(x, w1))
    return _ref_norm_relu(_ref_conv3d(x, w2))


# ----------------------------------------------------------------------------
if __name__ == "__main__":
    # Shapes consistent with the module: batch=2, in_ch=4, out_ch=4, spatial=8^3.
    N, in_ch, out_ch = 2, 4, 4
    D = H = W = 8

    key = jax.random.PRNGKey(0)
    kx, k1, k2 = jax.random.split(key, 3)
    x = jax.random.normal(kx, (N, in_ch, D, H, W), dtype=jnp.float32)
    # Conv3d weights (bias=False): (out, in, 3, 3, 3)
    w1 = jax.random.normal(k1, (in_ch // 2, in_ch, 3, 3, 3), dtype=jnp.float32) * 0.1
    w2 = jax.random.normal(k2, (out_ch, in_ch // 2, 3, 3, 3), dtype=jnp.float32) * 0.1

    out = jax.block_until_ready(normal_block(x, w1, w2))
    ref = _ref_normal_block(x, w1, w2)

    assert out.shape == (N, out_ch, D, H, W)
    assert jnp.allclose(out, ref, atol=1e-3, rtol=1e-3), float(jnp.max(jnp.abs(out - ref)))

    print("KERNEL_OK")
</pallas_src>

<mosaic_0001>
module attributes {stable_mosaic.version = 11 : i64} {
  func.func @_normal_block_kernel(%arg0: i32, %arg1: memref<1x8x768xf32, #tpu.memory_space<vmem>>, %arg2: memref<9x512xf32, #tpu.memory_space<vmem>>, %arg3: memref<8x216xf32, #tpu.memory_space<vmem>>, %arg4: memref<8x216xf32, #tpu.memory_space<vmem>>, %arg5: memref<1x4x512xf32, #tpu.memory_space<vmem>>, %arg6: memref<8x768xf32, #tpu.memory_space<vmem>>, %arg7: memref<216x512xf32, #tpu.memory_space<vmem>>) attributes {dimension_semantics = [#tpu.dimension_semantics<parallel>], iteration_bounds = array<i64: 2>, scalar_prefetch = 0 : i64, scratch_operands = 2 : i64, tpu.core_type = #tpu.core_type<tc>, window_params = [{transform_indices = @transform_0, window_bounds = array<i64: 1, 8, 768>}, {pipeline_mode = #tpu.pipeline_mode<synchronous>, transform_indices = @transform_1, window_bounds = array<i64: 9, 512>}, {pipeline_mode = #tpu.pipeline_mode<synchronous>, transform_indices = @transform_2, window_bounds = array<i64: 8, 216>}, {pipeline_mode = #tpu.pipeline_mode<synchronous>, transform_indices = @transform_3, window_bounds = array<i64: 8, 216>}, {transform_indices = @transform_4, window_bounds = array<i64: 1, 4, 512>}]} {
    %c0 = arith.constant 0 : index
    %c0_0 = arith.constant 0 : index
    %0 = vector.load %arg2[%c0, %c0_0] : memref<9x512xf32, #tpu.memory_space<vmem>>, vector<9x512xf32>
    %c0_1 = arith.constant 0 : index
    %c0_2 = arith.constant 0 : index
    %c0_3 = arith.constant 0 : index
    %1 = vector.load %arg1[%c0_1, %c0_2, %c0_3] : memref<1x8x768xf32, #tpu.memory_space<vmem>>, vector<1x8x768xf32>
    %2 = vector.shape_cast %1 : vector<1x8x768xf32> to vector<8x768xf32>
    %3 = vector.extract_strided_slice %2 {offsets = [0, 55], sizes = [8, 512], strides = [1, 1]} : vector<8x768xf32> to vector<8x512xf32>
    %4 = vector.extract_strided_slice %0 {offsets = [0, 0], sizes = [1, 512], strides = [1, 1]} : vector<9x512xf32> to vector<1x512xf32>
    %5 = vector.broadcast %4 : vector<1x512xf32> to vector<8x512xf32>
    %6 = arith.mulf %3, %5 : vector<8x512xf32>
    %c0_4 = arith.constant 0 : index
    %c0_5 = arith.constant 0 : index
    %7 = vector.load %arg7[%c0_4, %c0_5] : memref<216x512xf32, #tpu.memory_space<vmem>>, vector<8x512xf32>
    tpu.vector_store %arg7[%c0_4, %c0_5], %6 {strides = array<i32>} : memref<216x512xf32, #tpu.memory_space<vmem>>, vector<8x512xf32>,
    %8 = vector.extract_strided_slice %2 {offsets = [0, 56], sizes = [8, 512], strides = [1, 1]} : vector<8x768xf32> to vector<8x512xf32>
    %9 = vector.extract_strided_slice %0 {offsets = [1, 0], sizes = [1, 512], strides = [1, 1]} : vector<9x512xf32> to vector<1x512xf32>
    %10 = vector.broadcast %9 : vector<1x512xf32> to vector<8x512xf32>
    %11 = arith.mulf %8, %10 : vector<8x512xf32>
    %c8 = arith.constant 8 : index
    %c0_6 = arith.constant 0 : index
    %12 = vector.load %arg7[%c8, %c0_6] : memref<216x512xf32, #tpu.memory_space<vmem>>, vector<8x512xf32>
    tpu.vector_store %arg7[%c8, %c0_6], %11 {strides = array<i32>} : memref<216x512xf32, #tpu.memory_space<vmem>>, vector<8x512xf32>,
    %13 = vector.extract_strided_slice %2 {offsets = [0, 57], sizes = [8, 512], strides = [1, 1]} : vector<8x768xf32> to vector<8x512xf32>
    %14 = vector.extract_strided_slice %0 {offsets = [2, 0], sizes = [1, 512], strides = [1, 1]} : vector<9x512xf32> to vector<1x512xf32>
    %15 = vector.broadcast %14 : vector<1x512xf32> to vector<8x512xf32>
    %16 = arith.mulf %13, %15 : vector<8x512xf32>
    %c16 = arith.constant 16 : index
    %c0_7 = arith.constant 0 : index
    %17 = vector.load %arg7[%c16, %c0_7] : memref<216x512xf32, #tpu.memory_space<vmem>>, vector<8x512xf32>
    tpu.vector_store %arg7[%c16, %c0_7], %16 {strides = array<i32>} : memref<216x512xf32, #tpu.memory_space<vmem>>, vector<8x512xf32>,
    %18 = vector.extract_strided_slice %2 {offsets = [0, 63], sizes = [8, 512], strides = [1, 1]} : vector<8x768xf32> to vector<8x512xf32>
    %19 = vector.extract_strided_slice %0 {offsets = [3, 0], sizes = [1, 512], strides = [1, 1]} : vector<9x512xf32> to vector<1x512xf32>
    %20 = vector.broadcast %19 : vector<1x512xf32> to vector<8x512xf32>
    %21 = arith.mulf %18, %20 : vector<8x512xf32>
    %c24 = arith.constant 24 : index
    %c0_8 = arith.constant 0 : index
    %22 = vector.load %arg7[%c24, %c0_8] : memref<216x512xf32, #tpu.memory_space<vmem>>, vector<8x512xf32>
    tpu.vector_store %arg7[%c24, %c0_8], %21 {strides = array<i32>} : memref<216x512xf32, #tpu.memory_space<vmem>>, vector<8x512xf32>,
    %23 = vector.extract_strided_slice %2 {offsets = [0, 64], sizes = [8, 512], strides = [1, 1]} : vector<8x768xf32> to vector<8x512xf32>
    %c32 = arith.constant 32 : index
    %c0_9 = arith.constant 0 : index
    %24 = vector.load %arg7[%c32, %c0_9] : memref<216x512xf32, #tpu.memory_space<vmem>>, vector<8x512xf32>
    tpu.vector_store %arg7[%c32, %c0_9], %23 {strides = array<i32>} : memref<216x512xf32, #tpu.memory_space<vmem>>, vector<8x512xf32>,
    %25 = vector.extract_strided_slice %2 {offsets = [0, 65], sizes = [8, 512], strides = [1, 1]} : vector<8x768xf32> to vector<8x512xf32>
    %26 = vector.extract_strided_slice %0 {offsets = [5, 0], sizes = [1, 512], strides = [1, 1]} : vector<9x512xf32> to vector<1x512xf32>
    %27 = vector.broadcast %26 : vector<1x512xf32> to vector<8x512xf32>
    %28 = arith.mulf %25, %27 : vector<8x512xf32>
    %c40 = arith.constant 40 : index
    %c0_10 = arith.constant 0 : index
    %29 = vector.load %arg7[%c40, %c0_10] : memref<216x512xf32, #tpu.memory_space<vmem>>, vector<8x512xf32>
    tpu.vector_store %arg7[%c40, %c0_10], %28 {strides = array<i32>} : memref<216x512xf32, #tpu.memory_space<vmem>>, vector<8x512xf32>,
    %30 = vector.extract_strided_slice %2 {offsets = [0, 71], sizes = [8, 512], strides = [1, 1]} : vector<8x768xf32> to vector<8x512xf32>
    %31 = vector.extract_strided_slice %0 {offsets = [6, 0], sizes = [1, 512], strides = [1, 1]} : vector<9x512xf32> to vector<1x512xf32>
    %32 = vector.broadcast %31 : vector<1x512xf32> to vector<8x512xf32>
    %33 = arith.mulf %30, %32 : vector<8x512xf32>
    %c48 = arith.constant 48 : index
    %c0_11 = arith.constant 0 : index
    %34 = vector.load %arg7[%c48, %c0_11] : memref<216x512xf32, #tpu.memory_space<vmem>>, vector<8x512xf32>
    tpu.vector_store %arg7[%c48, %c0_11], %33 {strides = array<i32>} : memref<216x512xf32, #tpu.memory_space<vmem>>, vector<8x512xf32>,
    %35 = vector.extract_strided_slice %2 {offsets = [0, 72], sizes = [8, 512], strides = [1, 1]} : vector<8x768xf32> to vector<8x512xf32>
    %36 = vector.extract_strided_slice %0 {offsets = [7, 0], sizes = [1, 512], strides = [1, 1]} : vector<9x512xf32> to vector<1x512xf32>
    %37 = vector.broadcast %36 : vector<1x512xf32> to vector<8x512xf32>
    %38 = arith.mulf %35, %37 : vector<8x512xf32>
    %c56 = arith.constant 56 : index
    %c0_12 = arith.constant 0 : index
    %39 = vector.load %arg7[%c56, %c0_12] : memref<216x512xf32, #tpu.memory_space<vmem>>, vector<8x512xf32>
    tpu.vector_store %arg7[%c56, %c0_12], %38 {strides = array<i32>} : memref<216x512xf32, #tpu.memory_space<vmem>>, vector<8x512xf32>,
    %40 = vector.extract_strided_slice %2 {offsets = [0, 73], sizes = [8, 512], strides = [1, 1]} : vector<8x768xf32> to vector<8x512xf32>
    %41 = vector.extract_strided_slice %0 {offsets = [8, 0], sizes = [1, 512], strides = [1, 1]} : vector<9x512xf32> to vector<1x512xf32>
    %42 = vector.broadcast %41 : vector<1x512xf32> to vector<8x512xf32>
    %43 = arith.mulf %40, %42 : vector<8x512xf32>
    %c64 = arith.constant 64 : index
    %c0_13 = arith.constant 0 : index
    %44 = vector.load %arg7[%c64, %c0_13] : memref<216x512xf32, #tpu.memory_space<vmem>>, vector<8x512xf32>
    tpu.vector_store %arg7[%c64, %c0_13], %43 {strides = array<i32>} : memref<216x512xf32, #tpu.memory_space<vmem>>, vector<8x512xf32>,
    %45 = vector.extract_strided_slice %2 {offsets = [0, 119], sizes = [8, 512], strides = [1, 1]} : vector<8x768xf32> to vector<8x512xf32>
    %46 = vector.extract_strided_slice %0 {offsets = [0, 0], sizes = [1, 512], strides = [1, 1]} : vector<9x512xf32> to vector<1x512xf32>
    %47 = vector.broadcast %46 : vector<1x512xf32> to vector<8x512xf32>
    %48 = arith.mulf %45, %47 : vector<8x512xf32>
    %c72 = arith.constant 72 : index
    %c0_14 = arith.constant 0 : index
    %49 = vector.load %arg7[%c72, %c0_14] : memref<216x512xf32, #tpu.memory_space<vmem>>, vector<8x512xf32>
    tpu.vector_store %arg7[%c72, %c0_14], %48 {strides = array<i32>} : memref<216x512xf32, #tpu.memory_space<vmem>>, vector<8x512xf32>,
    %50 = vector.extract_strided_slice %2 {offsets = [0, 120], sizes = [8, 512], strides = [1, 1]} : vector<8x768xf32> to vector<8x512xf32>
    %51 = vector.extract_strided_slice %0 {offsets = [1, 0], sizes = [1, 512], strides = [1, 1]} : vector<9x512xf32> to vector<1x512xf32>
    %52 = vector.broadcast %51 : vector<1x512xf32> to vector<8x512xf32>
    %53 = arith.mulf %50, %52 : vector<8x512xf32>
    %c80 = arith.constant 80 : index
    %c0_15 = arith.constant 0 : index
    %54 = vector.load %arg7[%c80, %c0_15] : memref<216x512xf32, #tpu.memory_space<vmem>>, vector<8x512xf32>
    tpu.vector_store %arg7[%c80, %c0_15], %53 {strides = array<i32>} : memref<216x512xf32, #tpu.memory_space<vmem>>, vector<8x512xf32>,
    %55 = vector.extract_strided_slice %2 {offsets = [0, 121], sizes = [8, 512], strides = [1, 1]} : vector<8x768xf32> to vector<8x512xf32>
    %56 = vector.extract_strided_slice %0 {offsets = [2, 0], sizes = [1, 512], strides = [1, 1]} : vector<9x512xf32> to vector<1x512xf32>
    %57 = vector.broadcast %56 : vector<1x512xf32> to vector<8x512xf32>
    %58 = arith.mulf %55, %57 : vector<8x512xf32>
    %c88 = arith.constant 88 : index
    %c0_16 = arith.constant 0 : index
    %59 = vector.load %arg7[%c88, %c0_16] : memref<216x512xf32, #tpu.memory_space<vmem>>, vector<8x512xf32>
    tpu.vector_store %arg7[%c88, %c0_16], %58 {strides = array<i32>} : memref<216x512xf32, #tpu.memory_space<vmem>>, vector<8x512xf32>,
    %60 = vector.extract_strided_slice %2 {offsets = [0, 127], sizes = [8, 512], strides = [1, 1]} : vector<8x768xf32> to vector<8x512xf32>
    %61 = vector.extract_strided_slice %0 {offsets = [3, 0], sizes = [1, 512], strides = [1, 1]} : vector<9x512xf32> to vector<1x512xf32>
    %62 = vector.broadcast %61 : vector<1x512xf32> to vector<8x512xf32>
    %63 = arith.mulf %60, %62 : vector<8x512xf32>
    %c96 = arith.constant 96 : index
    %c0_17 = arith.constant 0 : index
    %64 = vector.load %arg7[%c96, %c0_17] : memref<216x512xf32, #tpu.memory_space<vmem>>, vector<8x512xf32>
    tpu.vector_store %arg7[%c96, %c0_17], %63 {strides = array<i32>} : memref<216x512xf32, #tpu.memory_space<vmem>>, vector<8x512xf32>,
    %65 = vector.extract_strided_slice %2 {offsets = [0, 128], sizes = [8, 512], strides = [1, 1]} : vector<8x768xf32> to vector<8x512xf32>
    %c104 = arith.constant 104 : index
    %c0_18 = arith.constant 0 : index
    %66 = vector.load %arg7[%c104, %c0_18] : memref<216x512xf32, #tpu.memory_space<vmem>>, vector<8x512xf32>
    tpu.vector_store %arg7[%c104, %c0_18], %65 {strides = array<i32>} : memref<216x512xf32, #tpu.memory_space<vmem>>, vector<8x512xf32>,
    %67 = vector.extract_strided_slice %2 {offsets = [0, 129], sizes = [8, 512], strides = [1, 1]} : vector<8x768xf32> to vector<8x512xf32>
    %68 = vector.extract_strided_slice %0 {offsets = [5, 0], sizes = [1, 512], strides = [1, 1]} : vector<9x512xf32> to vector<1x512xf32>
    %69 = vector.broadcast %68 : vector<1x512xf32> to vector<8x512xf32>
    %70 = arith.mulf %67, %69 : vector<8x512xf32>
    %c112 = arith.constant 112 : index
    %c0_19 = arith.constant 0 : index
    %71 = vector.load %arg7[%c112, %c0_19] : memref<216x512xf32, #tpu.memory_space<vmem>>, vector<8x512xf32>
    tpu.vector_store %arg7[%c112, %c0_19], %70 {strides = array<i32>} : memref<216x512xf32, #tpu.memory_space<vmem>>, vector<8x512xf32>,
    %72 = vector.extract_strided_slice %2 {offsets = [0, 135], sizes = [8, 512], strides = [1, 1]} : vector<8x768xf32> to vector<8x512xf32>
    %73 = vector.extract_strided_slice %0 {offsets = [6, 0], sizes = [1, 512], strides = [1, 1]} : vector<9x512xf32> to vector<1x512xf32>
    %74 = vector.broadcast %73 : vector<1x512xf32> to vector<8x512xf32>
    %75 = arith.mulf %72, %74 : vector<8x512xf32>
    %c120 = arith.constant 120 : index
    %c0_20 = arith.constant 0 : index
    %76 = vector.load %arg7[%c120, %c0_20] : memref<216x512xf32, #tpu.memory_space<vmem>>, vector<8x512xf32>
    tpu.vector_store %arg7[%c120, %c0_20], %75 {strides = array<i32>} : memref<216x512xf32, #tpu.memory_space<vmem>>, vector<8x512xf32>,
    %77 = vector.extract_strided_slice %2 {offsets = [0, 136], sizes = [8, 512], strides = [1, 1]} : vector<8x768xf32> to vector<8x512xf32>
    %78 = vector.extract_strided_slice %0 {offsets = [7, 0], sizes = [1, 512], strides = [1, 1]} : vector<9x512xf32> to vector<1x512xf32>
    %79 = vector.broadcast %78 : vector<1x512xf32> to vector<8x512xf32>
    %80 = arith.mulf %77, %79 : vector<8x512xf32>
    %c128 = arith.constant 128 : index
    %c0_21 = arith.constant 0 : index
    %81 = vector.load %arg7[%c128, %c0_21] : memref<216x512xf32, #tpu.memory_space<vmem>>, vector<8x512xf32>
    tpu.vector_store %arg7[%c128, %c0_21], %80 {strides = array<i32>} : memref<216x512xf32, #tpu.memory_space<vmem>>, vector<8x512xf32>,
    %82 = vector.extract_strided_slice %2 {offsets = [0, 137], sizes = [8, 512], strides = [1, 1]} : vector<8x768xf32> to vector<8x512xf32>
    %83 = vector.extract_strided_slice %0 {offsets = [8, 0], sizes = [1, 512], strides = [1, 1]} : vector<9x512xf32> to vector<1x512xf32>
    %84 = vector.broadcast %83 : vector<1x512xf32> to vector<8x512xf32>
    %85 = arith.mulf %82, %84 : vector<8x512xf32>
    %c136 = arith.constant 136 : index
    %c0_22 = arith.constant 0 : index
    %86 = vector.load %arg7[%c136, %c0_22] : memref<216x512xf32, #tpu.memory_space<vmem>>, vector<8x512xf32>
    tpu.vector_store %arg7[%c136, %c0_22], %85 {strides = array<i32>} : memref<216x512xf32, #tpu.memory_space<vmem>>, vector<8x512xf32>,
    %87 = vector.extract_strided_slice %2 {offsets = [0, 183], sizes = [8, 512], strides = [1, 1]} : vector<8x768xf32> to vector<8x512xf32>
    %88 = vector.extract_strided_slice %0 {offsets = [0, 0], sizes = [1, 512], strides = [1, 1]} : vector<9x512xf32> to vector<1x512xf32>
    %89 = vector.broadcast %88 : vector<1x512xf32> to vector<8x512xf32>
    %90 = arith.mulf %87, %89 : vector<8x512xf32>
    %c144 = arith.constant 144 : index
    %c0_23 = arith.constant 0 : index
    %91 = vector.load %arg7[%c144, %c0_23] : memref<216x512xf32, #tpu.memory_space<vmem>>, vector<8x512xf32>
    tpu.vector_store %arg7[%c144, %c0_23], %90 {strides = array<i32>} : memref<216x512xf32, #tpu.memory_space<vmem>>, vector<8x512xf32>,
    %92 = vector.extract_strided_slice %2 {offsets = [0, 184], sizes = [8, 512], strides = [1, 1]} : vector<8x768xf32> to vector<8x512xf32>
    %93 = vector.extract_strided_slice %0 {offsets = [1, 0], sizes = [1, 512], strides = [1, 1]} : vector<9x512xf32> to vector<1x512xf32>
    %94 = vector.broadcast %93 : vector<1x512xf32> to vector<8x512xf32>
    %95 = arith.mulf %92, %94 : vector<8x512xf32>
    %c152 = arith.constant 152 : index
    %c0_24 = arith.constant 0 : index
    %96 = vector.load %arg7[%c152, %c0_24] : memref<216x512xf32, #tpu.memory_space<vmem>>, vector<8x512xf32>
    tpu.vector_store %arg7[%c152, %c0_24], %95 {strides = array<i32>} : memref<216x512xf32, #tpu.memory_space<vmem>>, vector<8x512xf32>,
    %97 = vector.extract_strided_slice %2 {offsets = [0, 185], sizes = [8, 512], strides = [1, 1]} : vector<8x768xf32> to vector<8x512xf32>
    %98 = vector.extract_strided_slice %0 {offsets = [2, 0], sizes = [1, 512], strides = [1, 1]} : vector<9x512xf32> to vector<1x512xf32>
    %99 = vector.broadcast %98 : vector<1x512xf32> to vector<8x512xf32>
    %100 = arith.mulf %97, %99 : vector<8x512xf32>
    %c160 = arith.constant 160 : index
    %c0_25 = arith.constant 0 : index
    %101 = vector.load %arg7[%c160, %c0_25] : memref<216x512xf32, #tpu.memory_space<vmem>>, vector<8x512xf32>
    tpu.vector_store %arg7[%c160, %c0_25], %100 {strides = array<i32>} : memref<216x512xf32, #tpu.memory_space<vmem>>, vector<8x512xf32>,
    %102 = vector.extract_strided_slice %2 {offsets = [0, 191], sizes = [8, 512], strides = [1, 1]} : vector<8x768xf32> to vector<8x512xf32>
    %103 = vector.extract_strided_slice %0 {offsets = [3, 0], sizes = [1, 512], strides = [1, 1]} : vector<9x512xf32> to vector<1x512xf32>
    %104 = vector.broadcast %103 : vector<1x512xf32> to vector<8x512xf32>
    %105 = arith.mulf %102, %104 : vector<8x512xf32>
    %c168 = arith.constant 168 : index
    %c0_26 = arith.constant 0 : index
    %106 = vector.load %arg7[%c168, %c0_26] : memref<216x512xf32, #tpu.memory_space<vmem>>, vector<8x512xf32>
    tpu.vector_store %arg7[%c168, %c0_26], %105 {strides = array<i32>} : memref<216x512xf32, #tpu.memory_space<vmem>>, vector<8x512xf32>,
    %107 = vector.extract_strided_slice %2 {offsets = [0, 192], sizes = [8, 512], strides = [1, 1]} : vector<8x768xf32> to vector<8x512xf32>
    %c176 = arith.constant 176 : index
    %c0_27 = arith.constant 0 : index
    %108 = vector.load %arg7[%c176, %c0_27] : memref<216x512xf32, #tpu.memory_space<vmem>>, vector<8x512xf32>
    tpu.vector_store %arg7[%c176, %c0_27], %107 {strides = array<i32>} : memref<216x512xf32, #tpu.memory_space<vmem>>, vector<8x512xf32>,
    %109 = vector.extract_strided_slice %2 {offsets = [0, 193], sizes = [8, 512], strides = [1, 1]} : vector<8x768xf32> to vector<8x512xf32>
    %110 = vector.extract_strided_slice %0 {offsets = [5, 0], sizes = [1, 512], strides = [1, 1]} : vector<9x512xf32> to vector<1x512xf32>
    %111 = vector.broadcast %110 : vector<1x512xf32> to vector<8x512xf32>
    %112 = arith.mulf %109, %111 : vector<8x512xf32>
    %c184 = arith.constant 184 : index
    %c0_28 = arith.constant 0 : index
    %113 = vector.load %arg7[%c184, %c0_28] : memref<216x512xf32, #tpu.memory_space<vmem>>, vector<8x512xf32>
    tpu.vector_store %arg7[%c184, %c0_28], %112 {strides = array<i32>} : memref<216x512xf32, #tpu.memory_space<vmem>>, vector<8x512xf32>,
    %114 = vector.extract_strided_slice %2 {offsets = [0, 199], sizes = [8, 512], strides = [1, 1]} : vector<8x768xf32> to vector<8x512xf32>
    %115 = vector.extract_strided_slice %0 {offsets = [6, 0], sizes = [1, 512], strides = [1, 1]} : vector<9x512xf32> to vector<1x512xf32>
    %116 = vector.broadcast %115 : vector<1x512xf32> to vector<8x512xf32>
    %117 = arith.mulf %114, %116 : vector<8x512xf32>
    %c192 = arith.constant 192 : index
    %c0_29 = arith.constant 0 : index
    %118 = vector.load %arg7[%c192, %c0_29] : memref<216x512xf32, #tpu.memory_space<vmem>>, vector<8x512xf32>
    tpu.vector_store %arg7[%c192, %c0_29], %117 {strides = array<i32>} : memref<216x512xf32, #tpu.memory_space<vmem>>, vector<8x512xf32>,
    %119 = vector.extract_strided_slice %2 {offsets = [0, 200], sizes = [8, 512], strides = [1, 1]} : vector<8x768xf32> to vector<8x512xf32>
    %120 = vector.extract_strided_slice %0 {offsets = [7, 0], sizes = [1, 512], strides = [1, 1]} : vector<9x512xf32> to vector<1x512xf32>
    %121 = vector.broadcast %120 : vector<1x512xf32> to vector<8x512xf32>
    %122 = arith.mulf %119, %121 : vector<8x512xf32>
    %c200 = arith.constant 200 : index
    %c0_30 = arith.constant 0 : index
    %123 = vector.load %arg7[%c200, %c0_30] : memref<216x512xf32, #tpu.memory_space<vmem>>, vector<8x512xf32>
    tpu.vector_store %arg7[%c200, %c0_30], %122 {strides = array<i32>} : memref<216x512xf32, #tpu.memory_space<vmem>>, vector<8x512xf32>,
    %124 = vector.extract_strided_slice %2 {offsets = [0, 201], sizes = [8, 512], strides = [1, 1]} : vector<8x768xf32> to vector<8x512xf32>
    %125 = vector.extract_strided_slice %0 {offsets = [8, 0], sizes = [1, 512], strides = [1, 1]} : vector<9x512xf32> to vector<1x512xf32>
    %126 = vector.broadcast %125 : vector<1x512xf32> to vector<8x512xf32>
    %127 = arith.mulf %124, %126 : vector<8x512xf32>
    %c208 = arith.constant 208 : index
    %c0_31 = arith.constant 0 : index
    %128 = vector.load %arg7[%c208, %c0_31] : memref<216x512xf32, #tpu.memory_space<vmem>>, vector<8x512xf32>
    tpu.vector_store %arg7[%c208, %c0_31], %127 {strides = array<i32>} : memref<216x512xf32, #tpu.memory_space<vmem>>, vector<8x512xf32>,
    %c0_32 = arith.constant 0 : index
    %c0_33 = arith.constant 0 : index
    %129 = vector.load %arg3[%c0_32, %c0_33] : memref<8x216xf32, #tpu.memory_space<vmem>>, vector<8x216xf32>
    %c0_34 = arith.constant 0 : index
    %c0_35 = arith.constant 0 : index
    %130 = vector.load %arg7[%c0_34, %c0_35] : memref<216x512xf32, #tpu.memory_space<vmem>>, vector<216x512xf32>
    %cst = arith.constant dense<0.000000e+00> : vector<8x512xf32>
    %131 = tpu.matmul %129, %130, %cst {dimension_numbers = #tpu.dot_dimension_numbers<[1], [0], [0], [1], [0, 0, 1, 1], [], []>} : vector<8x216xf32>, vector<216x512xf32>, vector<8x512xf32> -> vector<8x512xf32>
    %cst_36 = arith.constant dense<0.000000e+00> : vector<8xf32>
    %132 = vector.multi_reduction <add>, %131, %cst_36 [1] : vector<8x512xf32> to vector<8xf32>
    %133 = vector.shape_cast %132 : vector<8xf32> to vector<8x1xf32>
    %cst_37 = arith.constant 5.120000e+02 : f32
    %134 = vector.broadcast %cst_37 : f32 to vector<8x1xf32>
    %135 = arith.divf %133, %134 : vector<8x1xf32>
    %136 = vector.broadcast %135 : vector<8x1xf32> to vector<8x512xf32>
    %137 = arith.subf %131, %136 : vector<8x512xf32>
    %138 = arith.mulf %137, %137 : vector<8x512xf32>
    %cst_38 = arith.constant dense<0.000000e+00> : vector<8xf32>
    %139 = vector.multi_reduction <add>, %138, %cst_38 [1] : vector<8x512xf32> to vector<8xf32>
    %140 = vector.shape_cast %139 : vector<8xf32> to vector<8x1xf32>
    %cst_39 = arith.constant 5.120000e+02 : f32
    %141 = vector.broadcast %cst_39 : f32 to vector<8x1xf32>
    %142 = arith.divf %140, %141 : vector<8x1xf32>
    %cst_40 = arith.constant 9.99999974E-6 : f32
    %143 = vector.broadcast %cst_40 : f32 to vector<8x1xf32>
    %144 = arith.addf %142, %143 : vector<8x1xf32>
    %145 = math.rsqrt %144 : vector<8x1xf32>
    %146 = vector.broadcast %145 : vector<8x1xf32> to vector<8x512xf32>
    %147 = arith.mulf %137, %146 : vector<8x512xf32>
    %cst_41 = arith.constant 0.00999999977 : f32
    %148 = vector.broadcast %cst_41 : f32 to vector<8x512xf32>
    %149 = arith.mulf %148, %147 : vector<8x512xf32>
    %150 = arith.maximumf %147, %149 : vector<8x512xf32>
    %cst_42 = arith.constant 0.000000e+00 : f32
    %151 = vector.broadcast %cst_42 : f32 to vector<8x128xf32>
    %c0_43 = arith.constant 0 : index
    %c0_44 = arith.constant 0 : index
    %152 = vector.load %arg6[%c0_43, %c0_44] : memref<8x768xf32, #tpu.memory_space<vmem>>, vector<8x128xf32>
    tpu.vector_store %arg6[%c0_43, %c0_44], %151 {strides = array<i32>} : memref<8x768xf32, #tpu.memory_space<vmem>>, vector<8x128xf32>,
    %cst_45 = arith.constant 0.000000e+00 : f32
    %153 = vector.broadcast %cst_45 : f32 to vector<8x128xf32>
    %c0_46 = arith.constant 0 : index
    %c640 = arith.constant 640 : index
    %154 = vector.load %arg6[%c0_46, %c640] : memref<8x768xf32, #tpu.memory_space<vmem>>, vector<8x128xf32>
    tpu.vector_store %arg6[%c0_46, %c640], %153 {strides = array<i32>} : memref<8x768xf32, #tpu.memory_space<vmem>>, vector<8x128xf32>,
    %c0_47 = arith.constant 0 : index
    %c128_48 = arith.constant 128 : index
    %155 = vector.load %arg6[%c0_47, %c128_48] : memref<8x768xf32, #tpu.memory_space<vmem>>, vector<8x512xf32>
    tpu.vector_store %arg6[%c0_47, %c128_48], %150 {strides = array<i32>} : memref<8x768xf32, #tpu.memory_space<vmem>>, vector<8x512xf32>,
    %c0_49 = arith.constant 0 : index
    %c0_50 = arith.constant 0 : index
    %156 = vector.load %arg6[%c0_49, %c0_50] : memref<8x768xf32, #tpu.memory_space<vmem>>, vector<8x768xf32>
    %157 = vector.extract_strided_slice %156 {offsets = [0, 55], sizes = [8, 512], strides = [1, 1]} : vector<8x768xf32> to vector<8x512xf32>
    %158 = vector.extract_strided_slice %0 {offsets = [0, 0], sizes = [1, 512], strides = [1, 1]} : vector<9x512xf32> to vector<1x512xf32>
    %159 = vector.broadcast %158 : vector<1x512xf32> to vector<8x512xf32>
    %160 = arith.mulf %157, %159 : vector<8x512xf32>
    %c0_51 = arith.constant 0 : index
    %c0_52 = arith.constant 0 : index
    %161 = vector.load %arg7[%c0_51, %c0_52] : memref<216x512xf32, #tpu.memory_space<vmem>>, vector<8x512xf32>
    tpu.vector_store %arg7[%c0_51, %c0_52], %160 {strides = array<i32>} : memref<216x512xf32, #tpu.memory_space<vmem>>, vector<8x512xf32>,
    %162 = vector.extract_strided_slice %156 {offsets = [0, 56], sizes = [8, 512], strides = [1, 1]} : vector<8x768xf32> to vector<8x512xf32>
    %163 = vector.extract_strided_slice %0 {offsets = [1, 0], sizes = [1, 512], strides = [1, 1]} : vector<9x512xf32> to vector<1x512xf32>
    %164 = vector.broadcast %163 : vector<1x512xf32> to vector<8x512xf32>
    %165 = arith.mulf %162, %164 : vector<8x512xf32>
    %c8_53 = arith.constant 8 : index
    %c0_54 = arith.constant 0 : index
    %166 = vector.load %arg7[%c8_53, %c0_54] : memref<216x512xf32, #tpu.memory_space<vmem>>, vector<8x512xf32>
    tpu.vector_store %arg7[%c8_53, %c0_54], %165 {strides = array<i32>} : memref<216x512xf32, #tpu.memory_space<vmem>>, vector<8x512xf32>,
    %167 = vector.extract_strided_slice %156 {offsets = [0, 57], sizes = [8, 512], strides = [1, 1]} : vector<8x768xf32> to vector<8x512xf32>
    %168 = vector.extract_strided_slice %0 {offsets = [2, 0], sizes = [1, 512], strides = [1, 1]} : vector<9x512xf32> to vector<1x512xf32>
    %169 = vector.broadcast %168 : vector<1x512xf32> to vector<8x512xf32>
    %170 = arith.mulf %167, %169 : vector<8x512xf32>
    %c16_55 = arith.constant 16 : index
    %c0_56 = arith.constant 0 : index
    %171 = vector.load %arg7[%c16_55, %c0_56] : memref<216x512xf32, #tpu.memory_space<vmem>>, vector<8x512xf32>
    tpu.vector_store %arg7[%c16_55, %c0_56], %170 {strides = array<i32>} : memref<216x512xf32, #tpu.memory_space<vmem>>, vector<8x512xf32>,
    %172 = vector.extract_strided_slice %156 {offsets = [0, 63], sizes = [8, 512], strides = [1, 1]} : vector<8x768xf32> to vector<8x512xf32>
    %173 = vector.extract_strided_slice %0 {offsets = [3, 0], sizes = [1, 512], strides = [1, 1]} : vector<9x512xf32> to vector<1x512xf32>
    %174 = vector.broadcast %173 : vector<1x512xf32> to vector<8x512xf32>
    %175 = arith.mulf %172, %174 : vector<8x512xf32>
    %c24_57 = arith.constant 24 : index
    %c0_58 = arith.constant 0 : index
    %176 = vector.load %arg7[%c24_57, %c0_58] : memref<216x512xf32, #tpu.memory_space<vmem>>, vector<8x512xf32>
    tpu.vector_store %arg7[%c24_57, %c0_58], %175 {strides = array<i32>} : memref<216x512xf32, #tpu.memory_space<vmem>>, vector<8x512xf32>,
    %177 = vector.extract_strided_slice %156 {offsets = [0, 64], sizes = [8, 512], strides = [1, 1]} : vector<8x768xf32> to vector<8x512xf32>
    %c32_59 = arith.constant 32 : index
    %c0_60 = arith.constant 0 : index
    %178 = vector.load %arg7[%c32_59, %c0_60] : memref<216x512xf32, #tpu.memory_space<vmem>>, vector<8x512xf32>
    tpu.vector_store %arg7[%c32_59, %c0_60], %177 {strides = array<i32>} : memref<216x512xf32, #tpu.memory_space<vmem>>, vector<8x512xf32>,
    %179 = vector.extract_strided_slice %156 {offsets = [0, 65], sizes = [8, 512], strides = [1, 1]} : vector<8x768xf32> to vector<8x512xf32>
    %180 = vector.extract_strided_slice %0 {offsets = [5, 0], sizes = [1, 512], strides = [1, 1]} : vector<9x512xf32> to vector<1x512xf32>
    %181 = vector.broadcast %180 : vector<1x512xf32> to vector<8x512xf32>
    %182 = arith.mulf %179, %181 : vector<8x512xf32>
    %c40_61 = arith.constant 40 : index
    %c0_62 = arith.constant 0 : index
    %183 = vector.load %arg7[%c40_61, %c0_62] : memref<216x512xf32, #tpu.memory_space<vmem>>, vector<8x512xf32>
    tpu.vector_store %arg7[%c40_61, %c0_62], %182 {strides = array<i32>} : memref<216x512xf32, #tpu.memory_space<vmem>>, vector<8x512xf32>,
    %184 = vector.extract_strided_slice %156 {offsets = [0, 71], sizes = [8, 512], strides = [1, 1]} : vector<8x768xf32> to vector<8x512xf32>
    %185 = vector.extract_strided_slice %0 {offsets = [6, 0], sizes = [1, 512], strides = [1, 1]} : vector<9x512xf32> to vector<1x512xf32>
    %186 = vector.broadcast %185 : vector<1x512xf32> to vector<8x512xf32>
    %187 = arith.mulf %184, %186 : vector<8x512xf32>
    %c48_63 = arith.constant 48 : index
    %c0_64 = arith.constant 0 : index
    %188 = vector.load %arg7[%c48_63, %c0_64] : memref<216x512xf32, #tpu.memory_space<vmem>>, vector<8x512xf32>
    tpu.vector_store %arg7[%c48_63, %c0_64], %187 {strides = array<i32>} : memref<216x512xf32, #tpu.memory_space<vmem>>, vector<8x512xf32>,
    %189 = vector.extract_strided_slice %156 {offsets = [0, 72], sizes = [8, 512], strides = [1, 1]} : vector<8x768xf32> to vector<8x512xf32>
    %190 = vector.extract_strided_slice %0 {offsets = [7, 0], sizes = [1, 512], strides = [1, 1]} : vector<9x512xf32> to vector<1x512xf32>
    %191 = vector.broadcast %190 : vector<1x512xf32> to vector<8x512xf32>
    %192 = arith.mulf %189, %191 : vector<8x512xf32>
    %c56_65 = arith.constant 56 : index
    %c0_66 = arith.constant 0 : index
    %193 = vector.load %arg7[%c56_65, %c0_66] : memref<216x512xf32, #tpu.memory_space<vmem>>, vector<8x512xf32>
    tpu.vector_store %arg7[%c56_65, %c0_66], %192 {strides = array<i32>} : memref<216x512xf32, #tpu.memory_space<vmem>>, vector<8x512xf32>,
    %194 = vector.extract_strided_slice %156 {offsets = [0, 73], sizes = [8, 512], strides = [1, 1]} : vector<8x768xf32> to vector<8x512xf32>
    %195 = vector.extract_strided_slice %0 {offsets = [8, 0], sizes = [1, 512], strides = [1, 1]} : vector<9x512xf32> to vector<1x512xf32>
    %196 = vector.broadcast %195 : vector<1x512xf32> to vector<8x512xf32>
    %197 = arith.mulf %194, %196 : vector<8x512xf32>
    %c64_67 = arith.constant 64 : index
    %c0_68 = arith.constant 0 : index
    %198 = vector.load %arg7[%c64_67, %c0_68] : memref<216x512xf32, #tpu.memory_space<vmem>>, vector<8x512xf32>
    tpu.vector_store %arg7[%c64_67, %c0_68], %197 {strides = array<i32>} : memref<216x512xf32, #tpu.memory_space<vmem>>, vector<8x512xf32>,
    %199 = vector.extract_strided_slice %156 {offsets = [0, 119], sizes = [8, 512], strides = [1, 1]} : vector<8x768xf32> to vector<8x512xf32>
    %200 = vector.extract_strided_slice %0 {offsets = [0, 0], sizes = [1, 512], strides = [1, 1]} : vector<9x512xf32> to vector<1x512xf32>
    %201 = vector.broadcast %200 : vector<1x512xf32> to vector<8x512xf32>
    %202 = arith.mulf %199, %201 : vector<8x512xf32>
    %c72_69 = arith.constant 72 : index
    %c0_70 = arith.constant 0 : index
    %203 = vector.load %arg7[%c72_69, %c0_70] : memref<216x512xf32, #tpu.memory_space<vmem>>, vector<8x512xf32>
    tpu.vector_store %arg7[%c72_69, %c0_70], %202 {strides = array<i32>} : memref<216x512xf32, #tpu.memory_space<vmem>>, vector<8x512xf32>,
    %204 = vector.extract_strided_slice %156 {offsets = [0, 120], sizes = [8, 512], strides = [1, 1]} : vector<8x768xf32> to vector<8x512xf32>
    %205 = vector.extract_strided_slice %0 {offsets = [1, 0], sizes = [1, 512], strides = [1, 1]} : vector<9x512xf32> to vector<1x512xf32>
    %206 = vector.broadcast %205 : vector<1x512xf32> to vector<8x512xf32>
    %207 = arith.mulf %204, %206 : vector<8x512xf32>
    %c80_71 = arith.constant 80 : index
    %c0_72 = arith.constant 0 : index
    %208 = vector.load %arg7[%c80_71, %c0_72] : memref<216x512xf32, #tpu.memory_space<vmem>>, vector<8x512xf32>
    tpu.vector_store %arg7[%c80_71, %c0_72], %207 {strides = array<i32>} : memref<216x512xf32, #tpu.memory_space<vmem>>, vector<8x512xf32>,
    %209 = vector.extract_strided_slice %156 {offsets = [0, 121], sizes = [8, 512], strides = [1, 1]} : vector<8x768xf32> to vector<8x512xf32>
    %210 = vector.extract_strided_slice %0 {offsets = [2, 0], sizes = [1, 512], strides = [1, 1]} : vector<9x512xf32> to vector<1x512xf32>
    %211 = vector.broadcast %210 : vector<1x512xf32> to vector<8x512xf32>
    %212 = arith.mulf %209, %211 : vector<8x512xf32>
    %c88_73 = arith.constant 88 : index
    %c0_74 = arith.constant 0 : index
    %213 = vector.load %arg7[%c88_73, %c0_74] : memref<216x512xf32, #tpu.memory_space<vmem>>, vector<8x512xf32>
    tpu.vector_store %arg7[%c88_73, %c0_74], %212 {strides = array<i32>} : memref<216x512xf32, #tpu.memory_space<vmem>>, vector<8x512xf32>,
    %214 = vector.extract_strided_slice %156 {offsets = [0, 127], sizes = [8, 512], strides = [1, 1]} : vector<8x768xf32> to vector<8x512xf32>
    %215 = vector.extract_strided_slice %0 {offsets = [3, 0], sizes = [1, 512], strides = [1, 1]} : vector<9x512xf32> to vector<1x512xf32>
    %216 = vector.broadcast %215 : vector<1x512xf32> to vector<8x512xf32>
    %217 = arith.mulf %214, %216 : vector<8x512xf32>
    %c96_75 = arith.constant 96 : index
    %c0_76 = arith.constant 0 : index
    %218 = vector.load %arg7[%c96_75, %c0_76] : memref<216x512xf32, #tpu.memory_space<vmem>>, vector<8x512xf32>
    tpu.vector_store %arg7[%c96_75, %c0_76], %217 {strides = array<i32>} : memref<216x512xf32, #tpu.memory_space<vmem>>, vector<8x512xf32>,
    %219 = vector.extract_strided_slice %156 {offsets = [0, 128], sizes = [8, 512], strides = [1, 1]} : vector<8x768xf32> to vector<8x512xf32>
    %c104_77 = arith.constant 104 : index
    %c0_78 = arith.constant 0 : index
    %220 = vector.load %arg7[%c104_77, %c0_78] : memref<216x512xf32, #tpu.memory_space<vmem>>, vector<8x512xf32>
    tpu.vector_store %arg7[%c104_77, %c0_78], %219 {strides = array<i32>} : memref<216x512xf32, #tpu.memory_space<vmem>>, vector<8x512xf32>,
    %221 = vector.extract_strided_slice %156 {offsets = [0, 129], sizes = [8, 512], strides = [1, 1]} : vector<8x768xf32> to vector<8x512xf32>
    %222 = vector.extract_strided_slice %0 {offsets = [5, 0], sizes = [1, 512], strides = [1, 1]} : vector<9x512xf32> to vector<1x512xf32>
    %223 = vector.broadcast %222 : vector<1x512xf32> to vector<8x512xf32>
    %224 = arith.mulf %221, %223 : vector<8x512xf32>
    %c112_79 = arith.constant 112 : index
    %c0_80 = arith.constant 0 : index
    %225 = vector.load %arg7[%c112_79, %c0_80] : memref<216x512xf32, #tpu.memory_space<vmem>>, vector<8x512xf32>
    tpu.vector_store %arg7[%c112_79, %c0_80], %224 {strides = array<i32>} : memref<216x512xf32, #tpu.memory_space<vmem>>, vector<8x512xf32>,
    %226 = vector.extract_strided_slice %156 {offsets = [0, 135], sizes = [8, 512], strides = [1, 1]} : vector<8x768xf32> to vector<8x512xf32>
    %227 = vector.extract_strided_slice %0 {offsets = [6, 0], sizes = [1, 512], strides = [1, 1]} : vector<9x512xf32> to vector<1x512xf32>
    %228 = vector.broadcast %227 : vector<1x512xf32> to vector<8x512xf32>
    %229 = arith.mulf %226, %228 : vector<8x512xf32>
    %c120_81 = arith.constant 120 : index
    %c0_82 = arith.constant 0 : index
    %230 = vector.load %arg7[%c120_81, %c0_82] : memref<216x512xf32, #tpu.memory_space<vmem>>, vector<8x512xf32>
    tpu.vector_store %arg7[%c120_81, %c0_82], %229 {strides = array<i32>} : memref<216x512xf32, #tpu.memory_space<vmem>>, vector<8x512xf32>,
    %231 = vector.extract_strided_slice %156 {offsets = [0, 136], sizes = [8, 512], strides = [1, 1]} : vector<8x768xf32> to vector<8x512xf32>
    %232 = vector.extract_strided_slice %0 {offsets = [7, 0], sizes = [1, 512], strides = [1, 1]} : vector<9x512xf32> to vector<1x512xf32>
    %233 = vector.broadcast %232 : vector<1x512xf32> to vector<8x512xf32>
    %234 = arith.mulf %231, %233 : vector<8x512xf32>
    %c128_83 = arith.constant 128 : index
    %c0_84 = arith.constant 0 : index
    %235 = vector.load %arg7[%c128_83, %c0_84] : memref<216x512xf32, #tpu.memory_space<vmem>>, vector<8x512xf32>
    tpu.vector_store %arg7[%c128_83, %c0_84], %234 {strides = array<i32>} : memref<216x512xf32, #tpu.memory_space<vmem>>, vector<8x512xf32>,
    %236 = vector.extract_strided_slice %156 {offsets = [0, 137], sizes = [8, 512], strides = [1, 1]} : vector<8x768xf32> to vector<8x512xf32>
    %237 = vector.extract_strided_slice %0 {offsets = [8, 0], sizes = [1, 512], strides = [1, 1]} : vector<9x512xf32> to vector<1x512xf32>
    %238 = vector.broadcast %237 : vector<1x512xf32> to vector<8x512xf32>
    %239 = arith.mulf %236, %238 : vector<8x512xf32>
    %c136_85 = arith.constant 136 : index
    %c0_86 = arith.constant 0 : index
    %240 = vector.load %arg7[%c136_85, %c0_86] : memref<216x512xf32, #tpu.memory_space<vmem>>, vector<8x512xf32>
    tpu.vector_store %arg7[%c136_85, %c0_86], %239 {strides = array<i32>} : memref<216x512xf32, #tpu.memory_space<vmem>>, vector<8x512xf32>,
    %241 = vector.extract_strided_slice %156 {offsets = [0, 183], sizes = [8, 512], strides = [1, 1]} : vector<8x768xf32> to vector<8x512xf32>
    %242 = vector.extract_strided_slice %0 {offsets = [0, 0], sizes = [1, 512], strides = [1, 1]} : vector<9x512xf32> to vector<1x512xf32>
    %243 = vector.broadcast %242 : vector<1x512xf32> to vector<8x512xf32>
    %244 = arith.mulf %241, %243 : vector<8x512xf32>
    %c144_87 = arith.constant 144 : index
    %c0_88 = arith.constant 0 : index
    %245 = vector.load %arg7[%c144_87, %c0_88] : memref<216x512xf32, #tpu.memory_space<vmem>>, vector<8x512xf32>
    tpu.vector_store %arg7[%c144_87, %c0_88], %244 {strides = array<i32>} : memref<216x512xf32, #tpu.memory_space<vmem>>, vector<8x512xf32>,
    %246 = vector.extract_strided_slice %156 {offsets = [0, 184], sizes = [8, 512], strides = [1, 1]} : vector<8x768xf32> to vector<8x512xf32>
    %247 = vector.extract_strided_slice %0 {offsets = [1, 0], sizes = [1, 512], strides = [1, 1]} : vector<9x512xf32> to vector<1x512xf32>
    %248 = vector.broadcast %247 : vector<1x512xf32> to vector<8x512xf32>
    %249 = arith.mulf %246, %248 : vector<8x512xf32>
    %c152_89 = arith.constant 152 : index
    %c0_90 = arith.constant 0 : index
    %250 = vector.load %arg7[%c152_89, %c0_90] : memref<216x512xf32, #tpu.memory_space<vmem>>, vector<8x512xf32>
    tpu.vector_store %arg7[%c152_89, %c0_90], %249 {strides = array<i32>} : memref<216x512xf32, #tpu.memory_space<vmem>>, vector<8x512xf32>,
    %251 = vector.extract_strided_slice %156 {offsets = [0, 185], sizes = [8, 512], strides = [1, 1]} : vector<8x768xf32> to vector<8x512xf32>
    %252 = vector.extract_strided_slice %0 {offsets = [2, 0], sizes = [1, 512], strides = [1, 1]} : vector<9x512xf32> to vector<1x512xf32>
    %253 = vector.broadcast %252 : vector<1x512xf32> to vector<8x512xf32>
    %254 = arith.mulf %251, %253 : vector<8x512xf32>
    %c160_91 = arith.constant 160 : index
    %c0_92 = arith.constant 0 : index
    %255 = vector.load %arg7[%c160_91, %c0_92] : memref<216x512xf32, #tpu.memory_space<vmem>>, vector<8x512xf32>
    tpu.vector_store %arg7[%c160_91, %c0_92], %254 {strides = array<i32>} : memref<216x512xf32, #tpu.memory_space<vmem>>, vector<8x512xf32>,
    %256 = vector.extract_strided_slice %156 {offsets = [0, 191], sizes = [8, 512], strides = [1, 1]} : vector<8x768xf32> to vector<8x512xf32>
    %257 = vector.extract_strided_slice %0 {offsets = [3, 0], sizes = [1, 512], strides = [1, 1]} : vector<9x512xf32> to vector<1x512xf32>
    %258 = vector.broadcast %257 : vector<1x512xf32> to vector<8x512xf32>
    %259 = arith.mulf %256, %258 : vector<8x512xf32>
    %c168_93 = arith.constant 168 : index
    %c0_94 = arith.constant 0 : index
    %260 = vector.load %arg7[%c168_93, %c0_94] : memref<216x512xf32, #tpu.memory_space<vmem>>, vector<8x512xf32>
    tpu.vector_store %arg7[%c168_93, %c0_94], %259 {strides = array<i32>} : memref<216x512xf32, #tpu.memory_space<vmem>>, vector<8x512xf32>,
    %261 = vector.extract_strided_slice %156 {offsets = [0, 192], sizes = [8, 512], strides = [1, 1]} : vector<8x768xf32> to vector<8x512xf32>
    %c176_95 = arith.constant 176 : index
    %c0_96 = arith.constant 0 : index
    %262 = vector.load %arg7[%c176_95, %c0_96] : memref<216x512xf32, #tpu.memory_space<vmem>>, vector<8x512xf32>
    tpu.vector_store %arg7[%c176_95, %c0_96], %261 {strides = array<i32>} : memref<216x512xf32, #tpu.memory_space<vmem>>, vector<8x512xf32>,
    %263 = vector.extract_strided_slice %156 {offsets = [0, 193], sizes = [8, 512], strides = [1, 1]} : vector<8x768xf32> to vector<8x512xf32>
    %264 = vector.extract_strided_slice %0 {offsets = [5, 0], sizes = [1, 512], strides = [1, 1]} : vector<9x512xf32> to vector<1x512xf32>
    %265 = vector.broadcast %264 : vector<1x512xf32> to vector<8x512xf32>
    %266 = arith.mulf %263, %265 : vector<8x512xf32>
    %c184_97 = arith.constant 184 : index
    %c0_98 = arith.constant 0 : index
    %267 = vector.load %arg7[%c184_97, %c0_98] : memref<216x512xf32, #tpu.memory_space<vmem>>, vector<8x512xf32>
    tpu.vector_store %arg7[%c184_97, %c0_98], %266 {strides = array<i32>} : memref<216x512xf32, #tpu.memory_space<vmem>>, vector<8x512xf32>,
    %268 = vector.extract_strided_slice %156 {offsets = [0, 199], sizes = [8, 512], strides = [1, 1]} : vector<8x768xf32> to vector<8x512xf32>
    %269 = vector.extract_strided_slice %0 {offsets = [6, 0], sizes = [1, 512], strides = [1, 1]} : vector<9x512xf32> to vector<1x512xf32>
    %270 = vector.broadcast %269 : vector<1x512xf32> to vector<8x512xf32>
    %271 = arith.mulf %268, %270 : vector<8x512xf32>
    %c192_99 = arith.constant 192 : index
    %c0_100 = arith.constant 0 : index
    %272 = vector.load %arg7[%c192_99, %c0_100] : memref<216x512xf32, #tpu.memory_space<vmem>>, vector<8x512xf32>
    tpu.vector_store %arg7[%c192_99, %c0_100], %271 {strides = array<i32>} : memref<216x512xf32, #tpu.memory_space<vmem>>, vector<8x512xf32>,
    %273 = vector.extract_strided_slice %156 {offsets = [0, 200], sizes = [8, 512], strides = [1, 1]} : vector<8x768xf32> to vector<8x512xf32>
    %274 = vector.extract_strided_slice %0 {offsets = [7, 0], sizes = [1, 512], strides = [1, 1]} : vector<9x512xf32> to vector<1x512xf32>
    %275 = vector.broadcast %274 : vector<1x512xf32> to vector<8x512xf32>
    %276 = arith.mulf %273, %275 : vector<8x512xf32>
    %c200_101 = arith.constant 200 : index
    %c0_102 = arith.constant 0 : index
    %277 = vector.load %arg7[%c200_101, %c0_102] : memref<216x512xf32, #tpu.memory_space<vmem>>, vector<8x512xf32>
    tpu.vector_store %arg7[%c200_101, %c0_102], %276 {strides = array<i32>} : memref<216x512xf32, #tpu.memory_space<vmem>>, vector<8x512xf32>,
    %278 = vector.extract_strided_slice %156 {offsets = [0, 201], sizes = [8, 512], strides = [1, 1]} : vector<8x768xf32> to vector<8x512xf32>
    %279 = vector.extract_strided_slice %0 {offsets = [8, 0], sizes = [1, 512], strides = [1, 1]} : vector<9x512xf32> to vector<1x512xf32>
    %280 = vector.broadcast %279 : vector<1x512xf32> to vector<8x512xf32>
    %281 = arith.mulf %278, %280 : vector<8x512xf32>
    %c208_103 = arith.constant 208 : index
    %c0_104 = arith.constant 0 : index
    %282 = vector.load %arg7[%c208_103, %c0_104] : memref<216x512xf32, #tpu.memory_space<vmem>>, vector<8x512xf32>
    tpu.vector_store %arg7[%c208_103, %c0_104], %281 {strides = array<i32>} : memref<216x512xf32, #tpu.memory_space<vmem>>, vector<8x512xf32>,
    %c0_105 = arith.constant 0 : index
    %c0_106 = arith.constant 0 : index
    %283 = vector.load %arg4[%c0_105, %c0_106] : memref<8x216xf32, #tpu.memory_space<vmem>>, vector<8x216xf32>
    %c0_107 = arith.constant 0 : index
    %c0_108 = arith.constant 0 : index
    %284 = vector.load %arg7[%c0_107, %c0_108] : memref<216x512xf32, #tpu.memory_space<vmem>>, vector<216x512xf32>
    %cst_109 = arith.constant dense<0.000000e+00> : vector<8x512xf32>
    %285 = tpu.matmul %283, %284, %cst_109 {dimension_numbers = #tpu.dot_dimension_numbers<[1], [0], [0], [1], [0, 0, 1, 1], [], []>} : vector<8x216xf32>, vector<216x512xf32>, vector<8x512xf32> -> vector<8x512xf32>
    %cst_110 = arith.constant dense<0.000000e+00> : vector<8xf32>
    %286 = vector.multi_reduction <add>, %285, %cst_110 [1] : vector<8x512xf32> to vector<8xf32>
    %287 = vector.shape_cast %286 : vector<8xf32> to vector<8x1xf32>
    %cst_111 = arith.constant 5.120000e+02 : f32
    %288 = vector.broadcast %cst_111 : f32 to vector<8x1xf32>
    %289 = arith.divf %287, %288 : vector<8x1xf32>
    %290 = vector.broadcast %289 : vector<8x1xf32> to vector<8x512xf32>
    %291 = arith.subf %285, %290 : vector<8x512xf32>
    %292 = arith.mulf %291, %291 : vector<8x512xf32>
    %cst_112 = arith.constant dense<0.000000e+00> : vector<8xf32>
    %293 = vector.multi_reduction <add>, %292, %cst_112 [1] : vector<8x512xf32> to vector<8xf32>
    %294 = vector.shape_cast %293 : vector<8xf32> to vector<8x1xf32>
    %cst_113 = arith.constant 5.120000e+02 : f32
    %295 = vector.broadcast %cst_113 : f32 to vector<8x1xf32>
    %296 = arith.divf %294, %295 : vector<8x1xf32>
    %cst_114 = arith.constant 9.99999974E-6 : f32
    %297 = vector.broadcast %cst_114 : f32 to vector<8x1xf32>
    %298 = arith.addf %296, %297 : vector<8x1xf32>
    %299 = math.rsqrt %298 : vector<8x1xf32>
    %300 = vector.broadcast %299 : vector<8x1xf32> to vector<8x512xf32>
    %301 = arith.mulf %291, %300 : vector<8x512xf32>
    %cst_115 = arith.constant 0.00999999977 : f32
    %302 = vector.broadcast %cst_115 : f32 to vector<8x512xf32>
    %303 = arith.mulf %302, %301 : vector<8x512xf32>
    %304 = arith.maximumf %301, %303 : vector<8x512xf32>
    %305 = vector.extract_strided_slice %304 {offsets = [0, 0], sizes = [4, 512], strides = [1, 1]} : vector<8x512xf32> to vector<4x512xf32>
    %c0_116 = arith.constant 0 : index
    %c0_117 = arith.constant 0 : index
    %c0_118 = arith.constant 0 : index
    %306 = vector.load %arg5[%c0_116, %c0_117, %c0_118] : memref<1x4x512xf32, #tpu.memory_space<vmem>>, vector<1x4x512xf32>
    %307 = vector.shape_cast %306 : vector<1x4x512xf32> to vector<4x512xf32>
    %308 = vector.shape_cast %305 : vector<4x512xf32> to vector<1x4x512xf32>
    tpu.vector_store %arg5[%c0_116, %c0_117, %c0_118], %308 {strides = array<i32>} : memref<1x4x512xf32, #tpu.memory_space<vmem>>, vector<1x4x512xf32>,
    return
  }
  func.func @transform_0(%arg0: i32) -> (i32, i32, i32) {
    %c0_i32 = arith.constant 0 : i32
    %c0_i32_0 = arith.constant 0 : i32
    %c0_i32_1 = arith.constant 0 : i32
    return %arg0, %c0_i32, %c0_i32_0 : i32, i32, i32
  }
  func.func @transform_1(%arg0: i32) -> (i32, i32) {
    %c0_i32 = arith.constant 0 : i32
    %c0_i32_0 = arith.constant 0 : i32
    %c0_i32_1 = arith.constant 0 : i32
    return %c0_i32, %c0_i32_0 : i32, i32
  }
  func.func @transform_2(%arg0: i32) -> (i32, i32) {
    %c0_i32 = arith.constant 0 : i32
    %c0_i32_0 = arith.constant 0 : i32
    %c0_i32_1 = arith.constant 0 : i32
    return %c0_i32, %c0_i32_0 : i32, i32
  }
  func.func @transform_3(%arg0: i32) -> (i32, i32) {
    %c0_i32 = arith.constant 0 : i32
    %c0_i32_0 = arith.constant 0 : i32
    %c0_i32_1 = arith.constant 0 : i32
    return %c0_i32, %c0_i32_0 : i32, i32
  }
  func.func @transform_4(%arg0: i32) -> (i32, i32, i32) {
    %c0_i32 = arith.constant 0 : i32
    %c0_i32_0 = arith.constant 0 : i32
    %c0_i32_1 = arith.constant 0 : i32
    return %arg0, %c0_i32, %c0_i32_0 : i32, i32, i32
  }
}

</mosaic_0001>

<llo_original>
// kernel: normal_block.1
$region0: #{normal_block.1}
  #allocation0 [shape = 'u32[]', space=smem, size = 0x4, offset = 0x4, fixed_abs, tag = 'smem constant byte address 0x4 - core index']
  #allocation1 [shape = 'u32[144,128]{1,0:T(1,128)}', space=vmem, size = 0x12000, scoped, tag = 'internal scratch']
  #allocation2 [shape = 'f32[8,768]{1,0:T(8,128)}', space=vmem, size = 0x6000, scoped, tag = 'scratch operand']
  #allocation3 [shape = 'f32[216,512]{1,0:T(8,128)}', space=vmem, size = 0x6c000, scoped, tag = 'scratch operand']
  %s0 = inlined_call_operand.vmem [shape: f32[2,8,768], index: 0, kind: input, shape index: {}]
  %s1 = inlined_call_operand.vmem [shape: f32[9,512], index: 1, kind: input, shape index: {}]
  %s2 = inlined_call_operand.vmem [shape: f32[8,216], index: 2, kind: input, shape index: {}]
  %s3 = inlined_call_operand.vmem [shape: f32[8,216], index: 3, kind: input, shape index: {}]
  %s4 = inlined_call_operand.vmem [shape: f32[2,4,512], index: 4, kind: output, shape index: {}]
  %s5 = sld [smem:[#allocation0]]
  $region49: #{normal_block.1} parent=0
    _
  %s7 = ssub.s32 1, %s5
  %s8 = scalar_select 0, %s7, %s5
  loop: start=0, step=1, limit=4
  $region2: #{normal_block.1} parent=0 // loop_pre_header
    _
  $region3: #{normal_block.1} parent=0 // loop_header
    %s10 = sphi 0, %s14
    %p11 = scmp.ge.s32.totalorder %s10, 4
    %s20 = sphi 0, %s22
    %s23 = sphi 0, %s20
    %s24 = sphi 0, %s23
    %s40 = sphi 0, %s24
    %s44 = sphi 0, %s44
    %s46 = sphi 0, %s44
    %s47 = sphi 0, %s46
    %s61 = sphi 0, %s47
    %s65 = sphi 0, %s65
    %s67 = sphi 0, %s65
    %s68 = sphi 0, %s67
    %s82 = sphi 0, %s68
    %s86 = sphi 0, %s86
    %s88 = sphi 0, %s86
    %s89 = sphi 0, %s88
    %s103 = sphi 0, %s89
    %s109 = sphi 0, %s111
    %s112 = sphi 0, %s109
    %s113 = sphi 0, %s112
    %s129 = sphi 0, %s113
  $region4: #{normal_block.1} parent=0 // loop_header_branch
    %13 = sbr.rel (%p11) target = $region8
  $region5: #{normal_block.1} parent=0 // loop_body
    %s15 = ssub.s32 %s10, 1
    %s16 = ssub.s32 %s10, 2
    %s17 = sadd.s32 %s10, 1
    %s18 = ssub.s32 %s10, %s17
    %p19 = scmp.eq.s32.totalorder %s18, 0
    %s21 = sadd.s32 %s20, 1
    %s22 = scalar_select %p19, %s20, %s21
    %p25 = pneg %p19
    %p26 = scmp.eq.s32.totalorder %s10, 1
    %p27 = por %p25, %p26
    %p28 = scmp.ne.s32.totalorder %s20, %s23
    %p29 = scmp.eq.s32.totalorder %s10, 0
    %p30 = por %p28, %p29
    %p31 = scmp.ne.s32.totalorder %s20, %s23
    %p32 = scmp.eq.s32.totalorder %s15, 1
    %p33 = por %p31, %p32
    %p34 = scmp.ne.s32.totalorder %s23, %s24
    %p35 = scmp.eq.s32.totalorder %s15, 0
    %p36 = por %p34, %p35
    %p37 = scmp.ne.s32.totalorder %s23, %s24
    %p38 = scmp.eq.s32.totalorder %s16, 1
    %p39 = por %p37, %p38
    %p41 = scmp.ne.s32.totalorder %s24, %s40
    %p42 = scmp.eq.s32.totalorder %s16, 0
    %p43 = por %p41, %p42
    %s45 = sadd.s32 %s44, 1
    %p48 = scmp.eq.s32.totalorder %s10, 1
    %p49 = scmp.ne.s32.totalorder %s44, %s46
    %p50 = scmp.eq.s32.totalorder %s10, 0
    %p51 = por %p49, %p50
    %p52 = scmp.ne.s32.totalorder %s44, %s46
    %p53 = scmp.eq.s32.totalorder %s15, 1
    %p54 = por %p52, %p53
    %p55 = scmp.ne.s32.totalorder %s46, %s47
    %p56 = scmp.eq.s32.totalorder %s15, 0
    %p57 = por %p55, %p56
    %p58 = scmp.ne.s32.totalorder %s46, %s47
    %p59 = scmp.eq.s32.totalorder %s16, 1
    %p60 = por %p58, %p59
    %p62 = scmp.ne.s32.totalorder %s47, %s61
    %p63 = scmp.eq.s32.totalorder %s16, 0
    %p64 = por %p62, %p63
    %s66 = sadd.s32 %s65, 1
    %p69 = scmp.eq.s32.totalorder %s10, 1
    %p70 = scmp.ne.s32.totalorder %s65, %s67
    %p71 = scmp.eq.s32.totalorder %s10, 0
    %p72 = por %p70, %p71
    %p73 = scmp.ne.s32.totalorder %s65, %s67
    %p74 = scmp.eq.s32.totalorder %s15, 1
    %p75 = por %p73, %p74
    %p76 = scmp.ne.s32.totalorder %s67, %s68
    %p77 = scmp.eq.s32.totalorder %s15, 0
    %p78 = por %p76, %p77
    %p79 = scmp.ne.s32.totalorder %s67, %s68
    %p80 = scmp.eq.s32.totalorder %s16, 1
    %p81 = por %p79, %p80
    %p83 = scmp.ne.s32.totalorder %s68, %s82
    %p84 = scmp.eq.s32.totalorder %s16, 0
    %p85 = por %p83, %p84
    %s87 = sadd.s32 %s86, 1
    %p90 = scmp.eq.s32.totalorder %s10, 1
    %p91 = scmp.ne.s32.totalorder %s86, %s88
    %p92 = scmp.eq.s32.totalorder %s10, 0
    %p93 = por %p91, %p92
    %p94 = scmp.ne.s32.totalorder %s86, %s88
    %p95 = scmp.eq.s32.totalorder %s15, 1
    %p96 = por %p94, %p95
    %p97 = scmp.ne.s32.totalorder %s88, %s89
    %p98 = scmp.eq.s32.totalorder %s15, 0
    %p99 = por %p97, %p98
    %p100 = scmp.ne.s32.totalorder %s88, %s89
    %p101 = scmp.eq.s32.totalorder %s16, 1
    %p102 = por %p100, %p101
    %p104 = scmp.ne.s32.totalorder %s89, %s103
    %p105 = scmp.eq.s32.totalorder %s16, 0
    %p106 = por %p104, %p105
    %s107 = ssub.s32 %s10, %s17
    %p108 = scmp.eq.s32.totalorder %s107, 0
    %s110 = sadd.s32 %s109, 1
    %s111 = scalar_select %p108, %s109, %s110
    %p114 = pneg %p108
    %p115 = scmp.eq.s32.totalorder %s10, 1
    %p116 = por %p114, %p115
    %p117 = scmp.ne.s32.totalorder %s109, %s112
    %p118 = scmp.eq.s32.totalorder %s10, 0
    %p119 = por %p117, %p118
    %p120 = scmp.ne.s32.totalorder %s109, %s112
    %p121 = scmp.eq.s32.totalorder %s15, 1
    %p122 = por %p120, %p121
    %p123 = scmp.ne.s32.totalorder %s112, %s113
    %p124 = scmp.eq.s32.totalorder %s15, 0
    %p125 = por %p123, %p124
    %p126 = scmp.ne.s32.totalorder %s112, %s113
    %p127 = scmp.eq.s32.totalorder %s16, 1
    %p128 = por %p126, %p127
    %p130 = scmp.ne.s32.totalorder %s113, %s129
    %p131 = scmp.eq.s32.totalorder %s16, 0
    %p132 = por %p130, %p131
    %p133 = scmp.le.s32.totalorder 1, %s10
    %p134 = scmp.lt.s32.totalorder %s10, 3
    %p135 = pnand %p133, %p134
    %p136 = pneg %p135
    // Predicated region
    $region9: #{normal_block.1} parent=5 // pred_check
      _
    $region10: #{normal_block.1} parent=5 // pred_check_branch
      %138 = sbr.rel (%p135) target = $region12
    $region11: #{normal_block.1} parent=5 // pred_region
      %s139 = ssub.s32 %s10, 1
      // Predicated region
      $region13: #{normal_block.1} parent=11 // pred_check
        %p140 = pneg %p57
      $region14: #{normal_block.1} parent=11 // pred_check_branch
        %142 = sbr.rel (%p140) target = $region16
      $region15: #{normal_block.1} parent=11 // pred_region
        _
      $region16: #{normal_block.1} parent=11 // pred_fallthru
        _
      // Predicated region
      $region17: #{normal_block.1} parent=11 // pred_check
        %p143 = pneg %p78
      $region18: #{normal_block.1} parent=11 // pred_check_branch
        %145 = sbr.rel (%p143) target = $region20
      $region19: #{normal_block.1} parent=11 // pred_region
        _
      $region20: #{normal_block.1} parent=11 // pred_fallthru
        _
      // Predicated region
      $region21: #{normal_block.1} parent=11 // pred_check
        %p146 = pneg %p99
      $region22: #{normal_block.1} parent=11 // pred_check_branch
        %148 = sbr.rel (%p146) target = $region24
      $region23: #{normal_block.1} parent=11 // pred_region
        _
      $region24: #{normal_block.1} parent=11 // pred_fallthru
        _
    $region12: #{normal_block.1} parent=5 // pred_fallthru
      _
    %p149 = scmp.lt.s32.totalorder %s10, 2
    // Predicated region
    $region25: #{normal_block.1} parent=5 // pred_check
      %p150 = pneg %p149
    $region26: #{normal_block.1} parent=5 // pred_check_branch
      %152 = sbr.rel (%p150) target = $region28
    $region27: #{normal_block.1} parent=5 // pred_region
      // Predicated region
      $region29: #{normal_block.1} parent=27 // pred_check
        %p153 = pneg %p30
      $region30: #{normal_block.1} parent=27 // pred_check_branch
        %155 = sbr.rel (%p153) target = $region32
      $region31: #{normal_block.1} parent=27 // pred_region
        %p156 = scmp.lt.s32.totalorder %s10, 1
        %s157 = scalar_select %p156, %s10, 1
        %s158 = smul.addr %s157, 6
        %s159 = smul.addr %s158, 8
        %s160 = scalar_lea.vmem %s0, %s159
      $region32: #{normal_block.1} parent=27 // pred_fallthru
        _
    $region28: #{normal_block.1} parent=5 // pred_fallthru
      _
    %p161 = scmp.le.s32.totalorder 1, %s10
    %p162 = scmp.lt.s32.totalorder %s10, 3
    %p163 = pnand %p161, %p162
    %p164 = pneg %p163
    // Predicated region
    $region33: #{normal_block.1} parent=5 // pred_check
      _
    $region34: #{normal_block.1} parent=5 // pred_check_branch
      %166 = sbr.rel (%p163) target = $region36
    $region35: #{normal_block.1} parent=5 // pred_region
      %s167 = ssub.s32 %s10, 1
      %p168 = scmp.lt.s32.totalorder %s15, 1
      %s169 = scalar_select %p168, %s15, 1
      %s170 = smul.addr %s169, 6
      %s171 = smul.addr %s170, 8
      %s172 = scalar_lea.vmem %s0, %s171
      %p173 = pneg %p36
      %p174 = pneg %p33
      %p175 = pneg %p57
      %p176 = pneg %p54
      %p177 = pneg %p78
      %p178 = pneg %p75
      %p179 = pneg %p99
      %p180 = pneg %p96
      %p181 = pneg %p125
      %p182 = pneg %p122
      %p183 = scmp.lt.s32.totalorder %s15, 1
      %s184 = scalar_select %p183, %s15, 1
      %s185 = smul.addr %s184, 4
      %s186 = smul.addr %s185, 4
      %s187 = scalar_lea.vmem %s4, %s186
      %p188 = scmp.lt.s32.totalorder %s15, 1
      %s189 = scalar_select %p188, %s15, 1
      %s190 = smul.addr %s189, 6
      %s191 = smul.addr %s190, 8
      %s192 = scalar_lea.vmem %s0, %s191
      %p193 = scmp.lt.s32.totalorder %s15, 1
      %s194 = scalar_select %p193, %s15, 1
      %s195 = smul.addr %s194, 4
      %s196 = smul.addr %s195, 4
      %s197 = scalar_lea.vmem %s4, %s196
      %v198 = vld [vmem:[%s1] sm:$0xff]
      %v199 = vld [vmem:[%s1 + $0x8] sm:$0xff]
      %v200 = vld [vmem:[%s1 + $0x10] sm:$0xff]
      %v201 = vld [vmem:[%s1 + $0x18] sm:$0xff]
      %v202 = vld [vmem:[%s1 + $0x20] sm:$0x1]
      %v203 = vld [vmem:[%s1 + $0x28] sm:$0x1]
      %v204 = vld [vmem:[%s1 + $0x30] sm:$0x1]
      %v205 = vld [vmem:[%s1 + $0x38] sm:$0x1]
      %v206 = vld [vmem:[%s192] sm:$0xff]
      %v207 = vld [vmem:[%s192 + $0x8] sm:$0xff]
      %v208 = vld [vmem:[%s192 + $0x10] sm:$0xff]
      %v209 = vld [vmem:[%s192 + $0x18] sm:$0xff]
      %v210 = vld [vmem:[%s192 + $0x20] sm:$0xff]
      %v211 = vld [vmem:[%s192 + $0x28] sm:$0xff]
      %v212 = vlaneseq
      %v213 = vshrl.u32 %v212, 7
      %v214 = vsub.s32 0, %v213
      %v215 = vrot.slane %v198, %v214
      %v216 = vlaneseq
      %v217 = vshrl.u32 %v216, 7
      %v218 = vsub.s32 0, %v217
      %v219 = vrot.slane %v199, %v218
      %v220 = vlaneseq
      %v221 = vshrl.u32 %v220, 7
      %v222 = vsub.s32 0, %v221
      %v223 = vrot.slane %v200, %v222
      %v224 = vlaneseq
      %v225 = vshrl.u32 %v224, 7
      %v226 = vsub.s32 0, %v225
      %v227 = vrot.slane %v201, %v226
      %232 = vrot.lane.b32.xlu0 %v215, 55
      %v233 = vpop.permute.xlu0 %232
      %234 = vrot.lane.b32.xlu0 %v219, 55
      %v235 = vpop.permute.xlu0 %234
      %236 = vrot.lane.b32.xlu0 %v223, 55
      %v237 = vpop.permute.xlu0 %236
      %238 = vrot.lane.b32.xlu0 %v227, 55
      %v239 = vpop.permute.xlu0 %238
      %vm240 = vcmask 449536
      %v241 = vsel %vm240, %v233, %v235
      %v242 = vsel %vm240, %v235, %v237
      %v243 = vsel %vm240, %v237, %v239
      %v249 = vmul.f32 %v206, %v233
      %v250 = vmul.f32 %v207, %v241
      %v251 = vmul.f32 %v208, %v242
      %v252 = vmul.f32 %v209, %v243
      %v253 = vmul.f32 %v210, %v239
      %259 = vrot.lane.b32.xlu0 %v249, 73
      %v260 = vpop.permute.xlu0 %259
      %261 = vrot.lane.b32.xlu0 %v250, 73
      %v262 = vpop.permute.xlu0 %261
      %263 = vrot.lane.b32.xlu0 %v251, 73
      %v264 = vpop.permute.xlu0 %263
      %265 = vrot.lane.b32.xlu0 %v252, 73
      %v266 = vpop.permute.xlu0 %265
      %267 = vrot.lane.b32.xlu0 %v253, 73
      %v268 = vpop.permute.xlu0 %267
      %vm269 = vcmask 596992
      %v270 = vsel %vm269, %v260, %v262
      %v271 = vsel %vm269, %v262, %v264
      %v272 = vsel %vm269, %v264, %v266
      %v273 = vsel %vm269, %v266, %v268
      %278 = vst [vmem:[#allocation3] sm:$0xff] %v270
      %279 = vst [vmem:[#allocation3 + $0x8] sm:$0xff] %v271
      %280 = vst [vmem:[#allocation3 + $0x10] sm:$0xff] %v272
      %281 = vst [vmem:[#allocation3 + $0x18] sm:$0xff] %v273
      %v282 = vlaneseq
      %v283 = vshrl.u32 %v282, 7
      %v284 = vsub.s32 1, %v283
      %v285 = vrot.slane %v198, %v284
      %v286 = vlaneseq
      %v287 = vshrl.u32 %v286, 7
      %v288 = vsub.s32 1, %v287
      %v289 = vrot.slane %v199, %v288
      %v290 = vlaneseq
      %v291 = vshrl.u32 %v290, 7
      %v292 = vsub.s32 1, %v291
      %v293 = vrot.slane %v200, %v292
      %v294 = vlaneseq
      %v295 = vshrl.u32 %v294, 7
      %v296 = vsub.s32 1, %v295
      %v297 = vrot.slane %v201, %v296
      %302 = vrot.lane.b32.xlu0 %v285, 56
      %v303 = vpop.permute.xlu0 %302
      %304 = vrot.lane.b32.xlu0 %v289, 56
      %v305 = vpop.permute.xlu0 %304
      %306 = vrot.lane.b32.xlu0 %v293, 56
      %v307 = vpop.permute.xlu0 %306
      %308 = vrot.lane.b32.xlu0 %v297, 56
      %v309 = vpop.permute.xlu0 %308
      %vm310 = vcmask 457728
      %v311 = vsel %vm310, %v303, %v305
      %v312 = vsel %vm310, %v305, %v307
      %v313 = vsel %vm310, %v307, %v309
      %v319 = vmul.f32 %v206, %v303
      %v320 = vmul.f32 %v207, %v311
      %v321 = vmul.f32 %v208, %v312
      %v322 = vmul.f32 %v209, %v313
      %v323 = vmul.f32 %v210, %v309
      %329 = vrot.lane.b32.xlu0 %v319, 72
      %v330 = vpop.permute.xlu0 %329
      %331 = vrot.lane.b32.xlu0 %v320, 72
      %v332 = vpop.permute.xlu0 %331
      %333 = vrot.lane.b32.xlu0 %v321, 72
      %v334 = vpop.permute.xlu0 %333
      %335 = vrot.lane.b32.xlu0 %v322, 72
      %v336 = vpop.permute.xlu0 %335
      %337 = vrot.lane.b32.xlu0 %v323, 72
      %v338 = vpop.permute.xlu0 %337
      %vm339 = vcmask 588800
      %v340 = vsel %vm339, %v330, %v332
      %v341 = vsel %vm339, %v332, %v334
      %v342 = vsel %vm339, %v334, %v336
      %v343 = vsel %vm339, %v336, %v338
      %348 = vst [vmem:[#allocation3 + $0x20] sm:$0xff] %v340
      %349 = vst [vmem:[#allocation3 + $0x28] sm:$0xff] %v341
      %350 = vst [vmem:[#allocation3 + $0x30] sm:$0xff] %v342
      %351 = vst [vmem:[#allocation3 + $0x38] sm:$0xff] %v343
      %v352 = vlaneseq
      %v353 = vshrl.u32 %v352, 7
      %v354 = vsub.s32 2, %v353
      %v355 = vrot.slane %v198, %v354
      %v356 = vlaneseq
      %v357 = vshrl.u32 %v356, 7
      %v358 = vsub.s32 2, %v357
      %v359 = vrot.slane %v199, %v358
      %v360 = vlaneseq
      %v361 = vshrl.u32 %v360, 7
      %v362 = vsub.s32 2, %v361
      %v363 = vrot.slane %v200, %v362
      %v364 = vlaneseq
      %v365 = vshrl.u32 %v364, 7
      %v366 = vsub.s32 2, %v365
      %v367 = vrot.slane %v201, %v366
      %372 = vrot.lane.b32.xlu0 %v355, 57
      %v373 = vpop.permute.xlu0 %372
      %374 = vrot.lane.b32.xlu0 %v359, 57
      %v375 = vpop.permute.xlu0 %374
      %376 = vrot.lane.b32.xlu0 %v363, 57
      %v377 = vpop.permute.xlu0 %376
      %378 = vrot.lane.b32.xlu0 %v367, 57
      %v379 = vpop.permute.xlu0 %378
      %vm380 = vcmask 465920
      %v381 = vsel %vm380, %v373, %v375
      %v382 = vsel %vm380, %v375, %v377
      %v383 = vsel %vm380, %v377, %v379
      %v389 = vmul.f32 %v206, %v373
      %v390 = vmul.f32 %v207, %v381
      %v391 = vmul.f32 %v208, %v382
      %v392 = vmul.f32 %v209, %v383
      %v393 = vmul.f32 %v210, %v379
      %399 = vrot.lane.b32.xlu0 %v389, 71
      %v400 = vpop.permute.xlu0 %399
      %401 = vrot.lane.b32.xlu0 %v390, 71
      %v402 = vpop.permute.xlu0 %401
      %403 = vrot.lane.b32.xlu0 %v391, 71
      %v404 = vpop.permute.xlu0 %403
      %405 = vrot.lane.b32.xlu0 %v392, 71
      %v406 = vpop.permute.xlu0 %405
      %407 = vrot.lane.b32.xlu0 %v393, 71
      %v408 = vpop.permute.xlu0 %407
      %vm409 = vcmask 580608
      %v410 = vsel %vm409, %v400, %v402
      %v411 = vsel %vm409, %v402, %v404
      %v412 = vsel %vm409, %v404, %v406
      %v413 = vsel %vm409, %v406, %v408
      %418 = vst [vmem:[#allocation3 + $0x40] sm:$0xff] %v410
      %419 = vst [vmem:[#allocation3 + $0x48] sm:$0xff] %v411
      %420 = vst [vmem:[#allocation3 + $0x50] sm:$0xff] %v412
      %421 = vst [vmem:[#allocation3 + $0x58] sm:$0xff] %v413
      %v422 = vlaneseq
      %v423 = vshrl.u32 %v422, 7
      %v424 = vsub.s32 3, %v423
      %v425 = vrot.slane %v198, %v424
      %v426 = vlaneseq
      %v427 = vshrl.u32 %v426, 7
      %v428 = vsub.s32 3, %v427
      %v429 = vrot.slane %v199, %v428
      %v430 = vlaneseq
      %v431 = vshrl.u32 %v430, 7
      %v432 = vsub.s32 3, %v431
      %v433 = vrot.slane %v200, %v432
      %v434 = vlaneseq
      %v435 = vshrl.u32 %v434, 7
      %v436 = vsub.s32 3, %v435
      %v437 = vrot.slane %v201, %v436
      %442 = vrot.lane.b32.xlu0 %v425, 63
      %v443 = vpop.permute.xlu0 %442
      %444 = vrot.lane.b32.xlu0 %v429, 63
      %v445 = vpop.permute.xlu0 %444
      %446 = vrot.lane.b32.xlu0 %v433, 63
      %v447 = vpop.permute.xlu0 %446
      %448 = vrot.lane.b32.xlu0 %v437, 63
      %v449 = vpop.permute.xlu0 %448
      %vm450 = vcmask 515072
      %v451 = vsel %vm450, %v443, %v445
      %v452 = vsel %vm450, %v445, %v447
      %v453 = vsel %vm450, %v447, %v449
      %v459 = vmul.f32 %v206, %v443
      %v460 = vmul.f32 %v207, %v451
      %v461 = vmul.f32 %v208, %v452
      %v462 = vmul.f32 %v209, %v453
      %v463 = vmul.f32 %v210, %v449
      %469 = vrot.lane.b32.xlu0 %v459, 65
      %v470 = vpop.permute.xlu0 %469
      %471 = vrot.lane.b32.xlu0 %v460, 65
      %v472 = vpop.permute.xlu0 %471
      %473 = vrot.lane.b32.xlu0 %v461, 65
      %v474 = vpop.permute.xlu0 %473
      %475 = vrot.lane.b32.xlu0 %v462, 65
      %v476 = vpop.permute.xlu0 %475
      %477 = vrot.lane.b32.xlu0 %v463, 65
      %v478 = vpop.permute.xlu0 %477
      %vm479 = vcmask 531456
      %v480 = vsel %vm479, %v470, %v472
      %v481 = vsel %vm479, %v472, %v474
      %v482 = vsel %vm479, %v474, %v476
      %v483 = vsel %vm479, %v476, %v478
      %488 = vst [vmem:[#allocation3 + $0x60] sm:$0xff] %v480
      %489 = vst [vmem:[#allocation3 + $0x68] sm:$0xff] %v481
      %490 = vst [vmem:[#allocation3 + $0x70] sm:$0xff] %v482
      %491 = vst [vmem:[#allocation3 + $0x78] sm:$0xff] %v483
      %497 = vrot.lane.b32.xlu0 %v206, 64
      %v498 = vpop.permute.xlu0 %497
      %499 = vrot.lane.b32.xlu0 %v207, 64
      %v500 = vpop.permute.xlu0 %499
      %501 = vrot.lane.b32.xlu0 %v208, 64
      %v502 = vpop.permute.xlu0 %501
      %503 = vrot.lane.b32.xlu0 %v209, 64
      %v504 = vpop.permute.xlu0 %503
      %505 = vrot.lane.b32.xlu0 %v210, 64
      %v506 = vpop.permute.xlu0 %505
      %vm507 = vcmask 523264
      %v508 = vsel %vm507, %v498, %v500
      %v509 = vsel %vm507, %v500, %v502
      %v510 = vsel %vm507, %v502, %v504
      %v511 = vsel %vm507, %v504, %v506
      %516 = vst [vmem:[#allocation3 + $0x80] sm:$0xff] %v508
      %517 = vst [vmem:[#allocation3 + $0x88] sm:$0xff] %v509
      %518 = vst [vmem:[#allocation3 + $0x90] sm:$0xff] %v510
      %519 = vst [vmem:[#allocation3 + $0x98] sm:$0xff] %v511
      %v520 = vlaneseq
      %v521 = vshrl.u32 %v520, 7
      %v522 = vsub.s32 5, %v521
      %v523 = vrot.slane %v198, %v522
      %v524 = vlaneseq
      %v525 = vshrl.u32 %v524, 7
      %v526 = vsub.s32 5, %v525
      %v527 = vrot.slane %v199, %v526
      %v528 = vlaneseq
      %v529 = vshrl.u32 %v528, 7
      %v530 = vsub.s32 5, %v529
      %v531 = vrot.slane %v200, %v530
      %v532 = vlaneseq
      %v533 = vshrl.u32 %v532, 7
      %v534 = vsub.s32 5, %v533
      %v535 = vrot.slane %v201, %v534
      %540 = vrot.lane.b32.xlu0 %v523, 65
      %v541 = vpop.permute.xlu0 %540
      %542 = vrot.lane.b32.xlu0 %v527, 65
      %v543 = vpop.permute.xlu0 %542
      %544 = vrot.lane.b32.xlu0 %v531, 65
      %v545 = vpop.permute.xlu0 %544
      %546 = vrot.lane.b32.xlu0 %v535, 65
      %v547 = vpop.permute.xlu0 %546
      %v548 = vsel %vm479, %v541, %v543
      %v549 = vsel %vm479, %v543, %v545
      %v550 = vsel %vm479, %v545, %v547
      %v556 = vmul.f32 %v206, %v541
      %v557 = vmul.f32 %v207, %v548
      %v558 = vmul.f32 %v208, %v549
      %v559 = vmul.f32 %v209, %v550
      %v560 = vmul.f32 %v210, %v547
      %566 = vrot.lane.b32.xlu0 %v556, 63
      %v567 = vpop.permute.xlu0 %566
      %568 = vrot.lane.b32.xlu0 %v557, 63
      %v569 = vpop.permute.xlu0 %568
      %570 = vrot.lane.b32.xlu0 %v558, 63
      %v571 = vpop.permute.xlu0 %570
      %572 = vrot.lane.b32.xlu0 %v559, 63
      %v573 = vpop.permute.xlu0 %572
      %574 = vrot.lane.b32.xlu0 %v560, 63
      %v575 = vpop.permute.xlu0 %574
      %v576 = vsel %vm450, %v567, %v569
      %v577 = vsel %vm450, %v569, %v571
      %v578 = vsel %vm450, %v571, %v573
      %v579 = vsel %vm450, %v573, %v575
      %584 = vst [vmem:[#allocation3 + $0xa0] sm:$0xff] %v576
      %585 = vst [vmem:[#allocation3 + $0xa8] sm:$0xff] %v577
      %586 = vst [vmem:[#allocation3 + $0xb0] sm:$0xff] %v578
      %587 = vst [vmem:[#allocation3 + $0xb8] sm:$0xff] %v579
      %v588 = vlaneseq
      %v589 = vshrl.u32 %v588, 7
      %v590 = vsub.s32 6, %v589
      %v591 = vrot.slane %v198, %v590
      %v592 = vlaneseq
      %v593 = vshrl.u32 %v592, 7
      %v594 = vsub.s32 6, %v593
      %v595 = vrot.slane %v199, %v594
      %v596 = vlaneseq
      %v597 = vshrl.u32 %v596, 7
      %v598 = vsub.s32 6, %v597
      %v599 = vrot.slane %v200, %v598
      %v600 = vlaneseq
      %v601 = vshrl.u32 %v600, 7
      %v602 = vsub.s32 6, %v601
      %v603 = vrot.slane %v201, %v602
      %608 = vrot.lane.b32.xlu0 %v591, 71
      %v609 = vpop.permute.xlu0 %608
      %610 = vrot.lane.b32.xlu0 %v595, 71
      %v611 = vpop.permute.xlu0 %610
      %612 = vrot.lane.b32.xlu0 %v599, 71
      %v613 = vpop.permute.xlu0 %612
      %614 = vrot.lane.b32.xlu0 %v603, 71
      %v615 = vpop.permute.xlu0 %614
      %v616 = vsel %vm409, %v609, %v611
      %v617 = vsel %vm409, %v611, %v613
      %v618 = vsel %vm409, %v613, %v615
      %v624 = vmul.f32 %v206, %v609
      %v625 = vmul.f32 %v207, %v616
      %v626 = vmul.f32 %v208, %v617
      %v627 = vmul.f32 %v209, %v618
      %v628 = vmul.f32 %v210, %v615
      %634 = vrot.lane.b32.xlu0 %v624, 57
      %v635 = vpop.permute.xlu0 %634
      %636 = vrot.lane.b32.xlu0 %v625, 57
      %v637 = vpop.permute.xlu0 %636
      %638 = vrot.lane.b32.xlu0 %v626, 57
      %v639 = vpop.permute.xlu0 %638
      %640 = vrot.lane.b32.xlu0 %v627, 57
      %v641 = vpop.permute.xlu0 %640
      %642 = vrot.lane.b32.xlu0 %v628, 57
      %v643 = vpop.permute.xlu0 %642
      %v644 = vsel %vm380, %v635, %v637
      %v645 = vsel %vm380, %v637, %v639
      %v646 = vsel %vm380, %v639, %v641
      %v647 = vsel %vm380, %v641, %v643
      %652 = vst [vmem:[#allocation3 + $0xc0] sm:$0xff] %v644
      %653 = vst [vmem:[#allocation3 + $0xc8] sm:$0xff] %v645
      %654 = vst [vmem:[#allocation3 + $0xd0] sm:$0xff] %v646
      %655 = vst [vmem:[#allocation3 + $0xd8] sm:$0xff] %v647
      %v656 = vlaneseq
      %v657 = vshrl.u32 %v656, 7
      %v658 = vsub.s32 7, %v657
      %v659 = vrot.slane %v198, %v658
      %v660 = vlaneseq
      %v661 = vshrl.u32 %v660, 7
      %v662 = vsub.s32 7, %v661
      %v663 = vrot.slane %v199, %v662
      %v664 = vlaneseq
      %v665 = vshrl.u32 %v664, 7
      %v666 = vsub.s32 7, %v665
      %v667 = vrot.slane %v200, %v666
      %v668 = vlaneseq
      %v669 = vshrl.u32 %v668, 7
      %v670 = vsub.s32 7, %v669
      %v671 = vrot.slane %v201, %v670
      %676 = vrot.lane.b32.xlu0 %v659, 72
      %v677 = vpop.permute.xlu0 %676
      %678 = vrot.lane.b32.xlu0 %v663, 72
      %v679 = vpop.permute.xlu0 %678
      %680 = vrot.lane.b32.xlu0 %v667, 72
      %v681 = vpop.permute.xlu0 %680
      %682 = vrot.lane.b32.xlu0 %v671, 72
      %v683 = vpop.permute.xlu0 %682
      %v684 = vsel %vm339, %v677, %v679
      %v685 = vsel %vm339, %v679, %v681
      %v686 = vsel %vm339, %v681, %v683
      %v692 = vmul.f32 %v206, %v677
      %v693 = vmul.f32 %v207, %v684
      %v694 = vmul.f32 %v208, %v685
      %v695 = vmul.f32 %v209, %v686
      %v696 = vmul.f32 %v210, %v683
      %702 = vrot.lane.b32.xlu0 %v692, 56
      %v703 = vpop.permute.xlu0 %702
      %704 = vrot.lane.b32.xlu0 %v693, 56
      %v705 = vpop.permute.xlu0 %704
      %706 = vrot.lane.b32.xlu0 %v694, 56
      %v707 = vpop.permute.xlu0 %706
      %708 = vrot.lane.b32.xlu0 %v695, 56
      %v709 = vpop.permute.xlu0 %708
      %710 = vrot.lane.b32.xlu0 %v696, 56
      %v711 = vpop.permute.xlu0 %710
      %v712 = vsel %vm310, %v703, %v705
      %v713 = vsel %vm310, %v705, %v707
      %v714 = vsel %vm310, %v707, %v709
      %v715 = vsel %vm310, %v709, %v711
      %720 = vst [vmem:[#allocation3 + $0xe0] sm:$0xff] %v712
      %721 = vst [vmem:[#allocation3 + $0xe8] sm:$0xff] %v713
      %722 = vst [vmem:[#allocation3 + $0xf0] sm:$0xff] %v714
      %723 = vst [vmem:[#allocation3 + $0xf8] sm:$0xff] %v715
      %v724 = vlaneseq
      %v725 = vshrl.u32 %v724, 7
      %v726 = vsub.s32 0, %v725
      %v727 = vrot.slane %v202, %v726
      %v728 = vlaneseq
      %v729 = vshrl.u32 %v728, 7
      %v730 = vsub.s32 0, %v729
      %v731 = vrot.slane %v203, %v730
      %v732 = vlaneseq
      %v733 = vshrl.u32 %v732, 7
      %v734 = vsub.s32 0, %v733
      %v735 = vrot.slane %v204, %v734
      %v736 = vlaneseq
      %v737 = vshrl.u32 %v736, 7
      %v738 = vsub.s32 0, %v737
      %v739 = vrot.slane %v205, %v738
      %744 = vrot.lane.b32.xlu0 %v727, 73
      %v745 = vpop.permute.xlu0 %744
      %746 = vrot.lane.b32.xlu0 %v731, 73
      %v747 = vpop.permute.xlu0 %746
      %748 = vrot.lane.b32.xlu0 %v735, 73
      %v749 = vpop.permute.xlu0 %748
      %750 = vrot.lane.b32.xlu0 %v739, 73
      %v751 = vpop.permute.xlu0 %750
      %v752 = vsel %vm269, %v745, %v747
      %v753 = vsel %vm269, %v747, %v749
      %v754 = vsel %vm269, %v749, %v751
      %v760 = vmul.f32 %v206, %v745
      %v761 = vmul.f32 %v207, %v752
      %v762 = vmul.f32 %v208, %v753
      %v763 = vmul.f32 %v209, %v754
      %v764 = vmul.f32 %v210, %v751
      %770 = vrot.lane.b32.xlu0 %v760, 55
      %v771 = vpop.permute.xlu0 %770
      %772 = vrot.lane.b32.xlu0 %v761, 55
      %v773 = vpop.permute.xlu0 %772
      %774 = vrot.lane.b32.xlu0 %v762, 55
      %v775 = vpop.permute.xlu0 %774
      %776 = vrot.lane.b32.xlu0 %v763, 55
      %v777 = vpop.permute.xlu0 %776
      %778 = vrot.lane.b32.xlu0 %v764, 55
      %v779 = vpop.permute.xlu0 %778
      %v780 = vsel %vm240, %v771, %v773
      %v781 = vsel %vm240, %v773, %v775
      %v782 = vsel %vm240, %v775, %v777
      %v783 = vsel %vm240, %v777, %v779
      %788 = vst [vmem:[#allocation3 + $0x100] sm:$0xff] %v780
      %789 = vst [vmem:[#allocation3 + $0x108] sm:$0xff] %v781
      %790 = vst [vmem:[#allocation3 + $0x110] sm:$0xff] %v782
      %791 = vst [vmem:[#allocation3 + $0x118] sm:$0xff] %v783
      %792 = vrot.lane.b32.xlu0 %v215, 119
      %v793 = vpop.permute.xlu0 %792
      %794 = vrot.lane.b32.xlu0 %v219, 119
      %v795 = vpop.permute.xlu0 %794
      %796 = vrot.lane.b32.xlu0 %v223, 119
      %v797 = vpop.permute.xlu0 %796
      %798 = vrot.lane.b32.xlu0 %v227, 119
      %v799 = vpop.permute.xlu0 %798
      %vm800 = vcmask 973824
      %v801 = vsel %vm800, %v793, %v795
      %v802 = vsel %vm800, %v795, %v797
      %v803 = vsel %vm800, %v797, %v799
      %v809 = vmul.f32 %v206, %v793
      %v810 = vmul.f32 %v207, %v801
      %v811 = vmul.f32 %v208, %v802
      %v812 = vmul.f32 %v209, %v803
      %v813 = vmul.f32 %v210, %v799
      %819 = vrot.lane.b32.xlu0 %v809, 9
      %v820 = vpop.permute.xlu0 %819
      %821 = vrot.lane.b32.xlu0 %v810, 9
      %v822 = vpop.permute.xlu0 %821
      %823 = vrot.lane.b32.xlu0 %v811, 9
      %v824 = vpop.permute.xlu0 %823
      %825 = vrot.lane.b32.xlu0 %v812, 9
      %v826 = vpop.permute.xlu0 %825
      %827 = vrot.lane.b32.xlu0 %v813, 9
      %v828 = vpop.permute.xlu0 %827
      %vm829 = vcmask 72704
      %v830 = vsel %vm829, %v820, %v822
      %v831 = vsel %vm829, %v822, %v824
      %v832 = vsel %vm829, %v824, %v826
      %v833 = vsel %vm829, %v826, %v828
      %838 = vst [vmem:[#allocation3 + $0x120] sm:$0xff] %v830
      %839 = vst [vmem:[#allocation3 + $0x128] sm:$0xff] %v831
      %840 = vst [vmem:[#allocation3 + $0x130] sm:$0xff] %v832
      %841 = vst [vmem:[#allocation3 + $0x138] sm:$0xff] %v833
      %842 = vrot.lane.b32.xlu0 %v285, 120
      %v843 = vpop.permute.xlu0 %842
      %844 = vrot.lane.b32.xlu0 %v289, 120
      %v845 = vpop.permute.xlu0 %844
      %846 = vrot.lane.b32.xlu0 %v293, 120
      %v847 = vpop.permute.xlu0 %846
      %848 = vrot.lane.b32.xlu0 %v297, 120
      %v849 = vpop.permute.xlu0 %848
      %vm850 = vcmask 982016
      %v851 = vsel %vm850, %v843, %v845
      %v852 = vsel %vm850, %v845, %v847
      %v853 = vsel %vm850, %v847, %v849
      %v859 = vmul.f32 %v206, %v843
      %v860 = vmul.f32 %v207, %v851
      %v861 = vmul.f32 %v208, %v852
      %v862 = vmul.f32 %v209, %v853
      %v863 = vmul.f32 %v210, %v849
      %869 = vrot.lane.b32.xlu0 %v859, 8
      %v870 = vpop.permute.xlu0 %869
      %871 = vrot.lane.b32.xlu0 %v860, 8
      %v872 = vpop.permute.xlu0 %871
      %873 = vrot.lane.b32.xlu0 %v861, 8
      %v874 = vpop.permute.xlu0 %873
      %875 = vrot.lane.b32.xlu0 %v862, 8
      %v876 = vpop.permute.xlu0 %875
      %877 = vrot.lane.b32.xlu0 %v863, 8
      %v878 = vpop.permute.xlu0 %877
      %vm879 = vcmask 64512
      %v880 = vsel %vm879, %v870, %v872
      %v881 = vsel %vm879, %v872, %v874
      %v882 = vsel %vm879, %v874, %v876
      %v883 = vsel %vm879, %v876, %v878
      %888 = vst [vmem:[#allocation3 + $0x140] sm:$0xff] %v880
      %889 = vst [vmem:[#allocation3 + $0x148] sm:$0xff] %v881
      %890 = vst [vmem:[#allocation3 + $0x150] sm:$0xff] %v882
      %891 = vst [vmem:[#allocation3 + $0x158] sm:$0xff] %v883
      %892 = vrot.lane.b32.xlu0 %v355, 121
      %v893 = vpop.permute.xlu0 %892
      %894 = vrot.lane.b32.xlu0 %v359, 121
      %v895 = vpop.permute.xlu0 %894
      %896 = vrot.lane.b32.xlu0 %v363, 121
      %v897 = vpop.permute.xlu0 %896
      %898 = vrot.lane.b32.xlu0 %v367, 121
      %v899 = vpop.permute.xlu0 %898
      %vm900 = vcmask 990208
      %v901 = vsel %vm900, %v893, %v895
      %v902 = vsel %vm900, %v895, %v897
      %v903 = vsel %vm900, %v897, %v899
      %v909 = vmul.f32 %v206, %v893
      %v910 = vmul.f32 %v207, %v901
      %v911 = vmul.f32 %v208, %v902
      %v912 = vmul.f32 %v209, %v903
      %v913 = vmul.f32 %v210, %v899
      %919 = vrot.lane.b32.xlu0 %v909, 7
      %v920 = vpop.permute.xlu0 %919
      %921 = vrot.lane.b32.xlu0 %v910, 7
      %v922 = vpop.permute.xlu0 %921
      %923 = vrot.lane.b32.xlu0 %v911, 7
      %v924 = vpop.permute.xlu0 %923
      %925 = vrot.lane.b32.xlu0 %v912, 7
      %v926 = vpop.permute.xlu0 %925
      %927 = vrot.lane.b32.xlu0 %v913, 7
      %v928 = vpop.permute.xlu0 %927
      %vm929 = vcmask 56320
      %v930 = vsel %vm929, %v920, %v922
      %v931 = vsel %vm929, %v922, %v924
      %v932 = vsel %vm929, %v924, %v926
      %v933 = vsel %vm929, %v926, %v928
      %938 = vst [vmem:[#allocation3 + $0x160] sm:$0xff] %v930
      %939 = vst [vmem:[#allocation3 + $0x168] sm:$0xff] %v931
      %940 = vst [vmem:[#allocation3 + $0x170] sm:$0xff] %v932
      %941 = vst [vmem:[#allocation3 + $0x178] sm:$0xff] %v933
      %942 = vrot.lane.b32.xlu0 %v425, 127
      %v943 = vpop.permute.xlu0 %942
      %944 = vrot.lane.b32.xlu0 %v429, 127
      %v945 = vpop.permute.xlu0 %944
      %946 = vrot.lane.b32.xlu0 %v433, 127
      %v947 = vpop.permute.xlu0 %946
      %948 = vrot.lane.b32.xlu0 %v437, 127
      %v949 = vpop.permute.xlu0 %948
      %vm950 = vcmask 1039360
      %v951 = vsel %vm950, %v943, %v945
      %v952 = vsel %vm950, %v945, %v947
      %v953 = vsel %vm950, %v947, %v949
      %v959 = vmul.f32 %v206, %v943
      %v960 = vmul.f32 %v207, %v951
      %v961 = vmul.f32 %v208, %v952
      %v962 = vmul.f32 %v209, %v953
      %v963 = vmul.f32 %v210, %v949
      %969 = vrot.lane.b32.xlu0 %v959, 1
      %v970 = vpop.permute.xlu0 %969
      %971 = vrot.lane.b32.xlu0 %v960, 1
      %v972 = vpop.permute.xlu0 %971
      %973 = vrot.lane.b32.xlu0 %v961, 1
      %v974 = vpop.permute.xlu0 %973
      %975 = vrot.lane.b32.xlu0 %v962, 1
      %v976 = vpop.permute.xlu0 %975
      %977 = vrot.lane.b32.xlu0 %v963, 1
      %v978 = vpop.permute.xlu0 %977
      %vm979 = vcmask 7168
      %v980 = vsel %vm979, %v970, %v972
      %v981 = vsel %vm979, %v972, %v974
      %v982 = vsel %vm979, %v974, %v976
      %v983 = vsel %vm979, %v976, %v978
      %988 = vst [vmem:[#allocation3 + $0x180] sm:$0xff] %v980
      %989 = vst [vmem:[#allocation3 + $0x188] sm:$0xff] %v981
      %990 = vst [vmem:[#allocation3 + $0x190] sm:$0xff] %v982
      %991 = vst [vmem:[#allocation3 + $0x198] sm:$0xff] %v983
      %992 = vst [vmem:[#allocation3 + $0x1a0] sm:$0xff] %v207
      %993 = vst [vmem:[#allocation3 + $0x1a8] sm:$0xff] %v208
      %994 = vst [vmem:[#allocation3 + $0x1b0] sm:$0xff] %v209
      %995 = vst [vmem:[#allocation3 + $0x1b8] sm:$0xff] %v210
      %996 = vrot.lane.b32.xlu0 %v523, 1
      %v997 = vpop.permute.xlu0 %996
      %998 = vrot.lane.b32.xlu0 %v527, 1
      %v999 = vpop.permute.xlu0 %998
      %1000 = vrot.lane.b32.xlu0 %v531, 1
      %v1001 = vpop.permute.xlu0 %1000
      %1002 = vrot.lane.b32.xlu0 %v535, 1
      %v1003 = vpop.permute.xlu0 %1002
      %v1004 = vsel %vm979, %v997, %v999
      %v1005 = vsel %vm979, %v999, %v1001
      %v1006 = vsel %vm979, %v1001, %v1003
      %v1012 = vmul.f32 %v207, %v997
      %v1013 = vmul.f32 %v208, %v1004
      %v1014 = vmul.f32 %v209, %v1005
      %v1015 = vmul.f32 %v210, %v1006
      %v1016 = vmul.f32 %v211, %v1003
      %1022 = vrot.lane.b32.xlu0 %v1012, 127
      %v1023 = vpop.permute.xlu0 %1022
      %1024 = vrot.lane.b32.xlu0 %v1013, 127
      %v1025 = vpop.permute.xlu0 %1024
      %1026 = vrot.lane.b32.xlu0 %v1014, 127
      %v1027 = vpop.permute.xlu0 %1026
      %1028 = vrot.lane.b32.xlu0 %v1015, 127
      %v1029 = vpop.permute.xlu0 %1028
      %1030 = vrot.lane.b32.xlu0 %v1016, 127
      %v1031 = vpop.permute.xlu0 %1030
      %v1032 = vsel %vm950, %v1023, %v1025
      %v1033 = vsel %vm950, %v1025, %v1027
      %v1034 = vsel %vm950, %v1027, %v1029
      %v1035 = vsel %vm950, %v1029, %v1031
      %1040 = vst [vmem:[#allocation3 + $0x1c0] sm:$0xff] %v1032
      %1041 = vst [vmem:[#allocation3 + $0x1c8] sm:$0xff] %v1033
      %1042 = vst [vmem:[#allocation3 + $0x1d0] sm:$0xff] %v1034
      %1043 = vst [vmem:[#allocation3 + $0x1d8] sm:$0xff] %v1035
      %1044 = vrot.lane.b32.xlu0 %v591, 7
      %v1045 = vpop.permute.xlu0 %1044
      %1046 = vrot.lane.b32.xlu0 %v595, 7
      %v1047 = vpop.permute.xlu0 %1046
      %1048 = vrot.lane.b32.xlu0 %v599, 7
      %v1049 = vpop.permute.xlu0 %1048
      %1050 = vrot.lane.b32.xlu0 %v603, 7
      %v1051 = vpop.permute.xlu0 %1050
      %v1052 = vsel %vm929, %v1045, %v1047
      %v1053 = vsel %vm929, %v1047, %v1049
      %v1054 = vsel %vm929, %v1049, %v1051
      %v1060 = vmul.f32 %v207, %v1045
      %v1061 = vmul.f32 %v208, %v1052
      %v1062 = vmul.f32 %v209, %v1053
      %v1063 = vmul.f32 %v210, %v1054
      %v1064 = vmul.f32 %v211, %v1051
      %1070 = vrot.lane.b32.xlu0 %v1060, 121
      %v1071 = vpop.permute.xlu0 %1070
      %1072 = vrot.lane.b32.xlu0 %v1061, 121
      %v1073 = vpop.permute.xlu0 %1072
      %1074 = vrot.lane.b32.xlu0 %v1062, 121
      %v1075 = vpop.permute.xlu0 %1074
      %1076 = vrot.lane.b32.xlu0 %v1063, 121
      %v1077 = vpop.permute.xlu0 %1076
      %1078 = vrot.lane.b32.xlu0 %v1064, 121
      %v1079 = vpop.permute.xlu0 %1078
      %v1080 = vsel %vm900, %v1071, %v1073
      %v1081 = vsel %vm900, %v1073, %v1075
      %v1082 = vsel %vm900, %v1075, %v1077
      %v1083 = vsel %vm900, %v1077, %v1079
      %1088 = vst [vmem:[#allocation3 + $0x1e0] sm:$0xff] %v1080
      %1089 = vst [vmem:[#allocation3 + $0x1e8] sm:$0xff] %v1081
      %1090 = vst [vmem:[#allocation3 + $0x1f0] sm:$0xff] %v1082
      %1091 = vst [vmem:[#allocation3 + $0x1f8] sm:$0xff] %v1083
      %1092 = vrot.lane.b32.xlu0 %v659, 8
      %v1093 = vpop.permute.xlu0 %1092
      %1094 = vrot.lane.b32.xlu0 %v663, 8
      %v1095 = vpop.permute.xlu0 %1094
      %1096 = vrot.lane.b32.xlu0 %v667, 8
      %v1097 = vpop.permute.xlu0 %1096
      %1098 = vrot.lane.b32.xlu0 %v671, 8
      %v1099 = vpop.permute.xlu0 %1098
      %v1100 = vsel %vm879, %v1093, %v1095
      %v1101 = vsel %vm879, %v1095, %v1097
      %v1102 = vsel %vm879, %v1097, %v1099
      %v1108 = vmul.f32 %v207, %v1093
      %v1109 = vmul.f32 %v208, %v1100
      %v1110 = vmul.f32 %v209, %v1101
      %v1111 = vmul.f32 %v210, %v1102
      %v1112 = vmul.f32 %v211, %v1099
      %1118 = vrot.lane.b32.xlu0 %v1108, 120
      %v1119 = vpop.permute.xlu0 %1118
      %1120 = vrot.lane.b32.xlu0 %v1109, 120
      %v1121 = vpop.permute.xlu0 %1120
      %1122 = vrot.lane.b32.xlu0 %v1110, 120
      %v1123 = vpop.permute.xlu0 %1122
      %1124 = vrot.lane.b32.xlu0 %v1111, 120
      %v1125 = vpop.permute.xlu0 %1124
      %1126 = vrot.lane.b32.xlu0 %v1112, 120
      %v1127 = vpop.permute.xlu0 %1126
      %v1128 = vsel %vm850, %v1119, %v1121
      %v1129 = vsel %vm850, %v1121, %v1123
      %v1130 = vsel %vm850, %v1123, %v1125
      %v1131 = vsel %vm850, %v1125, %v1127
      %1136 = vst [vmem:[#allocation3 + $0x200] sm:$0xff] %v1128
      %1137 = vst [vmem:[#allocation3 + $0x208] sm:$0xff] %v1129
      %1138 = vst [vmem:[#allocation3 + $0x210] sm:$0xff] %v1130
      %1139 = vst [vmem:[#allocation3 + $0x218] sm:$0xff] %v1131
      %1140 = vrot.lane.b32.xlu0 %v727, 9
      %v1141 = vpop.permute.xlu0 %1140
      %1142 = vrot.lane.b32.xlu0 %v731, 9
      %v1143 = vpop.permute.xlu0 %1142
      %1144 = vrot.lane.b32.xlu0 %v735, 9
      %v1145 = vpop.permute.xlu0 %1144
      %1146 = vrot.lane.b32.xlu0 %v739, 9
      %v1147 = vpop.permute.xlu0 %1146
      %v1148 = vsel %vm829, %v1141, %v1143
      %v1149 = vsel %vm829, %v1143, %v1145
      %v1150 = vsel %vm829, %v1145, %v1147
      %v1156 = vmul.f32 %v207, %v1141
      %v1157 = vmul.f32 %v208, %v1148
      %v1158 = vmul.f32 %v209, %v1149
      %v1159 = vmul.f32 %v210, %v1150
      %v1160 = vmul.f32 %v211, %v1147
      %1166 = vrot.lane.b32.xlu0 %v1156, 119
      %v1167 = vpop.permute.xlu0 %1166
      %1168 = vrot.lane.b32.xlu0 %v1157, 119
      %v1169 = vpop.permute.xlu0 %1168
      %1170 = vrot.lane.b32.xlu0 %v1158, 119
      %v1171 = vpop.permute.xlu0 %1170
      %1172 = vrot.lane.b32.xlu0 %v1159, 119
      %v1173 = vpop.permute.xlu0 %1172
      %1174 = vrot.lane.b32.xlu0 %v1160, 119
      %v1175 = vpop.permute.xlu0 %1174
      %v1176 = vsel %vm800, %v1167, %v1169
      %v1177 = vsel %vm800, %v1169, %v1171
      %v1178 = vsel %vm800, %v1171, %v1173
      %v1179 = vsel %vm800, %v1173, %v1175
      %1184 = vst [vmem:[#allocation3 + $0x220] sm:$0xff] %v1176
      %1185 = vst [vmem:[#allocation3 + $0x228] sm:$0xff] %v1177
      %1186 = vst [vmem:[#allocation3 + $0x230] sm:$0xff] %v1178
      %1187 = vst [vmem:[#allocation3 + $0x238] sm:$0xff] %v1179
      %v1188 = vmul.f32 %v207, %v233
      %v1189 = vmul.f32 %v208, %v241
      %v1190 = vmul.f32 %v209, %v242
      %v1191 = vmul.f32 %v210, %v243
      %v1192 = vmul.f32 %v211, %v239
      %1198 = vrot.lane.b32.xlu0 %v1188, 73
      %v1199 = vpop.permute.xlu0 %1198
      %1200 = vrot.lane.b32.xlu0 %v1189, 73
      %v1201 = vpop.permute.xlu0 %1200
      %1202 = vrot.lane.b32.xlu0 %v1190, 73
      %v1203 = vpop.permute.xlu0 %1202
      %1204 = vrot.lane.b32.xlu0 %v1191, 73
      %v1205 = vpop.permute.xlu0 %1204
      %1206 = vrot.lane.b32.xlu0 %v1192, 73
      %v1207 = vpop.permute.xlu0 %1206
      %v1208 = vsel %vm269, %v1199, %v1201
      %v1209 = vsel %vm269, %v1201, %v1203
      %v1210 = vsel %vm269, %v1203, %v1205
      %v1211 = vsel %vm269, %v1205, %v1207
      %1216 = vst [vmem:[#allocation3 + $0x240] sm:$0xff] %v1208
      %1217 = vst [vmem:[#allocation3 + $0x248] sm:$0xff] %v1209
      %1218 = vst [vmem:[#allocation3 + $0x250] sm:$0xff] %v1210
      %1219 = vst [vmem:[#allocation3 + $0x258] sm:$0xff] %v1211
      %v1220 = vmul.f32 %v207, %v303
      %v1221 = vmul.f32 %v208, %v311
      %v1222 = vmul.f32 %v209, %v312
      %v1223 = vmul.f32 %v210, %v313
      %v1224 = vmul.f32 %v211, %v309
      %1230 = vrot.lane.b32.xlu0 %v1220, 72
      %v1231 = vpop.permute.xlu0 %1230
      %1232 = vrot.lane.b32.xlu0 %v1221, 72
      %v1233 = vpop.permute.xlu0 %1232
      %1234 = vrot.lane.b32.xlu0 %v1222, 72
      %v1235 = vpop.permute.xlu0 %1234
      %1236 = vrot.lane.b32.xlu0 %v1223, 72
      %v1237 = vpop.permute.xlu0 %1236
      %1238 = vrot.lane.b32.xlu0 %v1224, 72
      %v1239 = vpop.permute.xlu0 %1238
      %v1240 = vsel %vm339, %v1231, %v1233
      %v1241 = vsel %vm339, %v1233, %v1235
      %v1242 = vsel %vm339, %v1235, %v1237
      %v1243 = vsel %vm339, %v1237, %v1239
      %1248 = vst [vmem:[#allocation3 + $0x260] sm:$0xff] %v1240
      %1249 = vst [vmem:[#allocation3 + $0x268] sm:$0xff] %v1241
      %1250 = vst [vmem:[#allocation3 + $0x270] sm:$0xff] %v1242
      %1251 = vst [vmem:[#allocation3 + $0x278] sm:$0xff] %v1243
      %v1252 = vmul.f32 %v207, %v373
      %v1253 = vmul.f32 %v208, %v381
      %v1254 = vmul.f32 %v209, %v382
      %v1255 = vmul.f32 %v210, %v383
      %v1256 = vmul.f32 %v211, %v379
      %1262 = vrot.lane.b32.xlu0 %v1252, 71
      %v1263 = vpop.permute.xlu0 %1262
      %1264 = vrot.lane.b32.xlu0 %v1253, 71
      %v1265 = vpop.permute.xlu0 %1264
      %1266 = vrot.lane.b32.xlu0 %v1254, 71
      %v1267 = vpop.permute.xlu0 %1266
      %1268 = vrot.lane.b32.xlu0 %v1255, 71
      %v1269 = vpop.permute.xlu0 %1268
      %1270 = vrot.lane.b32.xlu0 %v1256, 71
      %v1271 = vpop.permute.xlu0 %1270
      %v1272 = vsel %vm409, %v1263, %v1265
      %v1273 = vsel %vm409, %v1265, %v1267
      %v1274 = vsel %vm409, %v1267, %v1269
      %v1275 = vsel %vm409, %v1269, %v1271
      %1280 = vst [vmem:[#allocation3 + $0x280] sm:$0xff] %v1272
      %1281 = vst [vmem:[#allocation3 + $0x288] sm:$0xff] %v1273
      %1282 = vst [vmem:[#allocation3 + $0x290] sm:$0xff] %v1274
      %1283 = vst [vmem:[#allocation3 + $0x298] sm:$0xff] %v1275
      %v1284 = vmul.f32 %v207, %v443
      %v1285 = vmul.f32 %v208, %v451
      %v1286 = vmul.f32 %v209, %v452
      %v1287 = vmul.f32 %v210, %v453
      %v1288 = vmul.f32 %v211, %v449
      %1294 = vrot.lane.b32.xlu0 %v1284, 65
      %v1295 = vpop.permute.xlu0 %1294
      %1296 = vrot.lane.b32.xlu0 %v1285, 65
      %v1297 = vpop.permute.xlu0 %1296
      %1298 = vrot.lane.b32.xlu0 %v1286, 65
      %v1299 = vpop.permute.xlu0 %1298
      %1300 = vrot.lane.b32.xlu0 %v1287, 65
      %v1301 = vpop.permute.xlu0 %1300
      %1302 = vrot.lane.b32.xlu0 %v1288, 65
      %v1303 = vpop.permute.xlu0 %1302
      %v1304 = vsel %vm479, %v1295, %v1297
      %v1305 = vsel %vm479, %v1297, %v1299
      %v1306 = vsel %vm479, %v1299, %v1301
      %v1307 = vsel %vm479, %v1301, %v1303
      %1312 = vst [vmem:[#allocation3 + $0x2a0] sm:$0xff] %v1304
      %1313 = vst [vmem:[#allocation3 + $0x2a8] sm:$0xff] %v1305
      %1314 = vst [vmem:[#allocation3 + $0x2b0] sm:$0xff] %v1306
      %1315 = vst [vmem:[#allocation3 + $0x2b8] sm:$0xff] %v1307
      %1317 = vrot.lane.b32.xlu0 %v211, 64
      %v1318 = vpop.permute.xlu0 %1317
      %v1319 = vsel %vm507, %v506, %v1318
      %1321 = vst [vmem:[#allocation3 + $0x2c0] sm:$0xff] %v509
      %1322 = vst [vmem:[#allocation3 + $0x2c8] sm:$0xff] %v510
      %1323 = vst [vmem:[#allocation3 + $0x2d0] sm:$0xff] %v511
      %1324 = vst [vmem:[#allocation3 + $0x2d8] sm:$0xff] %v1319
      %v1325 = vmul.f32 %v207, %v541
      %v1326 = vmul.f32 %v208, %v548
      %v1327 = vmul.f32 %v209, %v549
      %v1328 = vmul.f32 %v210, %v550
      %v1329 = vmul.f32 %v211, %v547
      %1335 = vrot.lane.b32.xlu0 %v1325, 63
      %v1336 = vpop.permute.xlu0 %1335
      %1337 = vrot.lane.b32.xlu0 %v1326, 63
      %v1338 = vpop.permute.xlu0 %1337
      %1339 = vrot.lane.b32.xlu0 %v1327, 63
      %v1340 = vpop.permute.xlu0 %1339
      %1341 = vrot.lane.b32.xlu0 %v1328, 63
      %v1342 = vpop.permute.xlu0 %1341
      %1343 = vrot.lane.b32.xlu0 %v1329, 63
      %v1344 = vpop.permute.xlu0 %1343
      %v1345 = vsel %vm450, %v1336, %v1338
      %v1346 = vsel %vm450, %v1338, %v1340
      %v1347 = vsel %vm450, %v1340, %v1342
      %v1348 = vsel %vm450, %v1342, %v1344
      %1353 = vst [vmem:[#allocation3 + $0x2e0] sm:$0xff] %v1345
      %1354 = vst [vmem:[#allocation3 + $0x2e8] sm:$0xff] %v1346
      %1355 = vst [vmem:[#allocation3 + $0x2f0] sm:$0xff] %v1347
      %1356 = vst [vmem:[#allocation3 + $0x2f8] sm:$0xff] %v1348
      %v1357 = vmul.f32 %v207, %v609
      %v1358 = vmul.f32 %v208, %v616
      %v1359 = vmul.f32 %v209, %v617
      %v1360 = vmul.f32 %v210, %v618
      %v1361 = vmul.f32 %v211, %v615
      %1367 = vrot.lane.b32.xlu0 %v1357, 57
      %v1368 = vpop.permute.xlu0 %1367
      %1369 = vrot.lane.b32.xlu0 %v1358, 57
      %v1370 = vpop.permute.xlu0 %1369
      %1371 = vrot.lane.b32.xlu0 %v1359, 57
      %v1372 = vpop.permute.xlu0 %1371
      %1373 = vrot.lane.b32.xlu0 %v1360, 57
      %v1374 = vpop.permute.xlu0 %1373
      %1375 = vrot.lane.b32.xlu0 %v1361, 57
      %v1376 = vpop.permute.xlu0 %1375
      %v1377 = vsel %vm380, %v1368, %v1370
      %v1378 = vsel %vm380, %v1370, %v1372
      %v1379 = vsel %vm380, %v1372, %v1374
      %v1380 = vsel %vm380, %v1374, %v1376
      %1385 = vst [vmem:[#allocation3 + $0x300] sm:$0xff] %v1377
      %1386 = vst [vmem:[#allocation3 + $0x308] sm:$0xff] %v1378
      %1387 = vst [vmem:[#allocation3 + $0x310] sm:$0xff] %v1379
      %1388 = vst [vmem:[#allocation3 + $0x318] sm:$0xff] %v1380
      %v1389 = vmul.f32 %v207, %v677
      %v1390 = vmul.f32 %v208, %v684
      %v1391 = vmul.f32 %v209, %v685
      %v1392 = vmul.f32 %v210, %v686
      %v1393 = vmul.f32 %v211, %v683
      %1399 = vrot.lane.b32.xlu0 %v1389, 56
      %v1400 = vpop.permute.xlu0 %1399
      %1401 = vrot.lane.b32.xlu0 %v1390, 56
      %v1402 = vpop.permute.xlu0 %1401
      %1403 = vrot.lane.b32.xlu0 %v1391, 56
      %v1404 = vpop.permute.xlu0 %1403
      %1405 = vrot.lane.b32.xlu0 %v1392, 56
      %v1406 = vpop.permute.xlu0 %1405
      %1407 = vrot.lane.b32.xlu0 %v1393, 56
      %v1408 = vpop.permute.xlu0 %1407
      %v1409 = vsel %vm310, %v1400, %v1402
      %v1410 = vsel %vm310, %v1402, %v1404
      %v1411 = vsel %vm310, %v1404, %v1406
      %v1412 = vsel %vm310, %v1406, %v1408
      %1417 = vst [vmem:[#allocation3 + $0x320] sm:$0xff] %v1409
      %1418 = vst [vmem:[#allocation3 + $0x328] sm:$0xff] %v1410
      %1419 = vst [vmem:[#allocation3 + $0x330] sm:$0xff] %v1411
      %1420 = vst [vmem:[#allocation3 + $0x338] sm:$0xff] %v1412
      %v1421 = vmul.f32 %v207, %v745
      %v1422 = vmul.f32 %v208, %v752
      %v1423 = vmul.f32 %v209, %v753
      %v1424 = vmul.f32 %v210, %v754
      %v1425 = vmul.f32 %v211, %v751
      %1431 = vrot.lane.b32.xlu0 %v1421, 55
      %v1432 = vpop.permute.xlu0 %1431
      %1433 = vrot.lane.b32.xlu0 %v1422, 55
      %v1434 = vpop.permute.xlu0 %1433
      %1435 = vrot.lane.b32.xlu0 %v1423, 55
      %v1436 = vpop.permute.xlu0 %1435
      %1437 = vrot.lane.b32.xlu0 %v1424, 55
      %v1438 = vpop.permute.xlu0 %1437
      %1439 = vrot.lane.b32.xlu0 %v1425, 55
      %v1440 = vpop.permute.xlu0 %1439
      %v1441 = vsel %vm240, %v1432, %v1434
      %v1442 = vsel %vm240, %v1434, %v1436
      %v1443 = vsel %vm240, %v1436, %v1438
      %v1444 = vsel %vm240, %v1438, %v1440
      %1449 = vst [vmem:[#allocation3 + $0x340] sm:$0xff] %v1441
      %1450 = vst [vmem:[#allocation3 + $0x348] sm:$0xff] %v1442
      %1451 = vst [vmem:[#allocation3 + $0x350] sm:$0xff] %v1443
      %1452 = vst [vmem:[#allocation3 + $0x358] sm:$0xff] %v1444
      %v1453 = vld [vmem:[%s2] sm:$0xff]
      %v1454 = vld [vmem:[%s2 + $0x8] sm:$0xff]
      %v1455 = vld [vmem:[#allocation3] sm:$0xff]
      %v1456 = vld [vmem:[#allocation3 + $0x8] sm:$0xff]
      %v1457 = vld [vmem:[#allocation3 + $0x10] sm:$0xff]
      %v1458 = vld [vmem:[#allocation3 + $0x18] sm:$0xff]
      %v1459 = vld [vmem:[#allocation3 + $0x20] sm:$0xff]
      %v1460 = vld [vmem:[#allocation3 + $0x28] sm:$0xff]
      %v1461 = vld [vmem:[#allocation3 + $0x30] sm:$0xff]
      %v1462 = vld [vmem:[#allocation3 + $0x38] sm:$0xff]
      %v1463 = vld [vmem:[#allocation3 + $0x40] sm:$0xff]
      %v1464 = vld [vmem:[#allocation3 + $0x48] sm:$0xff]
      %v1465 = vld [vmem:[#allocation3 + $0x50] sm:$0xff]
      %v1466 = vld [vmem:[#allocation3 + $0x58] sm:$0xff]
      %v1467 = vld [vmem:[#allocation3 + $0x60] sm:$0xff]
      %v1468 = vld [vmem:[#allocation3 + $0x68] sm:$0xff]
      %v1469 = vld [vmem:[#allocation3 + $0x70] sm:$0xff]
      %v1470 = vld [vmem:[#allocation3 + $0x78] sm:$0xff]
      %v1471 = vld [vmem:[#allocation3 + $0x80] sm:$0xff]
      %v1472 = vld [vmem:[#allocation3 + $0x88] sm:$0xff]
      %v1473 = vld [vmem:[#allocation3 + $0x90] sm:$0xff]
      %v1474 = vld [vmem:[#allocation3 + $0x98] sm:$0xff]
      %v1475 = vld [vmem:[#allocation3 + $0xa0] sm:$0xff]
      %v1476 = vld [vmem:[#allocation3 + $0xa8] sm:$0xff]
      %v1477 = vld [vmem:[#allocation3 + $0xb0] sm:$0xff]
      %v1478 = vld [vmem:[#allocation3 + $0xb8] sm:$0xff]
      %v1479 = vld [vmem:[#allocation3 + $0xc0] sm:$0xff]
      %v1480 = vld [vmem:[#allocation3 + $0xc8] sm:$0xff]
      %v1481 = vld [vmem:[#allocation3 + $0xd0] sm:$0xff]
      %v1482 = vld [vmem:[#allocation3 + $0xd8] sm:$0xff]
      %v1483 = vld [vmem:[#allocation3 + $0xe0] sm:$0xff]
      %v1484 = vld [vmem:[#allocation3 + $0xe8] sm:$0xff]
      %v1485 = vld [vmem:[#allocation3 + $0xf0] sm:$0xff]
      %v1486 = vld [vmem:[#allocation3 + $0xf8] sm:$0xff]
      %v1487 = vld [vmem:[#allocation3 + $0x100] sm:$0xff]
      %v1488 = vld [vmem:[#allocation3 + $0x108] sm:$0xff]
      %v1489 = vld [vmem:[#allocation3 + $0x110] sm:$0xff]
      %v1490 = vld [vmem:[#allocation3 + $0x118] sm:$0xff]
      %v1491 = vld [vmem:[#allocation3 + $0x120] sm:$0xff]
      %v1492 = vld [vmem:[#allocation3 + $0x128] sm:$0xff]
      %v1493 = vld [vmem:[#allocation3 + $0x130] sm:$0xff]
      %v1494 = vld [vmem:[#allocation3 + $0x138] sm:$0xff]
      %v1495 = vld [vmem:[#allocation3 + $0x140] sm:$0xff]
      %v1496 = vld [vmem:[#allocation3 + $0x148] sm:$0xff]
      %v1497 = vld [vmem:[#allocation3 + $0x150] sm:$0xff]
      %v1498 = vld [vmem:[#allocation3 + $0x158] sm:$0xff]
      %v1499 = vld [vmem:[#allocation3 + $0x160] sm:$0xff]
      %v1500 = vld [vmem:[#allocation3 + $0x168] sm:$0xff]
      %v1501 = vld [vmem:[#allocation3 + $0x170] sm:$0xff]
      %v1502 = vld [vmem:[#allocation3 + $0x178] sm:$0xff]
      %v1503 = vld [vmem:[#allocation3 + $0x180] sm:$0xff]
      %v1504 = vld [vmem:[#allocation3 + $0x188] sm:$0xff]
      %v1505 = vld [vmem:[#allocation3 + $0x190] sm:$0xff]
      %v1506 = vld [vmem:[#allocation3 + $0x198] sm:$0xff]
      %v1507 = vld [vmem:[#allocation3 + $0x1a0] sm:$0xff]
      %v1508 = vld [vmem:[#allocation3 + $0x1a8] sm:$0xff]
      %v1509 = vld [vmem:[#allocation3 + $0x1b0] sm:$0xff]
      %v1510 = vld [vmem:[#allocation3 + $0x1b8] sm:$0xff]
      %v1511 = vld [vmem:[#allocation3 + $0x1c0] sm:$0xff]
      %v1512 = vld [vmem:[#allocation3 + $0x1c8] sm:$0xff]
      %v1513 = vld [vmem:[#allocation3 + $0x1d0] sm:$0xff]
      %v1514 = vld [vmem:[#allocation3 + $0x1d8] sm:$0xff]
      %v1515 = vld [vmem:[#allocation3 + $0x1e0] sm:$0xff]
      %v1516 = vld [vmem:[#allocation3 + $0x1e8] sm:$0xff]
      %v1517 = vld [vmem:[#allocation3 + $0x1f0] sm:$0xff]
      %v1518 = vld [vmem:[#allocation3 + $0x1f8] sm:$0xff]
      %v1519 = vld [vmem:[#allocation3 + $0x200] sm:$0xff]
      %v1520 = vld [vmem:[#allocation3 + $0x208] sm:$0xff]
      %v1521 = vld [vmem:[#allocation3 + $0x210] sm:$0xff]
      %v1522 = vld [vmem:[#allocation3 + $0x218] sm:$0xff]
      %v1523 = vld [vmem:[#allocation3 + $0x220] sm:$0xff]
      %v1524 = vld [vmem:[#allocation3 + $0x228] sm:$0xff]
      %v1525 = vld [vmem:[#allocation3 + $0x230] sm:$0xff]
      %v1526 = vld [vmem:[#allocation3 + $0x238] sm:$0xff]
      %v1527 = vld [vmem:[#allocation3 + $0x240] sm:$0xff]
      %v1528 = vld [vmem:[#allocation3 + $0x248] sm:$0xff]
      %v1529 = vld [vmem:[#allocation3 + $0x250] sm:$0xff]
      %v1530 = vld [vmem:[#allocation3 + $0x258] sm:$0xff]
      %v1531 = vld [vmem:[#allocation3 + $0x260] sm:$0xff]
      %v1532 = vld [vmem:[#allocation3 + $0x268] sm:$0xff]
      %v1533 = vld [vmem:[#allocation3 + $0x270] sm:$0xff]
      %v1534 = vld [vmem:[#allocation3 + $0x278] sm:$0xff]
      %v1535 = vld [vmem:[#allocation3 + $0x280] sm:$0xff]
      %v1536 = vld [vmem:[#allocation3 + $0x288] sm:$0xff]
      %v1537 = vld [vmem:[#allocation3 + $0x290] sm:$0xff]
      %v1538 = vld [vmem:[#allocation3 + $0x298] sm:$0xff]
      %v1539 = vld [vmem:[#allocation3 + $0x2a0] sm:$0xff]
      %v1540 = vld [vmem:[#allocation3 + $0x2a8] sm:$0xff]
      %v1541 = vld [vmem:[#allocation3 + $0x2b0] sm:$0xff]
      %v1542 = vld [vmem:[#allocation3 + $0x2b8] sm:$0xff]
      %v1543 = vld [vmem:[#allocation3 + $0x2c0] sm:$0xff]
      %v1544 = vld [vmem:[#allocation3 + $0x2c8] sm:$0xff]
      %v1545 = vld [vmem:[#allocation3 + $0x2d0] sm:$0xff]
      %v1546 = vld [vmem:[#allocation3 + $0x2d8] sm:$0xff]
      %v1547 = vld [vmem:[#allocation3 + $0x2e0] sm:$0xff]
      %v1548 = vld [vmem:[#allocation3 + $0x2e8] sm:$0xff]
      %v1549 = vld [vmem:[#allocation3 + $0x2f0] sm:$0xff]
      %v1550 = vld [vmem:[#allocation3 + $0x2f8] sm:$0xff]
      %v1551 = vld [vmem:[#allocation3 + $0x300] sm:$0xff]
      %v1552 = vld [vmem:[#allocation3 + $0x308] sm:$0xff]
      %v1553 = vld [vmem:[#allocation3 + $0x310] sm:$0xff]
      %v1554 = vld [vmem:[#allocation3 + $0x318] sm:$0xff]
      %v1555 = vld [vmem:[#allocation3 + $0x320] sm:$0xff]
      %v1556 = vld [vmem:[#allocation3 + $0x328] sm:$0xff]
      %v1557 = vld [vmem:[#allocation3 + $0x330] sm:$0xff]
      %v1558 = vld [vmem:[#allocation3 + $0x338] sm:$0xff]
      %v1559 = vld [vmem:[#allocation3 + $0x340] sm:$0xff]
      %v1560 = vld [vmem:[#allocation3 + $0x348] sm:$0xff]
      %v1561 = vld [vmem:[#allocation3 + $0x350] sm:$0xff]
      %v1562 = vld [vmem:[#allocation3 + $0x358] sm:$0xff]
      %vm1563 = vcmask 719872
      %v1565 = vsel %vm1563, %v1454, 0
      %1567 = vmatprep.subr.mxu0 %v1456
      %1568 = vmatpush1.msra.mxu0 %v1455
      %1569 = vmatprep.subr.mxu0 %v1460
      %1570 = vmatpush1.msra.mxu0 %v1459
      %1571 = vmatprep.subr.mxu0 %v1464
      %1572 = vmatpush1.msra.mxu0 %v1463
      %1573 = vmatprep.subr.mxu0 %v1468
      %1574 = vmatpush1.msra.mxu0 %v1467
      %1575 = vmatprep.subr.mxu0 %v1472
      %1576 = vmatpush1.msra.mxu0 %v1471
      %1577 = vmatprep.subr.mxu0 %v1476
      %1578 = vmatpush1.msra.mxu0 %v1475
      %1579 = vmatprep.subr.mxu0 %v1480
      %1580 = vmatpush1.msra.mxu0 %v1479
      %1581 = vmatprep.subr.mxu0 %v1484
      %1582 = vmatpush1.msra.mxu0 %v1483
      %1583 = vmatprep.subr.mxu0 %v1488
      %1584 = vmatpush1.msra.mxu0 %v1487
      %1585 = vmatprep.subr.mxu0 %v1492
      %1586 = vmatpush1.msra.mxu0 %v1491
      %1587 = vmatprep.subr.mxu0 %v1496
      %1588 = vmatpush1.msra.mxu0 %v1495
      %1589 = vmatprep.subr.mxu0 %v1500
      %1590 = vmatpush1.msra.mxu0 %v1499
      %1591 = vmatprep.subr.mxu0 %v1504
      %1592 = vmatpush1.msra.mxu0 %v1503
      %1593 = vmatprep.subr.mxu0 %v1508
      %1594 = vmatpush1.msra.mxu0 %v1507
      %1595 = vmatprep.subr.mxu0 %v1512
      %1596 = vmatpush1.msra.mxu0 %v1511
      %1597 = vmatprep.subr.mxu0 %v1516
      %1598 = vmatpush1.msra.mxu0 %v1515
      %1599 = vmatprep.subr.mxu0 %v1520
      %1600 = vmatpush1.msra.mxu0 %v1519
      %1601 = vmatprep.subr.mxu0 %v1524
      %1602 = vmatpush1.msra.mxu0 %v1523
      %1603 = vmatprep.subr.mxu0 %v1528
      %1604 = vmatpush1.msra.mxu0 %v1527
      %1605 = vmatprep.subr.mxu0 %v1532
      %1606 = vmatpush1.msra.mxu0 %v1531
      %1607 = vmatprep.subr.mxu0 %v1536
      %1608 = vmatpush1.msra.mxu0 %v1535
      %1609 = vmatprep.subr.mxu0 %v1540
      %1610 = vmatpush1.msra.mxu0 %v1539
      %1611 = vmatprep.subr.mxu0 %v1544
      %1612 = vmatpush1.msra.mxu0 %v1543
      %1613 = vmatprep.subr.mxu0 %v1548
      %1614 = vmatpush1.msra.mxu0 %v1547
      %1615 = vmatprep.subr.mxu0 %v1552
      %1616 = vmatpush1.msra.mxu0 %v1551
      %1617 = vmatprep.subr.mxu0 %v1556
      %1618 = vmatpush1.msra.mxu0 %v1555
      %1619 = vmatprep.subr.mxu0 %v1560
      %1620 = vmatpush1.msra.mxu0 %v1559
      %1621 = vmatprep.subr.mxu0 0.0
      %1622 = vmatpush1.msra.mxu0 0.0
      %1623 = vmatprep.subr.mxu0 0.0
      %1624 = vmatpush1.msra.mxu0 0.0
      %1625 = vmatprep.subr.mxu0 0.0
      %1626 = vmatpush1.msra.mxu0 0.0
      %1627 = vmatprep.subr.mxu0 0.0
      %1628 = vmatpush1.msra.mxu0 0.0
      %1629 = vmatprep.subr.mxu0 0.0
      %1630 = vmatpush1.msra.mxu0 0.0
      %1631 = vmatprep.mubr.f32.mxu0 %v1565
      %1632 = vmatmul.mubr.f32.gmra.mrb[0].mxu0 %v1453
      %v1633 = vpop.f32.mrb[0].mxu0
      %v1634 = vadd.f32 0.0, %v1633
      %v1635 = vpop.f32.mrb[0].mxu0
      %v1636 = vadd.f32 0.0, %v1635
      %1637 = vdwg.mxu0
      %1638 = vmatprep.subr.mxu0 %v1458
      %1639 = vmatpush1.msra.mxu0 %v1457
      %1640 = vmatprep.subr.mxu0 %v1462
      %1641 = vmatpush1.msra.mxu0 %v1461
      %1642 = vmatprep.subr.mxu0 %v1466
      %1643 = vmatpush1.msra.mxu0 %v1465
      %1644 = vmatprep.subr.mxu0 %v1470
      %1645 = vmatpush1.msra.mxu0 %v1469
      %1646 = vmatprep.subr.mxu0 %v1474
      %1647 = vmatpush1.msra.mxu0 %v1473
      %1648 = vmatprep.subr.mxu0 %v1478
      %1649 = vmatpush1.msra.mxu0 %v1477
      %1650 = vmatprep.subr.mxu0 %v1482
      %1651 = vmatpush1.msra.mxu0 %v1481
      %1652 = vmatprep.subr.mxu0 %v1486
      %1653 = vmatpush1.msra.mxu0 %v1485
      %1654 = vmatprep.subr.mxu0 %v1490
      %1655 = vmatpush1.msra.mxu0 %v1489
      %1656 = vmatprep.subr.mxu0 %v1494
      %1657 = vmatpush1.msra.mxu0 %v1493
      %1658 = vmatprep.subr.mxu0 %v1498
      %1659 = vmatpush1.msra.mxu0 %v1497
      %1660 = vmatprep.subr.mxu0 %v1502
      %1661 = vmatpush1.msra.mxu0 %v1501
      %1662 = vmatprep.subr.mxu0 %v1506
      %1663 = vmatpush1.msra.mxu0 %v1505
      %1664 = vmatprep.subr.mxu0 %v1510
      %1665 = vmatpush1.msra.mxu0 %v1509
      %1666 = vmatprep.subr.mxu0 %v1514
      %1667 = vmatpush1.msra.mxu0 %v1513
      %1668 = vmatprep.subr.mxu0 %v1518
      %1669 = vmatpush1.msra.mxu0 %v1517
      %1670 = vmatprep.subr.mxu0 %v1522
      %1671 = vmatpush1.msra.mxu0 %v1521
      %1672 = vmatprep.subr.mxu0 %v1526
      %1673 = vmatpush1.msra.mxu0 %v1525
      %1674 = vmatprep.subr.mxu0 %v1530
      %1675 = vmatpush1.msra.mxu0 %v1529
      %1676 = vmatprep.subr.mxu0 %v1534
      %1677 = vmatpush1.msra.mxu0 %v1533
      %1678 = vmatprep.subr.mxu0 %v1538
      %1679 = vmatpush1.msra.mxu0 %v1537
      %1680 = vmatprep.subr.mxu0 %v1542
      %1681 = vmatpush1.msra.mxu0 %v1541
      %1682 = vmatprep.subr.mxu0 %v1546
      %1683 = vmatpush1.msra.mxu0 %v1545
      %1684 = vmatprep.subr.mxu0 %v1550
      %1685 = vmatpush1.msra.mxu0 %v1549
      %1686 = vmatprep.subr.mxu0 %v1554
      %1687 = vmatpush1.msra.mxu0 %v1553
      %1688 = vmatprep.subr.mxu0 %v1558
      %1689 = vmatpush1.msra.mxu0 %v1557
      %1690 = vmatprep.subr.mxu0 %v1562
      %1691 = vmatpush1.msra.mxu0 %v1561
      %1692 = vmatprep.subr.mxu0 0.0
      %1693 = vmatpush1.msra.mxu0 0.0
      %1694 = vmatprep.subr.mxu0 0.0
      %1695 = vmatpush1.msra.mxu0 0.0
      %1696 = vmatprep.subr.mxu0 0.0
      %1697 = vmatpush1.msra.mxu0 0.0
      %1698 = vmatprep.subr.mxu0 0.0
      %1699 = vmatpush1.msra.mxu0 0.0
      %1700 = vmatprep.subr.mxu0 0.0
      %1701 = vmatpush1.msra.mxu0 0.0
      %1702 = vmatprep.mubr.f32.mxu0 %v1565
      %1703 = vmatmul.mubr.f32.gmra.mrb[0].mxu0 %v1453
      %v1704 = vpop.f32.mrb[0].mxu0
      %v1705 = vadd.f32 0.0, %v1704
      %v1706 = vpop.f32.mrb[0].mxu0
      %v1707 = vadd.f32 0.0, %v1706
      %1708 = vdwg.mxu0
      %v1709 = vadd.f32 %v1634, %v1636
      %v1710 = vadd.f32 %v1709, %v1705
      %v1711 = vadd.f32 %v1710, %v1707
      %1712 = vadd.xlane.f32.xlu0 %v1711
      %v1713 = vpop.xlane.xlu0 %1712
      %v1714 = vrcp.pop 512.0
      %v1715 = vmul.f32 %v1713, %v1714
      %v1716 = vsub.f32 %v1634, %v1715
      %v1717 = vsub.f32 %v1636, %v1715
      %v1718 = vsub.f32 %v1705, %v1715
      %v1719 = vsub.f32 %v1707, %v1715
      %v1720 = vmul.f32 %v1716, %v1716
      %v1721 = vmul.f32 %v1717, %v1717
      %v1722 = vmul.f32 %v1718, %v1718
      %v1723 = vmul.f32 %v1719, %v1719
      %v1724 = vadd.f32 %v1720, %v1721
      %v1725 = vadd.f32 %v1724, %v1722
      %v1726 = vadd.f32 %v1725, %v1723
      %1727 = vadd.xlane.f32.xlu0 %v1726
      %v1728 = vpop.xlane.xlu0 %1727
      %v1729 = vmul.f32 %v1728, %v1714
      %v1730 = vadd.f32 %v1729, 1e-05
      %v1731 = vrsqrt.pop %v1730
      %v1732 = vmul.f32 %v1716, %v1731
      %v1733 = vmul.f32 %v1717, %v1731
      %v1734 = vmul.f32 %v1718, %v1731
      %v1735 = vmul.f32 %v1719, %v1731
      %v1736 = vmul.f32 %v1732, 0.01
      %v1737 = vmul.f32 %v1733, 0.01
      %v1738 = vmul.f32 %v1734, 0.01
      %v1739 = vmul.f32 %v1735, 0.01
      %v1740 = vmax.f32 %v1732, %v1736
      %v1741 = vmax.f32 %v1733, %v1737
      %v1742 = vmax.f32 %v1734, %v1738
      %v1743 = vmax.f32 %v1735, %v1739
      %1744 = vst [vmem:[#allocation2] sm:$0xff] 0.0
      %1745 = vst [vmem:[#allocation2 + $0x28] sm:$0xff] 0.0
      %1746 = vst [vmem:[#allocation2 + $0x8] sm:$0xff] %v1740
      %1747 = vst [vmem:[#allocation2 + $0x10] sm:$0xff] %v1741
      %1748 = vst [vmem:[#allocation2 + $0x18] sm:$0xff] %v1742
      %1749 = vst [vmem:[#allocation2 + $0x20] sm:$0xff] %v1743
      %v1750 = vld [vmem:[#allocation2] sm:$0xff]
      %v1751 = vld [vmem:[#allocation2 + $0x8] sm:$0xff]
      %v1752 = vld [vmem:[#allocation2 + $0x10] sm:$0xff]
      %v1753 = vld [vmem:[#allocation2 + $0x18] sm:$0xff]
      %v1754 = vld [vmem:[#allocation2 + $0x20] sm:$0xff]
      %v1755 = vld [vmem:[#allocation2 + $0x28] sm:$0xff]
      %v1756 = vmul.f32 %v1750, %v233
      %v1757 = vmul.f32 %v1751, %v241
      %v1758 = vmul.f32 %v1752, %v242
      %v1759 = vmul.f32 %v1753, %v243
      %v1760 = vmul.f32 %v1754, %v239
      %1766 = vrot.lane.b32.xlu0 %v1756, 73
      %v1767 = vpop.permute.xlu0 %1766
      %1768 = vrot.lane.b32.xlu0 %v1757, 73
      %v1769 = vpop.permute.xlu0 %1768
      %1770 = vrot.lane.b32.xlu0 %v1758, 73
      %v1771 = vpop.permute.xlu0 %1770
      %1772 = vrot.lane.b32.xlu0 %v1759, 73
      %v1773 = vpop.permute.xlu0 %1772
      %1774 = vrot.lane.b32.xlu0 %v1760, 73
      %v1775 = vpop.permute.xlu0 %1774
      %v1776 = vsel %vm269, %v1767, %v1769
      %v1777 = vsel %vm269, %v1769, %v1771
      %v1778 = vsel %vm269, %v1771, %v1773
      %v1779 = vsel %vm269, %v1773, %v1775
      %1784 = vst [vmem:[#allocation3] sm:$0xff] %v1776
      %1785 = vst [vmem:[#allocation3 + $0x8] sm:$0xff] %v1777
      %1786 = vst [vmem:[#allocation3 + $0x10] sm:$0xff] %v1778
      %1787 = vst [vmem:[#allocation3 + $0x18] sm:$0xff] %v1779
      %v1788 = vmul.f32 %v1750, %v303
      %v1789 = vmul.f32 %v1751, %v311
      %v1790 = vmul.f32 %v1752, %v312
      %v1791 = vmul.f32 %v1753, %v313
      %v1792 = vmul.f32 %v1754, %v309
      %1798 = vrot.lane.b32.xlu0 %v1788, 72
      %v1799 = vpop.permute.xlu0 %1798
      %1800 = vrot.lane.b32.xlu0 %v1789, 72
      %v1801 = vpop.permute.xlu0 %1800
      %1802 = vrot.lane.b32.xlu0 %v1790, 72
      %v1803 = vpop.permute.xlu0 %1802
      %1804 = vrot.lane.b32.xlu0 %v1791, 72
      %v1805 = vpop.permute.xlu0 %1804
      %1806 = vrot.lane.b32.xlu0 %v1792, 72
      %v1807 = vpop.permute.xlu0 %1806
      %v1808 = vsel %vm339, %v1799, %v1801
      %v1809 = vsel %vm339, %v1801, %v1803
      %v1810 = vsel %vm339, %v1803, %v1805
      %v1811 = vsel %vm339, %v1805, %v1807
      %1816 = vst [vmem:[#allocation3 + $0x20] sm:$0xff] %v1808
      %1817 = vst [vmem:[#allocation3 + $0x28] sm:$0xff] %v1809
      %1818 = vst [vmem:[#allocation3 + $0x30] sm:$0xff] %v1810
      %1819 = vst [vmem:[#allocation3 + $0x38] sm:$0xff] %v1811
      %v1820 = vmul.f32 %v1750, %v373
      %v1821 = vmul.f32 %v1751, %v381
      %v1822 = vmul.f32 %v1752, %v382
      %v1823 = vmul.f32 %v1753, %v383
      %v1824 = vmul.f32 %v1754, %v379
      %1830 = vrot.lane.b32.xlu0 %v1820, 71
      %v1831 = vpop.permute.xlu0 %1830
      %1832 = vrot.lane.b32.xlu0 %v1821, 71
      %v1833 = vpop.permute.xlu0 %1832
      %1834 = vrot.lane.b32.xlu0 %v1822, 71
      %v1835 = vpop.permute.xlu0 %1834
      %1836 = vrot.lane.b32.xlu0 %v1823, 71
      %v1837 = vpop.permute.xlu0 %1836
      %1838 = vrot.lane.b32.xlu0 %v1824, 71
      %v1839 = vpop.permute.xlu0 %1838
      %v1840 = vsel %vm409, %v1831, %v1833
      %v1841 = vsel %vm409, %v1833, %v1835
      %v1842 = vsel %vm409, %v1835, %v1837
      %v1843 = vsel %vm409, %v1837, %v1839
      %1848 = vst [vmem:[#allocation3 + $0x40] sm:$0xff] %v1840
      %1849 = vst [vmem:[#allocation3 + $0x48] sm:$0xff] %v1841
      %1850 = vst [vmem:[#allocation3 + $0x50] sm:$0xff] %v1842
      %1851 = vst [vmem:[#allocation3 + $0x58] sm:$0xff] %v1843
      %v1852 = vmul.f32 %v1750, %v443
      %v1853 = vmul.f32 %v1751, %v451
      %v1854 = vmul.f32 %v1752, %v452
      %v1855 = vmul.f32 %v1753, %v453
      %v1856 = vmul.f32 %v1754, %v449
      %1862 = vrot.lane.b32.xlu0 %v1852, 65
      %v1863 = vpop.permute.xlu0 %1862
      %1864 = vrot.lane.b32.xlu0 %v1853, 65
      %v1865 = vpop.permute.xlu0 %1864
      %1866 = vrot.lane.b32.xlu0 %v1854, 65
      %v1867 = vpop.permute.xlu0 %1866
      %1868 = vrot.lane.b32.xlu0 %v1855, 65
      %v1869 = vpop.permute.xlu0 %1868
      %1870 = vrot.lane.b32.xlu0 %v1856, 65
      %v1871 = vpop.permute.xlu0 %1870
      %v1872 = vsel %vm479, %v1863, %v1865
      %v1873 = vsel %vm479, %v1865, %v1867
      %v1874 = vsel %vm479, %v1867, %v1869
      %v1875 = vsel %vm479, %v1869, %v1871
      %1880 = vst [vmem:[#allocation3 + $0x60] sm:$0xff] %v1872
      %1881 = vst [vmem:[#allocation3 + $0x68] sm:$0xff] %v1873
      %1882 = vst [vmem:[#allocation3 + $0x70] sm:$0xff] %v1874
      %1883 = vst [vmem:[#allocation3 + $0x78] sm:$0xff] %v1875
      %1889 = vrot.lane.b32.xlu0 %v1750, 64
      %v1890 = vpop.permute.xlu0 %1889
      %1891 = vrot.lane.b32.xlu0 %v1751, 64
      %v1892 = vpop.permute.xlu0 %1891
      %1893 = vrot.lane.b32.xlu0 %v1752, 64
      %v1894 = vpop.permute.xlu0 %1893
      %1895 = vrot.lane.b32.xlu0 %v1753, 64
      %v1896 = vpop.permute.xlu0 %1895
      %1897 = vrot.lane.b32.xlu0 %v1754, 64
      %v1898 = vpop.permute.xlu0 %1897
      %v1899 = vsel %vm507, %v1890, %v1892
      %v1900 = vsel %vm507, %v1892, %v1894
      %v1901 = vsel %vm507, %v1894, %v1896
      %v1902 = vsel %vm507, %v1896, %v1898
      %1907 = vst [vmem:[#allocation3 + $0x80] sm:$0xff] %v1899
      %1908 = vst [vmem:[#allocation3 + $0x88] sm:$0xff] %v1900
      %1909 = vst [vmem:[#allocation3 + $0x90] sm:$0xff] %v1901
      %1910 = vst [vmem:[#allocation3 + $0x98] sm:$0xff] %v1902
      %v1911 = vmul.f32 %v1750, %v541
      %v1912 = vmul.f32 %v1751, %v548
      %v1913 = vmul.f32 %v1752, %v549
      %v1914 = vmul.f32 %v1753, %v550
      %v1915 = vmul.f32 %v1754, %v547
      %1921 = vrot.lane.b32.xlu0 %v1911, 63
      %v1922 = vpop.permute.xlu0 %1921
      %1923 = vrot.lane.b32.xlu0 %v1912, 63
      %v1924 = vpop.permute.xlu0 %1923
      %1925 = vrot.lane.b32.xlu0 %v1913, 63
      %v1926 = vpop.permute.xlu0 %1925
      %1927 = vrot.lane.b32.xlu0 %v1914, 63
      %v1928 = vpop.permute.xlu0 %1927
      %1929 = vrot.lane.b32.xlu0 %v1915, 63
      %v1930 = vpop.permute.xlu0 %1929
      %v1931 = vsel %vm450, %v1922, %v1924
      %v1932 = vsel %vm450, %v1924, %v1926
      %v1933 = vsel %vm450, %v1926, %v1928
      %v1934 = vsel %vm450, %v1928, %v1930
      %1939 = vst [vmem:[#allocation3 + $0xa0] sm:$0xff] %v1931
      %1940 = vst [vmem:[#allocation3 + $0xa8] sm:$0xff] %v1932
      %1941 = vst [vmem:[#allocation3 + $0xb0] sm:$0xff] %v1933
      %1942 = vst [vmem:[#allocation3 + $0xb8] sm:$0xff] %v1934
      %v1943 = vmul.f32 %v1750, %v609
      %v1944 = vmul.f32 %v1751, %v616
      %v1945 = vmul.f32 %v1752, %v617
      %v1946 = vmul.f32 %v1753, %v618
      %v1947 = vmul.f32 %v1754, %v615
      %1953 = vrot.lane.b32.xlu0 %v1943, 57
      %v1954 = vpop.permute.xlu0 %1953
      %1955 = vrot.lane.b32.xlu0 %v1944, 57
      %v1956 = vpop.permute.xlu0 %1955
      %1957 = vrot.lane.b32.xlu0 %v1945, 57
      %v1958 = vpop.permute.xlu0 %1957
      %1959 = vrot.lane.b32.xlu0 %v1946, 57
      %v1960 = vpop.permute.xlu0 %1959
      %1961 = vrot.lane.b32.xlu0 %v1947, 57
      %v1962 = vpop.permute.xlu0 %1961
      %v1963 = vsel %vm380, %v1954, %v1956
      %v1964 = vsel %vm380, %v1956, %v1958
      %v1965 = vsel %vm380, %v1958, %v1960
      %v1966 = vsel %vm380, %v1960, %v1962
      %1971 = vst [vmem:[#allocation3 + $0xc0] sm:$0xff] %v1963
      %1972 = vst [vmem:[#allocation3 + $0xc8] sm:$0xff] %v1964
      %1973 = vst [vmem:[#allocation3 + $0xd0] sm:$0xff] %v1965
      %1974 = vst [vmem:[#allocation3 + $0xd8] sm:$0xff] %v1966
      %v1975 = vmul.f32 %v1750, %v677
      %v1976 = vmul.f32 %v1751, %v684
      %v1977 = vmul.f32 %v1752, %v685
      %v1978 = vmul.f32 %v1753, %v686
      %v1979 = vmul.f32 %v1754, %v683
      %1985 = vrot.lane.b32.xlu0 %v1975, 56
      %v1986 = vpop.permute.xlu0 %1985
      %1987 = vrot.lane.b32.xlu0 %v1976, 56
      %v1988 = vpop.permute.xlu0 %1987
      %1989 = vrot.lane.b32.xlu0 %v1977, 56
      %v1990 = vpop.permute.xlu0 %1989
      %1991 = vrot.lane.b32.xlu0 %v1978, 56
      %v1992 = vpop.permute.xlu0 %1991
      %1993 = vrot.lane.b32.xlu0 %v1979, 56
      %v1994 = vpop.permute.xlu0 %1993
      %v1995 = vsel %vm310, %v1986, %v1988
      %v1996 = vsel %vm310, %v1988, %v1990
      %v1997 = vsel %vm310, %v1990, %v1992
      %v1998 = vsel %vm310, %v1992, %v1994
      %2003 = vst [vmem:[#allocation3 + $0xe0] sm:$0xff] %v1995
      %2004 = vst [vmem:[#allocation3 + $0xe8] sm:$0xff] %v1996
      %2005 = vst [vmem:[#allocation3 + $0xf0] sm:$0xff] %v1997
      %2006 = vst [vmem:[#allocation3 + $0xf8] sm:$0xff] %v1998
      %v2007 = vmul.f32 %v1750, %v745
      %v2008 = vmul.f32 %v1751, %v752
      %v2009 = vmul.f32 %v1752, %v753
      %v2010 = vmul.f32 %v1753, %v754
      %v2011 = vmul.f32 %v1754, %v751
      %2017 = vrot.lane.b32.xlu0 %v2007, 55
      %v2018 = vpop.permute.xlu0 %2017
      %2019 = vrot.lane.b32.xlu0 %v2008, 55
      %v2020 = vpop.permute.xlu0 %2019
      %2021 = vrot.lane.b32.xlu0 %v2009, 55
      %v2022 = vpop.permute.xlu0 %2021
      %2023 = vrot.lane.b32.xlu0 %v2010, 55
      %v2024 = vpop.permute.xlu0 %2023
      %2025 = vrot.lane.b32.xlu0 %v2011, 55
      %v2026 = vpop.permute.xlu0 %2025
      %v2027 = vsel %vm240, %v2018, %v2020
      %v2028 = vsel %vm240, %v2020, %v2022
      %v2029 = vsel %vm240, %v2022, %v2024
      %v2030 = vsel %vm240, %v2024, %v2026
      %2035 = vst [vmem:[#allocation3 + $0x100] sm:$0xff] %v2027
      %2036 = vst [vmem:[#allocation3 + $0x108] sm:$0xff] %v2028
      %2037 = vst [vmem:[#allocation3 + $0x110] sm:$0xff] %v2029
      %2038 = vst [vmem:[#allocation3 + $0x118] sm:$0xff] %v2030
      %v2039 = vmul.f32 %v1750, %v793
      %v2040 = vmul.f32 %v1751, %v801
      %v2041 = vmul.f32 %v1752, %v802
      %v2042 = vmul.f32 %v1753, %v803
      %v2043 = vmul.f32 %v1754, %v799
      %2049 = vrot.lane.b32.xlu0 %v2039, 9
      %v2050 = vpop.permute.xlu0 %2049
      %2051 = vrot.lane.b32.xlu0 %v2040, 9
      %v2052 = vpop.permute.xlu0 %2051
      %2053 = vrot.lane.b32.xlu0 %v2041, 9
      %v2054 = vpop.permute.xlu0 %2053
      %2055 = vrot.lane.b32.xlu0 %v2042, 9
      %v2056 = vpop.permute.xlu0 %2055
      %2057 = vrot.lane.b32.xlu0 %v2043, 9
      %v2058 = vpop.permute.xlu0 %2057
      %v2059 = vsel %vm829, %v2050, %v2052
      %v2060 = vsel %vm829, %v2052, %v2054
      %v2061 = vsel %vm829, %v2054, %v2056
      %v2062 = vsel %vm829, %v2056, %v2058
      %2067 = vst [vmem:[#allocation3 + $0x120] sm:$0xff] %v2059
      %2068 = vst [vmem:[#allocation3 + $0x128] sm:$0xff] %v2060
      %2069 = vst [vmem:[#allocation3 + $0x130] sm:$0xff] %v2061
      %2070 = vst [vmem:[#allocation3 + $0x138] sm:$0xff] %v2062
      %v2071 = vmul.f32 %v1750, %v843
      %v2072 = vmul.f32 %v1751, %v851
      %v2073 = vmul.f32 %v1752, %v852
      %v2074 = vmul.f32 %v1753, %v853
      %v2075 = vmul.f32 %v1754, %v849
      %2081 = vrot.lane.b32.xlu0 %v2071, 8
      %v2082 = vpop.permute.xlu0 %2081
      %2083 = vrot.lane.b32.xlu0 %v2072, 8
      %v2084 = vpop.permute.xlu0 %2083
      %2085 = vrot.lane.b32.xlu0 %v2073, 8
      %v2086 = vpop.permute.xlu0 %2085
      %2087 = vrot.lane.b32.xlu0 %v2074, 8
      %v2088 = vpop.permute.xlu0 %2087
      %2089 = vrot.lane.b32.xlu0 %v2075, 8
      %v2090 = vpop.permute.xlu0 %2089
      %v2091 = vsel %vm879, %v2082, %v2084
      %v2092 = vsel %vm879, %v2084, %v2086
      %v2093 = vsel %vm879, %v2086, %v2088
      %v2094 = vsel %vm879, %v2088, %v2090
      %2099 = vst [vmem:[#allocation3 + $0x140] sm:$0xff] %v2091
      %2100 = vst [vmem:[#allocation3 + $0x148] sm:$0xff] %v2092
      %2101 = vst [vmem:[#allocation3 + $0x150] sm:$0xff] %v2093
      %2102 = vst [vmem:[#allocation3 + $0x158] sm:$0xff] %v2094
      %v2103 = vmul.f32 %v1750, %v893
      %v2104 = vmul.f32 %v1751, %v901
      %v2105 = vmul.f32 %v1752, %v902
      %v2106 = vmul.f32 %v1753, %v903
      %v2107 = vmul.f32 %v1754, %v899
      %2113 = vrot.lane.b32.xlu0 %v2103, 7
      %v2114 = vpop.permute.xlu0 %2113
      %2115 = vrot.lane.b32.xlu0 %v2104, 7
      %v2116 = vpop.permute.xlu0 %2115
      %2117 = vrot.lane.b32.xlu0 %v2105, 7
      %v2118 = vpop.permute.xlu0 %2117
      %2119 = vrot.lane.b32.xlu0 %v2106, 7
      %v2120 = vpop.permute.xlu0 %2119
      %2121 = vrot.lane.b32.xlu0 %v2107, 7
      %v2122 = vpop.permute.xlu0 %2121
      %v2123 = vsel %vm929, %v2114, %v2116
      %v2124 = vsel %vm929, %v2116, %v2118
      %v2125 = vsel %vm929, %v2118, %v2120
      %v2126 = vsel %vm929, %v2120, %v2122
      %2131 = vst [vmem:[#allocation3 + $0x160] sm:$0xff] %v2123
      %2132 = vst [vmem:[#allocation3 + $0x168] sm:$0xff] %v2124
      %2133 = vst [vmem:[#allocation3 + $0x170] sm:$0xff] %v2125
      %2134 = vst [vmem:[#allocation3 + $0x178] sm:$0xff] %v2126
      %v2135 = vmul.f32 %v1750, %v943
      %v2136 = vmul.f32 %v1751, %v951
      %v2137 = vmul.f32 %v1752, %v952
      %v2138 = vmul.f32 %v1753, %v953
      %v2139 = vmul.f32 %v1754, %v949
      %2145 = vrot.lane.b32.xlu0 %v2135, 1
      %v2146 = vpop.permute.xlu0 %2145
      %2147 = vrot.lane.b32.xlu0 %v2136, 1
      %v2148 = vpop.permute.xlu0 %2147
      %2149 = vrot.lane.b32.xlu0 %v2137, 1
      %v2150 = vpop.permute.xlu0 %2149
      %2151 = vrot.lane.b32.xlu0 %v2138, 1
      %v2152 = vpop.permute.xlu0 %2151
      %2153 = vrot.lane.b32.xlu0 %v2139, 1
      %v2154 = vpop.permute.xlu0 %2153
      %v2155 = vsel %vm979, %v2146, %v2148
      %v2156 = vsel %vm979, %v2148, %v2150
      %v2157 = vsel %vm979, %v2150, %v2152
      %v2158 = vsel %vm979, %v2152, %v2154
      %2163 = vst [vmem:[#allocation3 + $0x180] sm:$0xff] %v2155
      %2164 = vst [vmem:[#allocation3 + $0x188] sm:$0xff] %v2156
      %2165 = vst [vmem:[#allocation3 + $0x190] sm:$0xff] %v2157
      %2166 = vst [vmem:[#allocation3 + $0x198] sm:$0xff] %v2158
      %2167 = vst [vmem:[#allocation3 + $0x1a0] sm:$0xff] %v1751
      %2168 = vst [vmem:[#allocation3 + $0x1a8] sm:$0xff] %v1752
      %2169 = vst [vmem:[#allocation3 + $0x1b0] sm:$0xff] %v1753
      %2170 = vst [vmem:[#allocation3 + $0x1b8] sm:$0xff] %v1754
      %v2171 = vmul.f32 %v1751, %v997
      %v2172 = vmul.f32 %v1752, %v1004
      %v2173 = vmul.f32 %v1753, %v1005
      %v2174 = vmul.f32 %v1754, %v1006
      %v2175 = vmul.f32 %v1755, %v1003
      %2181 = vrot.lane.b32.xlu0 %v2171, 127
      %v2182 = vpop.permute.xlu0 %2181
      %2183 = vrot.lane.b32.xlu0 %v2172, 127
      %v2184 = vpop.permute.xlu0 %2183
      %2185 = vrot.lane.b32.xlu0 %v2173, 127
      %v2186 = vpop.permute.xlu0 %2185
      %2187 = vrot.lane.b32.xlu0 %v2174, 127
      %v2188 = vpop.permute.xlu0 %2187
      %2189 = vrot.lane.b32.xlu0 %v2175, 127
      %v2190 = vpop.permute.xlu0 %2189
      %v2191 = vsel %vm950, %v2182, %v2184
      %v2192 = vsel %vm950, %v2184, %v2186
      %v2193 = vsel %vm950, %v2186, %v2188
      %v2194 = vsel %vm950, %v2188, %v2190
      %2199 = vst [vmem:[#allocation3 + $0x1c0] sm:$0xff] %v2191
      %2200 = vst [vmem:[#allocation3 + $0x1c8] sm:$0xff] %v2192
      %2201 = vst [vmem:[#allocation3 + $0x1d0] sm:$0xff] %v2193
      %2202 = vst [vmem:[#allocation3 + $0x1d8] sm:$0xff] %v2194
      %v2203 = vmul.f32 %v1751, %v1045
      %v2204 = vmul.f32 %v1752, %v1052
      %v2205 = vmul.f32 %v1753, %v1053
      %v2206 = vmul.f32 %v1754, %v1054
      %v2207 = vmul.f32 %v1755, %v1051
      %2213 = vrot.lane.b32.xlu0 %v2203, 121
      %v2214 = vpop.permute.xlu0 %2213
      %2215 = vrot.lane.b32.xlu0 %v2204, 121
      %v2216 = vpop.permute.xlu0 %2215
      %2217 = vrot.lane.b32.xlu0 %v2205, 121
      %v2218 = vpop.permute.xlu0 %2217
      %2219 = vrot.lane.b32.xlu0 %v2206, 121
      %v2220 = vpop.permute.xlu0 %2219
      %2221 = vrot.lane.b32.xlu0 %v2207, 121
      %v2222 = vpop.permute.xlu0 %2221
      %v2223 = vsel %vm900, %v2214, %v2216
      %v2224 = vsel %vm900, %v2216, %v2218
      %v2225 = vsel %vm900, %v2218, %v2220
      %v2226 = vsel %vm900, %v2220, %v2222
      %2231 = vst [vmem:[#allocation3 + $0x1e0] sm:$0xff] %v2223
      %2232 = vst [vmem:[#allocation3 + $0x1e8] sm:$0xff] %v2224
      %2233 = vst [vmem:[#allocation3 + $0x1f0] sm:$0xff] %v2225
      %2234 = vst [vmem:[#allocation3 + $0x1f8] sm:$0xff] %v2226
      %v2235 = vmul.f32 %v1751, %v1093
      %v2236 = vmul.f32 %v1752, %v1100
      %v2237 = vmul.f32 %v1753, %v1101
      %v2238 = vmul.f32 %v1754, %v1102
      %v2239 = vmul.f32 %v1755, %v1099
      %2245 = vrot.lane.b32.xlu0 %v2235, 120
      %v2246 = vpop.permute.xlu0 %2245
      %2247 = vrot.lane.b32.xlu0 %v2236, 120
      %v2248 = vpop.permute.xlu0 %2247
      %2249 = vrot.lane.b32.xlu0 %v2237, 120
      %v2250 = vpop.permute.xlu0 %2249
      %2251 = vrot.lane.b32.xlu0 %v2238, 120
      %v2252 = vpop.permute.xlu0 %2251
      %2253 = vrot.lane.b32.xlu0 %v2239, 120
      %v2254 = vpop.permute.xlu0 %2253
      %v2255 = vsel %vm850, %v2246, %v2248
      %v2256 = vsel %vm850, %v2248, %v2250
      %v2257 = vsel %vm850, %v2250, %v2252
      %v2258 = vsel %vm850, %v2252, %v2254
      %2263 = vst [vmem:[#allocation3 + $0x200] sm:$0xff] %v2255
      %2264 = vst [vmem:[#allocation3 + $0x208] sm:$0xff] %v2256
      %2265 = vst [vmem:[#allocation3 + $0x210] sm:$0xff] %v2257
      %2266 = vst [vmem:[#allocation3 + $0x218] sm:$0xff] %v2258
      %v2267 = vmul.f32 %v1751, %v1141
      %v2268 = vmul.f32 %v1752, %v1148
      %v2269 = vmul.f32 %v1753, %v1149
      %v2270 = vmul.f32 %v1754, %v1150
      %v2271 = vmul.f32 %v1755, %v1147
      %2277 = vrot.lane.b32.xlu0 %v2267, 119
      %v2278 = vpop.permute.xlu0 %2277
      %2279 = vrot.lane.b32.xlu0 %v2268, 119
      %v2280 = vpop.permute.xlu0 %2279
      %2281 = vrot.lane.b32.xlu0 %v2269, 119
      %v2282 = vpop.permute.xlu0 %2281
      %2283 = vrot.lane.b32.xlu0 %v2270, 119
      %v2284 = vpop.permute.xlu0 %2283
      %2285 = vrot.lane.b32.xlu0 %v2271, 119
      %v2286 = vpop.permute.xlu0 %2285
      %v2287 = vsel %vm800, %v2278, %v2280
      %v2288 = vsel %vm800, %v2280, %v2282
      %v2289 = vsel %vm800, %v2282, %v2284
      %v2290 = vsel %vm800, %v2284, %v2286
      %2295 = vst [vmem:[#allocation3 + $0x220] sm:$0xff] %v2287
      %2296 = vst [vmem:[#allocation3 + $0x228] sm:$0xff] %v2288
      %2297 = vst [vmem:[#allocation3 + $0x230] sm:$0xff] %v2289
      %2298 = vst [vmem:[#allocation3 + $0x238] sm:$0xff] %v2290
      %v2299 = vmul.f32 %v1751, %v233
      %v2300 = vmul.f32 %v1752, %v241
      %v2301 = vmul.f32 %v1753, %v242
      %v2302 = vmul.f32 %v1754, %v243
      %v2303 = vmul.f32 %v1755, %v239
      %2309 = vrot.lane.b32.xlu0 %v2299, 73
      %v2310 = vpop.permute.xlu0 %2309
      %2311 = vrot.lane.b32.xlu0 %v2300, 73
      %v2312 = vpop.permute.xlu0 %2311
      %2313 = vrot.lane.b32.xlu0 %v2301, 73
      %v2314 = vpop.permute.xlu0 %2313
      %2315 = vrot.lane.b32.xlu0 %v2302, 73
      %v2316 = vpop.permute.xlu0 %2315
      %2317 = vrot.lane.b32.xlu0 %v2303, 73
      %v2318 = vpop.permute.xlu0 %2317
      %v2319 = vsel %vm269, %v2310, %v2312
      %v2320 = vsel %vm269, %v2312, %v2314
      %v2321 = vsel %vm269, %v2314, %v2316
      %v2322 = vsel %vm269, %v2316, %v2318
      %2327 = vst [vmem:[#allocation3 + $0x240] sm:$0xff] %v2319
      %2328 = vst [vmem:[#allocation3 + $0x248] sm:$0xff] %v2320
      %2329 = vst [vmem:[#allocation3 + $0x250] sm:$0xff] %v2321
      %2330 = vst [vmem:[#allocation3 + $0x258] sm:$0xff] %v2322
      %v2331 = vmul.f32 %v1751, %v303
      %v2332 = vmul.f32 %v1752, %v311
      %v2333 = vmul.f32 %v1753, %v312
      %v2334 = vmul.f32 %v1754, %v313
      %v2335 = vmul.f32 %v1755, %v309
      %2341 = vrot.lane.b32.xlu0 %v2331, 72
      %v2342 = vpop.permute.xlu0 %2341
      %2343 = vrot.lane.b32.xlu0 %v2332, 72
      %v2344 = vpop.permute.xlu0 %2343
      %2345 = vrot.lane.b32.xlu0 %v2333, 72
      %v2346 = vpop.permute.xlu0 %2345
      %2347 = vrot.lane.b32.xlu0 %v2334, 72
      %v2348 = vpop.permute.xlu0 %2347
      %2349 = vrot.lane.b32.xlu0 %v2335, 72
      %v2350 = vpop.permute.xlu0 %2349
      %v2351 = vsel %vm339, %v2342, %v2344
      %v2352 = vsel %vm339, %v2344, %v2346
      %v2353 = vsel %vm339, %v2346, %v2348
      %v2354 = vsel %vm339, %v2348, %v2350
      %2359 = vst [vmem:[#allocation3 + $0x260] sm:$0xff] %v2351
      %2360 = vst [vmem:[#allocation3 + $0x268] sm:$0xff] %v2352
      %2361 = vst [vmem:[#allocation3 + $0x270] sm:$0xff] %v2353
      %2362 = vst [vmem:[#allocation3 + $0x278] sm:$0xff] %v2354
      %v2363 = vmul.f32 %v1751, %v373
      %v2364 = vmul.f32 %v1752, %v381
      %v2365 = vmul.f32 %v1753, %v382
      %v2366 = vmul.f32 %v1754, %v383
      %v2367 = vmul.f32 %v1755, %v379
      %2373 = vrot.lane.b32.xlu0 %v2363, 71
      %v2374 = vpop.permute.xlu0 %2373
      %2375 = vrot.lane.b32.xlu0 %v2364, 71
      %v2376 = vpop.permute.xlu0 %2375
      %2377 = vrot.lane.b32.xlu0 %v2365, 71
      %v2378 = vpop.permute.xlu0 %2377
      %2379 = vrot.lane.b32.xlu0 %v2366, 71
      %v2380 = vpop.permute.xlu0 %2379
      %2381 = vrot.lane.b32.xlu0 %v2367, 71
      %v2382 = vpop.permute.xlu0 %2381
      %v2383 = vsel %vm409, %v2374, %v2376
      %v2384 = vsel %vm409, %v2376, %v2378
      %v2385 = vsel %vm409, %v2378, %v2380
      %v2386 = vsel %vm409, %v2380, %v2382
      %2391 = vst [vmem:[#allocation3 + $0x280] sm:$0xff] %v2383
      %2392 = vst [vmem:[#allocation3 + $0x288] sm:$0xff] %v2384
      %2393 = vst [vmem:[#allocation3 + $0x290] sm:$0xff] %v2385
      %2394 = vst [vmem:[#allocation3 + $0x298] sm:$0xff] %v2386
      %v2395 = vmul.f32 %v1751, %v443
      %v2396 = vmul.f32 %v1752, %v451
      %v2397 = vmul.f32 %v1753, %v452
      %v2398 = vmul.f32 %v1754, %v453
      %v2399 = vmul.f32 %v1755, %v449
      %2405 = vrot.lane.b32.xlu0 %v2395, 65
      %v2406 = vpop.permute.xlu0 %2405
      %2407 = vrot.lane.b32.xlu0 %v2396, 65
      %v2408 = vpop.permute.xlu0 %2407
      %2409 = vrot.lane.b32.xlu0 %v2397, 65
      %v2410 = vpop.permute.xlu0 %2409
      %2411 = vrot.lane.b32.xlu0 %v2398, 65
      %v2412 = vpop.permute.xlu0 %2411
      %2413 = vrot.lane.b32.xlu0 %v2399, 65
      %v2414 = vpop.permute.xlu0 %2413
      %v2415 = vsel %vm479, %v2406, %v2408
      %v2416 = vsel %vm479, %v2408, %v2410
      %v2417 = vsel %vm479, %v2410, %v2412
      %v2418 = vsel %vm479, %v2412, %v2414
      %2423 = vst [vmem:[#allocation3 + $0x2a0] sm:$0xff] %v2415
      %2424 = vst [vmem:[#allocation3 + $0x2a8] sm:$0xff] %v2416
      %2425 = vst [vmem:[#allocation3 + $0x2b0] sm:$0xff] %v2417
      %2426 = vst [vmem:[#allocation3 + $0x2b8] sm:$0xff] %v2418
      %2428 = vrot.lane.b32.xlu0 %v1755, 64
      %v2429 = vpop.permute.xlu0 %2428
      %v2430 = vsel %vm507, %v1898, %v2429
      %2432 = vst [vmem:[#allocation3 + $0x2c0] sm:$0xff] %v1900
      %2433 = vst [vmem:[#allocation3 + $0x2c8] sm:$0xff] %v1901
      %2434 = vst [vmem:[#allocation3 + $0x2d0] sm:$0xff] %v1902
      %2435 = vst [vmem:[#allocation3 + $0x2d8] sm:$0xff] %v2430
      %v2436 = vmul.f32 %v1751, %v541
      %v2437 = vmul.f32 %v1752, %v548
      %v2438 = vmul.f32 %v1753, %v549
      %v2439 = vmul.f32 %v1754, %v550
      %v2440 = vmul.f32 %v1755, %v547
      %2446 = vrot.lane.b32.xlu0 %v2436, 63
      %v2447 = vpop.permute.xlu0 %2446
      %2448 = vrot.lane.b32.xlu0 %v2437, 63
      %v2449 = vpop.permute.xlu0 %2448
      %2450 = vrot.lane.b32.xlu0 %v2438, 63
      %v2451 = vpop.permute.xlu0 %2450
      %2452 = vrot.lane.b32.xlu0 %v2439, 63
      %v2453 = vpop.permute.xlu0 %2452
      %2454 = vrot.lane.b32.xlu0 %v2440, 63
      %v2455 = vpop.permute.xlu0 %2454
      %v2456 = vsel %vm450, %v2447, %v2449
      %v2457 = vsel %vm450, %v2449, %v2451
      %v2458 = vsel %vm450, %v2451, %v2453
      %v2459 = vsel %vm450, %v2453, %v2455
      %2464 = vst [vmem:[#allocation3 + $0x2e0] sm:$0xff] %v2456
      %2465 = vst [vmem:[#allocation3 + $0x2e8] sm:$0xff] %v2457
      %2466 = vst [vmem:[#allocation3 + $0x2f0] sm:$0xff] %v2458
      %2467 = vst [vmem:[#allocation3 + $0x2f8] sm:$0xff] %v2459
      %v2468 = vmul.f32 %v1751, %v609
      %v2469 = vmul.f32 %v1752, %v616
      %v2470 = vmul.f32 %v1753, %v617
      %v2471 = vmul.f32 %v1754, %v618
      %v2472 = vmul.f32 %v1755, %v615
      %2478 = vrot.lane.b32.xlu0 %v2468, 57
      %v2479 = vpop.permute.xlu0 %2478
      %2480 = vrot.lane.b32.xlu0 %v2469, 57
      %v2481 = vpop.permute.xlu0 %2480
      %2482 = vrot.lane.b32.xlu0 %v2470, 57
      %v2483 = vpop.permute.xlu0 %2482
      %2484 = vrot.lane.b32.xlu0 %v2471, 57
      %v2485 = vpop.permute.xlu0 %2484
      %2486 = vrot.lane.b32.xlu0 %v2472, 57
      %v2487 = vpop.permute.xlu0 %2486
      %v2488 = vsel %vm380, %v2479, %v2481
      %v2489 = vsel %vm380, %v2481, %v2483
      %v2490 = vsel %vm380, %v2483, %v2485
      %v2491 = vsel %vm380, %v2485, %v2487
      %2496 = vst [vmem:[#allocation3 + $0x300] sm:$0xff] %v2488
      %2497 = vst [vmem:[#allocation3 + $0x308] sm:$0xff] %v2489
      %2498 = vst [vmem:[#allocation3 + $0x310] sm:$0xff] %v2490
      %2499 = vst [vmem:[#allocation3 + $0x318] sm:$0xff] %v2491
      %v2500 = vmul.f32 %v1751, %v677
      %v2501 = vmul.f32 %v1752, %v684
      %v2502 = vmul.f32 %v1753, %v685
      %v2503 = vmul.f32 %v1754, %v686
      %v2504 = vmul.f32 %v1755, %v683
      %2510 = vrot.lane.b32.xlu0 %v2500, 56
      %v2511 = vpop.permute.xlu0 %2510
      %2512 = vrot.lane.b32.xlu0 %v2501, 56
      %v2513 = vpop.permute.xlu0 %2512
      %2514 = vrot.lane.b32.xlu0 %v2502, 56
      %v2515 = vpop.permute.xlu0 %2514
      %2516 = vrot.lane.b32.xlu0 %v2503, 56
      %v2517 = vpop.permute.xlu0 %2516
      %2518 = vrot.lane.b32.xlu0 %v2504, 56
      %v2519 = vpop.permute.xlu0 %2518
      %v2520 = vsel %vm310, %v2511, %v2513
      %v2521 = vsel %vm310, %v2513, %v2515
      %v2522 = vsel %vm310, %v2515, %v2517
      %v2523 = vsel %vm310, %v2517, %v2519
      %2528 = vst [vmem:[#allocation3 + $0x320] sm:$0xff] %v2520
      %2529 = vst [vmem:[#allocation3 + $0x328] sm:$0xff] %v2521
      %2530 = vst [vmem:[#allocation3 + $0x330] sm:$0xff] %v2522
      %2531 = vst [vmem:[#allocation3 + $0x338] sm:$0xff] %v2523
      %v2532 = vmul.f32 %v1751, %v745
      %v2533 = vmul.f32 %v1752, %v752
      %v2534 = vmul.f32 %v1753, %v753
      %v2535 = vmul.f32 %v1754, %v754
      %v2536 = vmul.f32 %v1755, %v751
      %2542 = vrot.lane.b32.xlu0 %v2532, 55
      %v2543 = vpop.permute.xlu0 %2542
      %2544 = vrot.lane.b32.xlu0 %v2533, 55
      %v2545 = vpop.permute.xlu0 %2544
      %2546 = vrot.lane.b32.xlu0 %v2534, 55
      %v2547 = vpop.permute.xlu0 %2546
      %2548 = vrot.lane.b32.xlu0 %v2535, 55
      %v2549 = vpop.permute.xlu0 %2548
      %2550 = vrot.lane.b32.xlu0 %v2536, 55
      %v2551 = vpop.permute.xlu0 %2550
      %v2552 = vsel %vm240, %v2543, %v2545
      %v2553 = vsel %vm240, %v2545, %v2547
      %v2554 = vsel %vm240, %v2547, %v2549
      %v2555 = vsel %vm240, %v2549, %v2551
      %2560 = vst [vmem:[#allocation3 + $0x340] sm:$0xff] %v2552
      %2561 = vst [vmem:[#allocation3 + $0x348] sm:$0xff] %v2553
      %2562 = vst [vmem:[#allocation3 + $0x350] sm:$0xff] %v2554
      %2563 = vst [vmem:[#allocation3 + $0x358] sm:$0xff] %v2555
      %v2564 = vld [vmem:[%s3] sm:$0xff]
      %v2565 = vld [vmem:[%s3 + $0x8] sm:$0xff]
      %v2566 = vld [vmem:[#allocation3] sm:$0xff]
      %v2567 = vld [vmem:[#allocation3 + $0x8] sm:$0xff]
      %v2568 = vld [vmem:[#allocation3 + $0x10] sm:$0xff]
      %v2569 = vld [vmem:[#allocation3 + $0x18] sm:$0xff]
      %v2570 = vld [vmem:[#allocation3 + $0x20] sm:$0xff]
      %v2571 = vld [vmem:[#allocation3 + $0x28] sm:$0xff]
      %v2572 = vld [vmem:[#allocation3 + $0x30] sm:$0xff]
      %v2573 = vld [vmem:[#allocation3 + $0x38] sm:$0xff]
      %v2574 = vld [vmem:[#allocation3 + $0x40] sm:$0xff]
      %v2575 = vld [vmem:[#allocation3 + $0x48] sm:$0xff]
      %v2576 = vld [vmem:[#allocation3 + $0x50] sm:$0xff]
      %v2577 = vld [vmem:[#allocation3 + $0x58] sm:$0xff]
      %v2578 = vld [vmem:[#allocation3 + $0x60] sm:$0xff]
      %v2579 = vld [vmem:[#allocation3 + $0x68] sm:$0xff]
      %v2580 = vld [vmem:[#allocation3 + $0x70] sm:$0xff]
      %v2581 = vld [vmem:[#allocation3 + $0x78] sm:$0xff]
      %v2582 = vld [vmem:[#allocation3 + $0x80] sm:$0xff]
      %v2583 = vld [vmem:[#allocation3 + $0x88] sm:$0xff]
      %v2584 = vld [vmem:[#allocation3 + $0x90] sm:$0xff]
      %v2585 = vld [vmem:[#allocation3 + $0x98] sm:$0xff]
      %v2586 = vld [vmem:[#allocation3 + $0xa0] sm:$0xff]
      %v2587 = vld [vmem:[#allocation3 + $0xa8] sm:$0xff]
      %v2588 = vld [vmem:[#allocation3 + $0xb0] sm:$0xff]
      %v2589 = vld [vmem:[#allocation3 + $0xb8] sm:$0xff]
      %v2590 = vld [vmem:[#allocation3 + $0xc0] sm:$0xff]
      %v2591 = vld [vmem:[#allocation3 + $0xc8] sm:$0xff]
      %v2592 = vld [vmem:[#allocation3 + $0xd0] sm:$0xff]
      %v2593 = vld [vmem:[#allocation3 + $0xd8] sm:$0xff]
      %v2594 = vld [vmem:[#allocation3 + $0xe0] sm:$0xff]
      %v2595 = vld [vmem:[#allocation3 + $0xe8] sm:$0xff]
      %v2596 = vld [vmem:[#allocation3 + $0xf0] sm:$0xff]
      %v2597 = vld [vmem:[#allocation3 + $0xf8] sm:$0xff]
      %v2598 = vld [vmem:[#allocation3 + $0x100] sm:$0xff]
      %v2599 = vld [vmem:[#allocation3 + $0x108] sm:$0xff]
      %v2600 = vld [vmem:[#allocation3 + $0x110] sm:$0xff]
      %v2601 = vld [vmem:[#allocation3 + $0x118] sm:$0xff]
      %v2602 = vld [vmem:[#allocation3 + $0x120] sm:$0xff]
      %v2603 = vld [vmem:[#allocation3 + $0x128] sm:$0xff]
      %v2604 = vld [vmem:[#allocation3 + $0x130] sm:$0xff]
      %v2605 = vld [vmem:[#allocation3 + $0x138] sm:$0xff]
      %v2606 = vld [vmem:[#allocation3 + $0x140] sm:$0xff]
      %v2607 = vld [vmem:[#allocation3 + $0x148] sm:$0xff]
      %v2608 = vld [vmem:[#allocation3 + $0x150] sm:$0xff]
      %v2609 = vld [vmem:[#allocation3 + $0x158] sm:$0xff]
      %v2610 = vld [vmem:[#allocation3 + $0x160] sm:$0xff]
      %v2611 = vld [vmem:[#allocation3 + $0x168] sm:$0xff]
      %v2612 = vld [vmem:[#allocation3 + $0x170] sm:$0xff]
      %v2613 = vld [vmem:[#allocation3 + $0x178] sm:$0xff]
      %v2614 = vld [vmem:[#allocation3 + $0x180] sm:$0xff]
      %v2615 = vld [vmem:[#allocation3 + $0x188] sm:$0xff]
      %v2616 = vld [vmem:[#allocation3 + $0x190] sm:$0xff]
      %v2617 = vld [vmem:[#allocation3 + $0x198] sm:$0xff]
      %v2618 = vld [vmem:[#allocation3 + $0x1a0] sm:$0xff]
      %v2619 = vld [vmem:[#allocation3 + $0x1a8] sm:$0xff]
      %v2620 = vld [vmem:[#allocation3 + $0x1b0] sm:$0xff]
      %v2621 = vld [vmem:[#allocation3 + $0x1b8] sm:$0xff]
      %v2622 = vld [vmem:[#allocation3 + $0x1c0] sm:$0xff]
      %v2623 = vld [vmem:[#allocation3 + $0x1c8] sm:$0xff]
      %v2624 = vld [vmem:[#allocation3 + $0x1d0] sm:$0xff]
      %v2625 = vld [vmem:[#allocation3 + $0x1d8] sm:$0xff]
      %v2626 = vld [vmem:[#allocation3 + $0x1e0] sm:$0xff]
      %v2627 = vld [vmem:[#allocation3 + $0x1e8] sm:$0xff]
      %v2628 = vld [vmem:[#allocation3 + $0x1f0] sm:$0xff]
      %v2629 = vld [vmem:[#allocation3 + $0x1f8] sm:$0xff]
      %v2630 = vld [vmem:[#allocation3 + $0x200] sm:$0xff]
      %v2631 = vld [vmem:[#allocation3 + $0x208] sm:$0xff]
      %v2632 = vld [vmem:[#allocation3 + $0x210] sm:$0xff]
      %v2633 = vld [vmem:[#allocation3 + $0x218] sm:$0xff]
      %v2634 = vld [vmem:[#allocation3 + $0x220] sm:$0xff]
      %v2635 = vld [vmem:[#allocation3 + $0x228] sm:$0xff]
      %v2636 = vld [vmem:[#allocation3 + $0x230] sm:$0xff]
      %v2637 = vld [vmem:[#allocation3 + $0x238] sm:$0xff]
      %v2638 = vld [vmem:[#allocation3 + $0x240] sm:$0xff]
      %v2639 = vld [vmem:[#allocation3 + $0x248] sm:$0xff]
      %v2640 = vld [vmem:[#allocation3 + $0x250] sm:$0xff]
      %v2641 = vld [vmem:[#allocation3 + $0x258] sm:$0xff]
      %v2642 = vld [vmem:[#allocation3 + $0x260] sm:$0xff]
      %v2643 = vld [vmem:[#allocation3 + $0x268] sm:$0xff]
      %v2644 = vld [vmem:[#allocation3 + $0x270] sm:$0xff]
      %v2645 = vld [vmem:[#allocation3 + $0x278] sm:$0xff]
      %v2646 = vld [vmem:[#allocation3 + $0x280] sm:$0xff]
      %v2647 = vld [vmem:[#allocation3 + $0x288] sm:$0xff]
      %v2648 = vld [vmem:[#allocation3 + $0x290] sm:$0xff]
      %v2649 = vld [vmem:[#allocation3 + $0x298] sm:$0xff]
      %v2650 = vld [vmem:[#allocation3 + $0x2a0] sm:$0xff]
      %v2651 = vld [vmem:[#allocation3 + $0x2a8] sm:$0xff]
      %v2652 = vld [vmem:[#allocation3 + $0x2b0] sm:$0xff]
      %v2653 = vld [vmem:[#allocation3 + $0x2b8] sm:$0xff]
      %v2654 = vld [vmem:[#allocation3 + $0x2c0] sm:$0xff]
      %v2655 = vld [vmem:[#allocation3 + $0x2c8] sm:$0xff]
      %v2656 = vld [vmem:[#allocation3 + $0x2d0] sm:$0xff]
      %v2657 = vld [vmem:[#allocation3 + $0x2d8] sm:$0xff]
      %v2658 = vld [vmem:[#allocation3 + $0x2e0] sm:$0xff]
      %v2659 = vld [vmem:[#allocation3 + $0x2e8] sm:$0xff]
      %v2660 = vld [vmem:[#allocation3 + $0x2f0] sm:$0xff]
      %v2661 = vld [vmem:[#allocation3 + $0x2f8] sm:$0xff]
      %v2662 = vld [vmem:[#allocation3 + $0x300] sm:$0xff]
      %v2663 = vld [vmem:[#allocation3 + $0x308] sm:$0xff]
      %v2664 = vld [vmem:[#allocation3 + $0x310] sm:$0xff]
      %v2665 = vld [vmem:[#allocation3 + $0x318] sm:$0xff]
      %v2666 = vld [vmem:[#allocation3 + $0x320] sm:$0xff]
      %v2667 = vld [vmem:[#allocation3 + $0x328] sm:$0xff]
      %v2668 = vld [vmem:[#allocation3 + $0x330] sm:$0xff]
      %v2669 = vld [vmem:[#allocation3 + $0x338] sm:$0xff]
      %v2670 = vld [vmem:[#allocation3 + $0x340] sm:$0xff]
      %v2671 = vld [vmem:[#allocation3 + $0x348] sm:$0xff]
      %v2672 = vld [vmem:[#allocation3 + $0x350] sm:$0xff]
      %v2673 = vld [vmem:[#allocation3 + $0x358] sm:$0xff]
      %v2675 = vsel %vm1563, %v2565, 0
      %2677 = vmatprep.subr.mxu0 %v2567
      %2678 = vmatpush1.msra.mxu0 %v2566
      %2679 = vmatprep.subr.mxu0 %v2571
      %2680 = vmatpush1.msra.mxu0 %v2570
      %2681 = vmatprep.subr.mxu0 %v2575
      %2682 = vmatpush1.msra.mxu0 %v2574
      %2683 = vmatprep.subr.mxu0 %v2579
      %2684 = vmatpush1.msra.mxu0 %v2578
      %2685 = vmatprep.subr.mxu0 %v2583
      %2686 = vmatpush1.msra.mxu0 %v2582
      %2687 = vmatprep.subr.mxu0 %v2587
      %2688 = vmatpush1.msra.mxu0 %v2586
      %2689 = vmatprep.subr.mxu0 %v2591
      %2690 = vmatpush1.msra.mxu0 %v2590
      %2691 = vmatprep.subr.mxu0 %v2595
      %2692 = vmatpush1.msra.mxu0 %v2594
      %2693 = vmatprep.subr.mxu0 %v2599
      %2694 = vmatpush1.msra.mxu0 %v2598
      %2695 = vmatprep.subr.mxu0 %v2603
      %2696 = vmatpush1.msra.mxu0 %v2602
      %2697 = vmatprep.subr.mxu0 %v2607
      %2698 = vmatpush1.msra.mxu0 %v2606
      %2699 = vmatprep.subr.mxu0 %v2611
      %2700 = vmatpush1.msra.mxu0 %v2610
      %2701 = vmatprep.subr.mxu0 %v2615
      %2702 = vmatpush1.msra.mxu0 %v2614
      %2703 = vmatprep.subr.mxu0 %v2619
      %2704 = vmatpush1.msra.mxu0 %v2618
      %2705 = vmatprep.subr.mxu0 %v2623
      %2706 = vmatpush1.msra.mxu0 %v2622
      %2707 = vmatprep.subr.mxu0 %v2627
      %2708 = vmatpush1.msra.mxu0 %v2626
      %2709 = vmatprep.subr.mxu0 %v2631
      %2710 = vmatpush1.msra.mxu0 %v2630
      %2711 = vmatprep.subr.mxu0 %v2635
      %2712 = vmatpush1.msra.mxu0 %v2634
      %2713 = vmatprep.subr.mxu0 %v2639
      %2714 = vmatpush1.msra.mxu0 %v2638
      %2715 = vmatprep.subr.mxu0 %v2643
      %2716 = vmatpush1.msra.mxu0 %v2642
      %2717 = vmatprep.subr.mxu0 %v2647
      %2718 = vmatpush1.msra.mxu0 %v2646
      %2719 = vmatprep.subr.mxu0 %v2651
      %2720 = vmatpush1.msra.mxu0 %v2650
      %2721 = vmatprep.subr.mxu0 %v2655
      %2722 = vmatpush1.msra.mxu0 %v2654
      %2723 = vmatprep.subr.mxu0 %v2659
      %2724 = vmatpush1.msra.mxu0 %v2658
      %2725 = vmatprep.subr.mxu0 %v2663
      %2726 = vmatpush1.msra.mxu0 %v2662
      %2727 = vmatprep.subr.mxu0 %v2667
      %2728 = vmatpush1.msra.mxu0 %v2666
      %2729 = vmatprep.subr.mxu0 %v2671
      %2730 = vmatpush1.msra.mxu0 %v2670
      %2731 = vmatprep.subr.mxu0 0.0
      %2732 = vmatpush1.msra.mxu0 0.0
      %2733 = vmatprep.subr.mxu0 0.0
      %2734 = vmatpush1.msra.mxu0 0.0
      %2735 = vmatprep.subr.mxu0 0.0
      %2736 = vmatpush1.msra.mxu0 0.0
      %2737 = vmatprep.subr.mxu0 0.0
      %2738 = vmatpush1.msra.mxu0 0.0
      %2739 = vmatprep.subr.mxu0 0.0
      %2740 = vmatpush1.msra.mxu0 0.0
      %2741 = vmatprep.mubr.f32.mxu0 %v2675
      %2742 = vmatmul.mubr.f32.gmra.mrb[0].mxu0 %v2564
      %v2743 = vpop.f32.mrb[0].mxu0
      %v2744 = vadd.f32 0.0, %v2743
      %v2745 = vpop.f32.mrb[0].mxu0
      %v2746 = vadd.f32 0.0, %v2745
      %2747 = vdwg.mxu0
      %2748 = vmatprep.subr.mxu0 %v2569
      %2749 = vmatpush1.msra.mxu0 %v2568
      %2750 = vmatprep.subr.mxu0 %v2573
      %2751 = vmatpush1.msra.mxu0 %v2572
      %2752 = vmatprep.subr.mxu0 %v2577
      %2753 = vmatpush1.msra.mxu0 %v2576
      %2754 = vmatprep.subr.mxu0 %v2581
      %2755 = vmatpush1.msra.mxu0 %v2580
      %2756 = vmatprep.subr.mxu0 %v2585
      %2757 = vmatpush1.msra.mxu0 %v2584
      %2758 = vmatprep.subr.mxu0 %v2589
      %2759 = vmatpush1.msra.mxu0 %v2588
      %2760 = vmatprep.subr.mxu0 %v2593
      %2761 = vmatpush1.msra.mxu0 %v2592
      %2762 = vmatprep.subr.mxu0 %v2597
      %2763 = vmatpush1.msra.mxu0 %v2596
      %2764 = vmatprep.subr.mxu0 %v2601
      %2765 = vmatpush1.msra.mxu0 %v2600
      %2766 = vmatprep.subr.mxu0 %v2605
      %2767 = vmatpush1.msra.mxu0 %v2604
      %2768 = vmatprep.subr.mxu0 %v2609
      %2769 = vmatpush1.msra.mxu0 %v2608
      %2770 = vmatprep.subr.mxu0 %v2613
      %2771 = vmatpush1.msra.mxu0 %v2612
      %2772 = vmatprep.subr.mxu0 %v2617
      %2773 = vmatpush1.msra.mxu0 %v2616
      %2774 = vmatprep.subr.mxu0 %v2621
      %2775 = vmatpush1.msra.mxu0 %v2620
      %2776 = vmatprep.subr.mxu0 %v2625
      %2777 = vmatpush1.msra.mxu0 %v2624
      %2778 = vmatprep.subr.mxu0 %v2629
      %2779 = vmatpush1.msra.mxu0 %v2628
      %2780 = vmatprep.subr.mxu0 %v2633
      %2781 = vmatpush1.msra.mxu0 %v2632
      %2782 = vmatprep.subr.mxu0 %v2637
      %2783 = vmatpush1.msra.mxu0 %v2636
      %2784 = vmatprep.subr.mxu0 %v2641
      %2785 = vmatpush1.msra.mxu0 %v2640
      %2786 = vmatprep.subr.mxu0 %v2645
      %2787 = vmatpush1.msra.mxu0 %v2644
      %2788 = vmatprep.subr.mxu0 %v2649
      %2789 = vmatpush1.msra.mxu0 %v2648
      %2790 = vmatprep.subr.mxu0 %v2653
      %2791 = vmatpush1.msra.mxu0 %v2652
      %2792 = vmatprep.subr.mxu0 %v2657
      %2793 = vmatpush1.msra.mxu0 %v2656
      %2794 = vmatprep.subr.mxu0 %v2661
      %2795 = vmatpush1.msra.mxu0 %v2660
      %2796 = vmatprep.subr.mxu0 %v2665
      %2797 = vmatpush1.msra.mxu0 %v2664
      %2798 = vmatprep.subr.mxu0 %v2669
      %2799 = vmatpush1.msra.mxu0 %v2668
      %2800 = vmatprep.subr.mxu0 %v2673
      %2801 = vmatpush1.msra.mxu0 %v2672
      %2802 = vmatprep.subr.mxu0 0.0
      %2803 = vmatpush1.msra.mxu0 0.0
      %2804 = vmatprep.subr.mxu0 0.0
      %2805 = vmatpush1.msra.mxu0 0.0
      %2806 = vmatprep.subr.mxu0 0.0
      %2807 = vmatpush1.msra.mxu0 0.0
      %2808 = vmatprep.subr.mxu0 0.0
      %2809 = vmatpush1.msra.mxu0 0.0
      %2810 = vmatprep.subr.mxu0 0.0
      %2811 = vmatpush1.msra.mxu0 0.0
      %2812 = vmatprep.mubr.f32.mxu0 %v2675
      %2813 = vmatmul.mubr.f32.gmra.mrb[0].mxu0 %v2564
      %v2814 = vpop.f32.mrb[0].mxu0
      %v2815 = vadd.f32 0.0, %v2814
      %v2816 = vpop.f32.mrb[0].mxu0
      %v2817 = vadd.f32 0.0, %v2816
      %2818 = vdwg.mxu0
      %v2819 = vadd.f32 %v2744, %v2746
      %v2820 = vadd.f32 %v2819, %v2815
      %v2821 = vadd.f32 %v2820, %v2817
      %2822 = vadd.xlane.f32.xlu0 %v2821
      %v2823 = vpop.xlane.xlu0 %2822
      %v2824 = vmul.f32 %v2823, %v1714
      %v2825 = vsub.f32 %v2744, %v2824
      %v2826 = vsub.f32 %v2746, %v2824
      %v2827 = vsub.f32 %v2815, %v2824
      %v2828 = vsub.f32 %v2817, %v2824
      %v2829 = vmul.f32 %v2825, %v2825
      %v2830 = vmul.f32 %v2826, %v2826
      %v2831 = vmul.f32 %v2827, %v2827
      %v2832 = vmul.f32 %v2828, %v2828
      %v2833 = vadd.f32 %v2829, %v2830
      %v2834 = vadd.f32 %v2833, %v2831
      %v2835 = vadd.f32 %v2834, %v2832
      %2836 = vadd.xlane.f32.xlu0 %v2835
      %v2837 = vpop.xlane.xlu0 %2836
      %v2838 = vmul.f32 %v2837, %v1714
      %v2839 = vadd.f32 %v2838, 1e-05
      %v2840 = vrsqrt.pop %v2839
      %v2841 = vmul.f32 %v2825, %v2840
      %v2842 = vmul.f32 %v2826, %v2840
      %v2843 = vmul.f32 %v2827, %v2840
      %v2844 = vmul.f32 %v2828, %v2840
      %v2845 = vmul.f32 %v2841, 0.01
      %v2846 = vmul.f32 %v2842, 0.01
      %v2847 = vmul.f32 %v2843, 0.01
      %v2848 = vmul.f32 %v2844, 0.01
      %v2849 = vmax.f32 %v2841, %v2845
      %v2850 = vmax.f32 %v2842, %v2846
      %v2851 = vmax.f32 %v2843, %v2847
      %v2852 = vmax.f32 %v2844, %v2848
      %v2857 = vcombine.low %v2849, %v2850
      %v2858 = vcombine.low %v2851, %v2852
      %2861 = vst [vmem:[%s197] sm:$0xff] %v2857
      %2862 = vst [vmem:[%s197 + $0x8] sm:$0xff] %v2858
      %p2863 = scmp.lt.s32.totalorder %s15, 1
      %s2864 = scalar_select %p2863, %s15, 1
      %s2865 = smul.addr %s2864, 4
      %s2866 = smul.addr %s2865, 4
      %s2867 = scalar_lea.vmem %s4, %s2866
      // Predicated region
      $region37: #{normal_block.1} parent=35 // pred_check
        %p2868 = pneg %p122
      $region38: #{normal_block.1} parent=35 // pred_check_branch
        %2870 = sbr.rel (%p2868) target = $region40
      $region39: #{normal_block.1} parent=35 // pred_region
        _
      $region40: #{normal_block.1} parent=35 // pred_fallthru
        _
    $region36: #{normal_block.1} parent=5 // pred_fallthru
      _
    %p2871 = scmp.le.s32.totalorder 2, %s10
    // Predicated region
    $region41: #{normal_block.1} parent=5 // pred_check
      %p2872 = pneg %p2871
    $region42: #{normal_block.1} parent=5 // pred_check_branch
      %2874 = sbr.rel (%p2872) target = $region44
    $region43: #{normal_block.1} parent=5 // pred_region
      %s2875 = ssub.s32 %s10, 2
      // Predicated region
      $region45: #{normal_block.1} parent=43 // pred_check
        %p2876 = pneg %p128
      $region46: #{normal_block.1} parent=43 // pred_check_branch
        %2878 = sbr.rel (%p2876) target = $region48
      $region47: #{normal_block.1} parent=43 // pred_region
        %p2879 = scmp.lt.s32.totalorder %s16, 1
        %s2880 = scalar_select %p2879, %s16, 1
        %s2881 = smul.addr %s2880, 4
        %s2882 = smul.addr %s2881, 4
        %s2883 = scalar_lea.vmem %s4, %s2882
      $region48: #{normal_block.1} parent=43 // pred_fallthru
        _
    $region44: #{normal_block.1} parent=5 // pred_fallthru
      _
  $region6: #{normal_block.1} parent=0 // loop_footer
    %s14 = sadd.s32 1, %s10
  $region7: #{normal_block.1} parent=0 // loop_footer_branch
    %9 = sbr.rel target = $region3
  $region8: #{normal_block.1} parent=0 // loop_exit
    _

</llo_original>
